<compile_context>
chip_gen: v7x
topology: tpu7x:2x2x1
jax: 0.10.0
libtpu: 0.0.40
codegen_flags: <defaults>
</compile_context>

<pallas_src>
import functools

import jax
import jax.numpy as jnp
from jax.experimental import pallas as pl
from jax.experimental.pallas import tpu as pltpu


def _round_up(x, m):
    return (x + m - 1) // m * m


def _vmem_capacity_bytes():
    """Per-core VMEM capacity; conservative fallback if the query fails."""
    try:
        return int(pltpu.get_tpu_info().vmem_capacity_bytes)
    except Exception:
        return 64 * 1024 * 1024  # v7x per-TC VMEM (smallest of v5e/v6e/v7x)


def _pad_rows(TH, Wp):
    """Bottom halo rows so M_IN = (TH+PADR)*Wp is a multiple of 16 (bf16 packs
    16 rows/vreg).  PADR >= 3 is the 3x3-conv halo requirement."""
    return 3 if ((TH + 3) * Wp) % 16 == 0 else 4


def _estimate_vmem_bytes(TH, Wp, cin, cmid, cout_pad):
    """Conservative per-grid-step VMEM working set (double buffers + temps)."""
    padr = _pad_rows(TH, Wp)
    m_in = (TH + padr) * Wp
    m_out = TH * Wp
    mq = m_out + 8
    inp = 2 * m_in * cin * 2                    # double-buffered bf16 input band
    outp = 2 * m_out * cout_pad * 2             # double-buffered bf16 output block
    wts = 2 * (cin * 9 * cmid * 2 + cmid * 4 + cmid * cout_pad * 2 + cout_pad * 4)
    interm = (m_in * 3 * cmid * 4               # per-dx matmul result (f32)
              + mq * cmid * 4                   # dy-summed partial
              + 2 * m_out * cmid * 4            # acc + leaky
              + m_out * cmid * 2                # bf16 cast of hidden
              + 2 * m_out * cout_pad * 4)       # logits + exp
    return inp + outp + wts + interm


def _choose_row_band(H, Wp, budget_bytes, *, min_bands=1,
                     cin=256, cmid=128, cout_pad=128):
    """Largest divisor TH of H whose working set fits the VMEM budget."""
    best = 1
    for th in range(1, H + 1):
        if H % th:
            continue
        n_bands = H // th
        if n_bands < min_bands:
            continue
        # keep bf16 output blocks 16-row aligned when the block is not full
        if n_bands > 1 and (th * Wp) % 16 != 0:
            continue
        if _estimate_vmem_bytes(th, Wp, cin, cmid, cout_pad) <= budget_bytes:
            best = max(best, th)
    return best


def _flowhead_kernel(x_ref, w1_ref, b1_ref, w2_ref, b2_ref, out_ref, *,
                     TH, Wp, CMID, NCLS_PAD):
    """One grid step == one (batch image, row band).

    x_ref  : ((TH+PADR)*Wp, CIN)  bf16  zero-padded, pre-flattened NHWC band
    w1_ref : (CIN, 9*CMID)        bf16  3x3 weights, taps ordered dx-major
                                         (dx outer, dy inner), BN scale folded
    b1_ref : (1, CMID)            f32   folded BN bias
    w2_ref : (CMID, 2*NCLS_PAD)   bf16  1x1 weights, halves padded to 64 lanes
    b2_ref : (1, 2*NCLS_PAD)      f32   1x1 bias, padded lanes = -1e30
    out_ref: (TH*Wp, 2*NCLS_PAD)  bf16  lane-dense per-half softmax output
    """
    M = TH * Wp               # output rows in this band
    MQ = M + 8                # dy-summed partial rows (covers dx shift, 8-aligned)
    N3 = 3 * CMID
    COUT_PAD = 2 * NCLS_PAD

    x = x_ref[...]            # (M_IN, CIN) bf16

    # --- 3x3 conv: one MXU matmul per dx group (N = 3*CMID = 384). ---
    # For each dx group sum the three dy taps with Wp-aligned row offsets
    # (Wp % 8 == 0 -> sublane aligned), then apply the single dx row shift
    # with one slice.  Only dx in {1, 2} relayouts -> 2 misaligned slices/band.
    # (v6e refinement, not applied: fuse dx=0,1 into one N=768 matmul so two
    #  of the three matmuls are exact multiples of the 256-wide MXU.)
    acc = None
    for dx in range(3):
        r = jnp.dot(x, w1_ref[:, dx * N3:(dx + 1) * N3],
                    preferred_element_type=jnp.float32)        # (M_IN, 3*CMID)
        q = (r[0:MQ, 0:CMID]
             + r[Wp:Wp + MQ, CMID:2 * CMID]
             + r[2 * Wp:2 * Wp + MQ, 2 * CMID:3 * CMID])        # (MQ, CMID)
        part = q[dx:dx + M]                                     # dx row shift
        acc = part if acc is None else acc + part
    acc = acc + b1_ref[...]                                     # folded BN bias

    # --- LeakyReLU(0.01) (BatchNorm already folded into conv1). ---
    h = jnp.where(acc > 0, acc, jnp.float32(0.01) * acc)

    # --- 1x1 conv on the MXU (bf16 in, f32 acc) + padded bias. ---
    y = jnp.dot(h.astype(jnp.bfloat16), w2_ref[...],
                preferred_element_type=jnp.float32) + b2_ref[...]

    # --- Two 64-lane-aligned softmaxes: slice-based max/sum, one full exp. ---
    # Padded lanes carry a -1e30 bias -> exp(.) == 0 -> zero probability.
    m0 = jnp.max(y[:, :NCLS_PAD], axis=-1, keepdims=True)
    m1 = jnp.max(y[:, NCLS_PAD:], axis=-1, keepdims=True)
    lane = jax.lax.broadcasted_iota(jnp.int32, (M, COUT_PAD), 1)
    first = lane < NCLS_PAD
    e = jnp.exp(y - jnp.where(first, m0, m1))
    s0 = jnp.sum(e[:, :NCLS_PAD], axis=-1, keepdims=True)
    s1 = jnp.sum(e[:, NCLS_PAD:], axis=-1, keepdims=True)
    inv = jnp.where(first, 1.0 / s0, 1.0 / s1)                  # exact reciprocal
    out_ref[...] = (e * inv).astype(out_ref.dtype)


def prepare_params(params, num_class=25):
    """One-time weight preprocessing (hoisted out of the forward path):
    BN fold, dx-major tap layout, lane padding, bf16 casts."""
    CMID = 128
    CIN = params["w1"].shape[1]
    NCLS = num_class
    NCLS_PAD = _round_up(max(NCLS, 1), 64)
    COUT = 2 * NCLS
    COUT_PAD = 2 * NCLS_PAD
    eps = 1e-5

    scale = params["bn_gamma"] / jnp.sqrt(params["bn_var"] + eps)        # (CMID,)
    bias1 = params["bn_beta"] + (params["b1"] - params["bn_mean"]) * scale
    bias1 = bias1.reshape(1, CMID).astype(jnp.float32)

    # OIHW -> (dx, dy, CIN, CMID), fold BN scale, stack taps dx-major along N.
    w1t = jnp.transpose(params["w1"], (3, 2, 1, 0)) * scale              # (3,3,CIN,CMID)
    w1_all = jnp.transpose(w1t.reshape(9, CIN, CMID), (1, 0, 2))
    w1_all = w1_all.reshape(CIN, 9 * CMID).astype(jnp.bfloat16)

    # 1x1 conv: pad each softmax half to 64 lanes (zero weights, -1e30 bias).
    w2 = params["w2"].reshape(COUT, CMID).T                              # (CMID, COUT)
    b2 = params["b2"].reshape(COUT)
    w2_pad = jnp.zeros((CMID, COUT_PAD), jnp.float32)
    w2_pad = w2_pad.at[:, :NCLS].set(w2[:, :NCLS])
    w2_pad = w2_pad.at[:, NCLS_PAD:NCLS_PAD + NCLS].set(w2[:, NCLS:])
    b2_pad = jnp.full((1, COUT_PAD), -1e30, jnp.float32)
    b2_pad = b2_pad.at[0, :NCLS].set(b2[:NCLS])
    b2_pad = b2_pad.at[0, NCLS_PAD:NCLS_PAD + NCLS].set(b2[NCLS:])

    return {"w1_all": w1_all, "b1": bias1,
            "w2_pad": w2_pad.astype(jnp.bfloat16), "b2_pad": b2_pad}


def flowhead_cla(x_nchw, prep, *, num_class=25):
    """x_nchw: (B, 256, H, W) f32 -> (B, 2*num_class, H, W) f32 (eval mode)."""
    B, CIN, H, W = x_nchw.shape
    CMID = 128
    NCLS = num_class
    NCLS_PAD = _round_up(max(NCLS, 1), 64)      # each softmax half -> 64 lanes
    COUT_PAD = 2 * NCLS_PAD

    Wp = _round_up(W + 2, 8)                    # padded width, 8-aligned
    vmem_cap = _vmem_capacity_bytes()
    budget = int(vmem_cap * 0.7)
    # Keep >= 2 grid steps on the parallel axes so 2-TC chips (v7x) stay busy.
    min_bands = 2 if B == 1 else 1
    TH = _choose_row_band(H, Wp, budget, min_bands=min_bands,
                          cin=CIN, cmid=CMID, cout_pad=COUT_PAD)
    nH = H // TH
    PADR = _pad_rows(TH, Wp)                    # 3 or 4 -> M_IN multiple of 16
    M_IN = (TH + PADR) * Wp
    M_OUT = TH * Wp

    # ---- input: NCHW -> NHWC (cast bf16 early), zero pad, flatten bands ----
    # TODO(synk): keep NHWC end-to-end upstream/downstream if possible; the
    # NCHW<->NHWC transposes here are pure layout traffic around the kernel.
    x = jnp.transpose(x_nchw.astype(jnp.bfloat16), (0, 2, 3, 1))         # (B,H,W,CIN)
    xpad = jnp.pad(x, ((0, 0), (1, PADR - 1), (1, Wp - W - 1), (0, 0)))  # (B,H+PADR,Wp,CIN)
    if nH == 1:
        xb = xpad.reshape(B, 1, M_IN, CIN)      # no band-stack copy (pure reshape)
    else:
        # TODO(synk): for multi-band images, pass xpad with memory_space=pl.ANY
        # and double-buffer the overlapping M_IN-row window in-kernel with
        # pltpu.make_async_copy to avoid this extra HBM copy.
        xb = jnp.stack([xpad[:, i * TH:i * TH + TH + PADR] for i in range(nH)],
                       axis=1).reshape(B, nH, M_IN, CIN)

    kernel = functools.partial(_flowhead_kernel, TH=TH, Wp=Wp,
                               CMID=CMID, NCLS_PAD=NCLS_PAD)

    out_wide = pl.pallas_call(
        kernel,
        out_shape=jax.ShapeDtypeStruct((B, H * Wp, COUT_PAD), jnp.bfloat16),
        grid_spec=pltpu.PrefetchScalarGridSpec(
            num_scalar_prefetch=0,
            grid=(B, nH),
            in_specs=[
                pl.BlockSpec((None, None, M_IN, CIN), lambda b, i: (b, i, 0, 0)),
                # constant-index weight blocks (never re-fetched across steps)
                pl.BlockSpec((CIN, 9 * CMID), lambda b, i: (0, 0)),
                pl.BlockSpec((1, CMID), lambda b, i: (0, 0)),
                pl.BlockSpec((CMID, COUT_PAD), lambda b, i: (0, 0)),
                pl.BlockSpec((1, COUT_PAD), lambda b, i: (0, 0)),
            ],
            out_specs=pl.BlockSpec((None, M_OUT, COUT_PAD),
                                   lambda b, i: (b, i, 0)),
        ),
        compiler_params=pltpu.CompilerParams(
            dimension_semantics=("parallel", "parallel"),
            vmem_limit_bytes=min(int(vmem_cap * 0.8), 100 * 1024 * 1024)),
    )(xb, prep["w1_all"], prep["b1"], prep["w2_pad"], prep["b2_pad"])

    # ---- crop wide columns / padded lanes, back to NCHW, final f32 cast ----
    out = out_wide.reshape(B, H, Wp, COUT_PAD)[:, :, :W, :]
    out_nhwc = jnp.concatenate(
        [out[..., :NCLS], out[..., NCLS_PAD:NCLS_PAD + NCLS]], axis=-1)
    return jnp.transpose(out_nhwc, (0, 3, 1, 2)).astype(jnp.float32)


def _reference(x_nchw, params, *, num_class=25):
    """Pure-JAX f32 reference of the PyTorch module (eval mode)."""
    eps = 1e-5
    z = jax.lax.conv_general_dilated(
        x_nchw, params["w1"], window_strides=(1, 1), padding=((1, 1), (1, 1)),
        dimension_numbers=("NCHW", "OIHW", "NCHW"))
    z = z + params["b1"][None, :, None, None]
    scale = params["bn_gamma"] / jnp.sqrt(params["bn_var"] + eps)
    z = (z - params["bn_mean"][None, :, None, None]) * scale[None, :, None, None]
    z = z + params["bn_beta"][None, :, None, None]
    z = jnp.where(z > 0, z, 0.01 * z)
    w2 = params["w2"].reshape(2 * num_class, 128)
    y = jnp.einsum("bchw,oc->bohw", z, w2) + params["b2"][None, :, None, None]
    py = jax.nn.softmax(y[:, :num_class], axis=1)
    px = jax.nn.softmax(y[:, num_class:], axis=1)
    return jnp.concatenate([py, px], axis=1)


def init_params(key, num_class=25):
    CIN, CMID, COUT = 256, 128, 2 * num_class
    ks = jax.random.split(key, 6)
    return {
        "w1": jax.random.normal(ks[0], (CMID, CIN, 3, 3), jnp.float32) * 0.02,
        "b1": jax.random.normal(ks[1], (CMID,), jnp.float32) * 0.02,
        "bn_gamma": jnp.ones((CMID,), jnp.float32)
                    + 0.1 * jax.random.normal(ks[2], (CMID,), jnp.float32),
        "bn_beta": 0.1 * jax.random.normal(ks[3], (CMID,), jnp.float32),
        "bn_mean": 0.05 * jax.random.normal(ks[4], (CMID,), jnp.float32),
        "bn_var": jnp.ones((CMID,), jnp.float32),
        "w2": jax.random.normal(ks[5], (COUT, CMID, 1, 1), jnp.float32) * 0.05,
        "b2": jnp.zeros((COUT,), jnp.float32),
    }


if __name__ == "__main__":
    NUM_CLASS = 25
    B, CIN, H, W = 2, 256, 16, 16

    key = jax.random.PRNGKey(0)
    kx, kp = jax.random.split(key)
    x = jax.random.normal(kx, (B, CIN, H, W), jnp.float32)
    params = init_params(kp, num_class=NUM_CLASS)

    # Weight preprocessing is done once, outside the (jitted) forward path.
    prep = prepare_params(params, num_class=NUM_CLASS)
    fwd = jax.jit(functools.partial(flowhead_cla, num_class=NUM_CLASS))

    out = jax.block_until_ready(fwd(x, prep))
    assert out.shape == (B, 2 * NUM_CLASS, H, W), out.shape

    # Each softmax half sums to 1 over channels.
    sy = jnp.sum(out[:, :NUM_CLASS], axis=1)
    sx = jnp.sum(out[:, NUM_CLASS:], axis=1)
    assert jnp.allclose(sy, 1.0, atol=1e-2), float(jnp.max(jnp.abs(sy - 1.0)))
    assert jnp.allclose(sx, 1.0, atol=1e-2), float(jnp.max(jnp.abs(sx - 1.0)))

    # Loose check vs the pure-JAX f32 reference (bf16 matmuls + bf16 writeback).
    ref = _reference(x, params, num_class=NUM_CLASS)
    err = float(jnp.max(jnp.abs(out - ref)))
    assert err < 1.5e-2, err

    print("KERNEL_OK")
</pallas_src>

<mosaic_0001>
module attributes {stable_mosaic.version = 11 : i64} {
  func.func @_flowhead_kernel(%arg0: i32, %arg1: i32, %arg2: memref<1x1x480x256xbf16, #tpu.memory_space<vmem>>, %arg3: memref<256x1152xbf16, #tpu.memory_space<vmem>>, %arg4: memref<1x128xf32, #tpu.memory_space<vmem>>, %arg5: memref<128x128xbf16, #tpu.memory_space<vmem>>, %arg6: memref<1x128xf32, #tpu.memory_space<vmem>>, %arg7: memref<1x384x128xbf16, #tpu.memory_space<vmem>>) attributes {dimension_semantics = [#tpu.dimension_semantics<parallel>, #tpu.dimension_semantics<parallel>], iteration_bounds = array<i64: 2, 1>, scalar_prefetch = 0 : i64, scratch_operands = 0 : i64, tpu.core_type = #tpu.core_type<tc>, window_params = [{transform_indices = @transform_0, window_bounds = array<i64: 1, 1, 480, 256>}, {pipeline_mode = #tpu.pipeline_mode<synchronous>, transform_indices = @transform_1, window_bounds = array<i64: 256, 1152>}, {pipeline_mode = #tpu.pipeline_mode<synchronous>, transform_indices = @transform_2, window_bounds = array<i64: 1, 128>}, {pipeline_mode = #tpu.pipeline_mode<synchronous>, transform_indices = @transform_3, window_bounds = array<i64: 128, 128>}, {pipeline_mode = #tpu.pipeline_mode<synchronous>, transform_indices = @transform_4, window_bounds = array<i64: 1, 128>}, {transform_indices = @transform_5, window_bounds = array<i64: 1, 384, 128>}]} {
    %c0 = arith.constant 0 : index
    %c0_0 = arith.constant 0 : index
    %c0_1 = arith.constant 0 : index
    %c0_2 = arith.constant 0 : index
    %0 = vector.load %arg2[%c0, %c0_0, %c0_1, %c0_2] : memref<1x1x480x256xbf16, #tpu.memory_space<vmem>>, vector<1x1x480x256xbf16>
    %1 = vector.shape_cast %0 : vector<1x1x480x256xbf16> to vector<480x256xbf16>
    %c0_3 = arith.constant 0 : index
    %c0_4 = arith.constant 0 : index
    %2 = vector.load %arg3[%c0_3, %c0_4] : memref<256x1152xbf16, #tpu.memory_space<vmem>>, vector<256x384xbf16>
    %cst = arith.constant dense<0.000000e+00> : vector<480x384xf32>
    %3 = tpu.matmul %1, %2, %cst {dimension_numbers = #tpu.dot_dimension_numbers<[1], [0], [0], [1], [0, 0, 1, 1], [], []>} : vector<480x256xbf16>, vector<256x384xbf16>, vector<480x384xf32> -> vector<480x384xf32>
    %4 = vector.extract_strided_slice %3 {offsets = [0, 0], sizes = [392, 128], strides = [1, 1]} : vector<480x384xf32> to vector<392x128xf32>
    %5 = vector.extract_strided_slice %3 {offsets = [24, 128], sizes = [392, 128], strides = [1, 1]} : vector<480x384xf32> to vector<392x128xf32>
    %6 = arith.addf %4, %5 : vector<392x128xf32>
    %7 = vector.extract_strided_slice %3 {offsets = [48, 256], sizes = [392, 128], strides = [1, 1]} : vector<480x384xf32> to vector<392x128xf32>
    %8 = arith.addf %6, %7 : vector<392x128xf32>
    %9 = vector.extract_strided_slice %8 {offsets = [0, 0], sizes = [384, 128], strides = [1, 1]} : vector<392x128xf32> to vector<384x128xf32>
    %c0_5 = arith.constant 0 : index
    %c384 = arith.constant 384 : index
    %10 = vector.load %arg3[%c0_5, %c384] : memref<256x1152xbf16, #tpu.memory_space<vmem>>, vector<256x384xbf16>
    %cst_6 = arith.constant dense<0.000000e+00> : vector<480x384xf32>
    %11 = tpu.matmul %1, %10, %cst_6 {dimension_numbers = #tpu.dot_dimension_numbers<[1], [0], [0], [1], [0, 0, 1, 1], [], []>} : vector<480x256xbf16>, vector<256x384xbf16>, vector<480x384xf32> -> vector<480x384xf32>
    %12 = vector.extract_strided_slice %11 {offsets = [0, 0], sizes = [392, 128], strides = [1, 1]} : vector<480x384xf32> to vector<392x128xf32>
    %13 = vector.extract_strided_slice %11 {offsets = [24, 128], sizes = [392, 128], strides = [1, 1]} : vector<480x384xf32> to vector<392x128xf32>
    %14 = arith.addf %12, %13 : vector<392x128xf32>
    %15 = vector.extract_strided_slice %11 {offsets = [48, 256], sizes = [392, 128], strides = [1, 1]} : vector<480x384xf32> to vector<392x128xf32>
    %16 = arith.addf %14, %15 : vector<392x128xf32>
    %17 = vector.extract_strided_slice %16 {offsets = [1, 0], sizes = [384, 128], strides = [1, 1]} : vector<392x128xf32> to vector<384x128xf32>
    %18 = arith.addf %9, %17 : vector<384x128xf32>
    %c0_7 = arith.constant 0 : index
    %c768 = arith.constant 768 : index
    %19 = vector.load %arg3[%c0_7, %c768] : memref<256x1152xbf16, #tpu.memory_space<vmem>>, vector<256x384xbf16>
    %cst_8 = arith.constant dense<0.000000e+00> : vector<480x384xf32>
    %20 = tpu.matmul %1, %19, %cst_8 {dimension_numbers = #tpu.dot_dimension_numbers<[1], [0], [0], [1], [0, 0, 1, 1], [], []>} : vector<480x256xbf16>, vector<256x384xbf16>, vector<480x384xf32> -> vector<480x384xf32>
    %21 = vector.extract_strided_slice %20 {offsets = [0, 0], sizes = [392, 128], strides = [1, 1]} : vector<480x384xf32> to vector<392x128xf32>
    %22 = vector.extract_strided_slice %20 {offsets = [24, 128], sizes = [392, 128], strides = [1, 1]} : vector<480x384xf32> to vector<392x128xf32>
    %23 = arith.addf %21, %22 : vector<392x128xf32>
    %24 = vector.extract_strided_slice %20 {offsets = [48, 256], sizes = [392, 128], strides = [1, 1]} : vector<480x384xf32> to vector<392x128xf32>
    %25 = arith.addf %23, %24 : vector<392x128xf32>
    %26 = vector.extract_strided_slice %25 {offsets = [2, 0], sizes = [384, 128], strides = [1, 1]} : vector<392x128xf32> to vector<384x128xf32>
    %27 = arith.addf %18, %26 : vector<384x128xf32>
    %c0_9 = arith.constant 0 : index
    %c0_10 = arith.constant 0 : index
    %28 = vector.load %arg4[%c0_9, %c0_10] : memref<1x128xf32, #tpu.memory_space<vmem>>, vector<1x128xf32>
    %29 = vector.broadcast %28 : vector<1x128xf32> to vector<384x128xf32>
    %30 = arith.addf %27, %29 : vector<384x128xf32>
    %cst_11 = arith.constant 0.000000e+00 : f32
    %31 = vector.broadcast %cst_11 : f32 to vector<384x128xf32>
    %32 = arith.cmpf ogt, %30, %31 : vector<384x128xf32>
    %cst_12 = arith.constant 0.00999999977 : f32
    %33 = vector.broadcast %cst_12 : f32 to vector<384x128xf32>
    %34 = arith.mulf %33, %30 : vector<384x128xf32>
    %35 = arith.select %32, %30, %34 : vector<384x128xi1>, vector<384x128xf32>
    %36 = arith.truncf %35 : vector<384x128xf32> to vector<384x128xbf16>
    %c0_13 = arith.constant 0 : index
    %c0_14 = arith.constant 0 : index
    %37 = vector.load %arg5[%c0_13, %c0_14] : memref<128x128xbf16, #tpu.memory_space<vmem>>, vector<128x128xbf16>
    %cst_15 = arith.constant dense<0.000000e+00> : vector<384x128xf32>
    %38 = tpu.matmul %36, %37, %cst_15 {dimension_numbers = #tpu.dot_dimension_numbers<[1], [0], [0], [1], [0, 0, 1, 1], [], []>} : vector<384x128xbf16>, vector<128x128xbf16>, vector<384x128xf32> -> vector<384x128xf32>
    %c0_16 = arith.constant 0 : index
    %c0_17 = arith.constant 0 : index
    %39 = vector.load %arg6[%c0_16, %c0_17] : memref<1x128xf32, #tpu.memory_space<vmem>>, vector<1x128xf32>
    %40 = vector.broadcast %39 : vector<1x128xf32> to vector<384x128xf32>
    %41 = arith.addf %38, %40 : vector<384x128xf32>
    %42 = vector.extract_strided_slice %41 {offsets = [0, 0], sizes = [384, 64], strides = [1, 1]} : vector<384x128xf32> to vector<384x64xf32>
    %cst_18 = arith.constant dense<0xFF800000> : vector<384xf32>
    %43 = vector.multi_reduction <maximumf>, %42, %cst_18 [1] : vector<384x64xf32> to vector<384xf32>
    %44 = vector.shape_cast %43 : vector<384xf32> to vector<384x1xf32>
    %45 = vector.extract_strided_slice %41 {offsets = [0, 64], sizes = [384, 64], strides = [1, 1]} : vector<384x128xf32> to vector<384x64xf32>
    %cst_19 = arith.constant dense<0xFF800000> : vector<384xf32>
    %46 = vector.multi_reduction <maximumf>, %45, %cst_19 [1] : vector<384x64xf32> to vector<384xf32>
    %47 = vector.shape_cast %46 : vector<384xf32> to vector<384x1xf32>
    %48 = tpu.iota {dimensions = array<i32: 1>} : vector<384x128xi32>
    %c64_i32 = arith.constant 64 : i32
    %49 = vector.broadcast %c64_i32 : i32 to vector<384x128xi32>
    %50 = arith.cmpi slt, %48, %49 : vector<384x128xi32>
    %51 = vector.shape_cast %44 : vector<384x1xf32> to vector<384x1xf32>
    %52 = vector.broadcast %51 : vector<384x1xf32> to vector<384x128xf32>
    %53 = vector.shape_cast %47 : vector<384x1xf32> to vector<384x1xf32>
    %54 = vector.broadcast %53 : vector<384x1xf32> to vector<384x128xf32>
    %55 = arith.select %50, %52, %54 : vector<384x128xi1>, vector<384x128xf32>
    %56 = arith.subf %41, %55 : vector<384x128xf32>
    %57 = math.exp %56 : vector<384x128xf32>
    %58 = vector.extract_strided_slice %57 {offsets = [0, 0], sizes = [384, 64], strides = [1, 1]} : vector<384x128xf32> to vector<384x64xf32>
    %cst_20 = arith.constant dense<0.000000e+00> : vector<384xf32>
    %59 = vector.multi_reduction <add>, %58, %cst_20 [1] : vector<384x64xf32> to vector<384xf32>
    %60 = vector.shape_cast %59 : vector<384xf32> to vector<384x1xf32>
    %61 = vector.extract_strided_slice %57 {offsets = [0, 64], sizes = [384, 64], strides = [1, 1]} : vector<384x128xf32> to vector<384x64xf32>
    %cst_21 = arith.constant dense<0.000000e+00> : vector<384xf32>
    %62 = vector.multi_reduction <add>, %61, %cst_21 [1] : vector<384x64xf32> to vector<384xf32>
    %63 = vector.shape_cast %62 : vector<384xf32> to vector<384x1xf32>
    %cst_22 = arith.constant 1.000000e+00 : f32
    %64 = vector.broadcast %cst_22 : f32 to vector<384x1xf32>
    %65 = arith.divf %64, %60 : vector<384x1xf32>
    %cst_23 = arith.constant 1.000000e+00 : f32
    %66 = vector.broadcast %cst_23 : f32 to vector<384x1xf32>
    %67 = arith.divf %66, %63 : vector<384x1xf32>
    %68 = vector.shape_cast %65 : vector<384x1xf32> to vector<384x1xf32>
    %69 = vector.broadcast %68 : vector<384x1xf32> to vector<384x128xf32>
    %70 = vector.shape_cast %67 : vector<384x1xf32> to vector<384x1xf32>
    %71 = vector.broadcast %70 : vector<384x1xf32> to vector<384x128xf32>
    %72 = arith.select %50, %69, %71 : vector<384x128xi1>, vector<384x128xf32>
    %73 = arith.mulf %57, %72 : vector<384x128xf32>
    %74 = arith.truncf %73 : vector<384x128xf32> to vector<384x128xbf16>
    %c0_24 = arith.constant 0 : index
    %c0_25 = arith.constant 0 : index
    %c0_26 = arith.constant 0 : index
    %75 = vector.load %arg7[%c0_24, %c0_25, %c0_26] : memref<1x384x128xbf16, #tpu.memory_space<vmem>>, vector<1x384x128xbf16>
    %76 = vector.shape_cast %75 : vector<1x384x128xbf16> to vector<384x128xbf16>
    %77 = vector.shape_cast %74 : vector<384x128xbf16> to vector<1x384x128xbf16>
    tpu.vector_store %arg7[%c0_24, %c0_25, %c0_26], %77 {strides = array<i32>} : memref<1x384x128xbf16, #tpu.memory_space<vmem>>, vector<1x384x128xbf16>,
    return
  }
  func.func @transform_0(%arg0: i32, %arg1: i32) -> (i32, i32, i32, i32) {
    %c0_i32 = arith.constant 0 : i32
    %c0_i32_0 = arith.constant 0 : i32
    %c0_i32_1 = arith.constant 0 : i32
    return %arg0, %arg1, %c0_i32, %c0_i32_0 : i32, i32, i32, i32
  }
  func.func @transform_1(%arg0: i32, %arg1: i32) -> (i32, i32) {
    %c0_i32 = arith.constant 0 : i32
    %c0_i32_0 = arith.constant 0 : i32
    %c0_i32_1 = arith.constant 0 : i32
    return %c0_i32, %c0_i32_0 : i32, i32
  }
  func.func @transform_2(%arg0: i32, %arg1: i32) -> (i32, i32) {
    %c0_i32 = arith.constant 0 : i32
    %c0_i32_0 = arith.constant 0 : i32
    %c0_i32_1 = arith.constant 0 : i32
    return %c0_i32, %c0_i32_0 : i32, i32
  }
  func.func @transform_3(%arg0: i32, %arg1: i32) -> (i32, i32) {
    %c0_i32 = arith.constant 0 : i32
    %c0_i32_0 = arith.constant 0 : i32
    %c0_i32_1 = arith.constant 0 : i32
    return %c0_i32, %c0_i32_0 : i32, i32
  }
  func.func @transform_4(%arg0: i32, %arg1: i32) -> (i32, i32) {
    %c0_i32 = arith.constant 0 : i32
    %c0_i32_0 = arith.constant 0 : i32
    %c0_i32_1 = arith.constant 0 : i32
    return %c0_i32, %c0_i32_0 : i32, i32
  }
  func.func @transform_5(%arg0: i32, %arg1: i32) -> (i32, i32, i32) {
    %c0_i32 = arith.constant 0 : i32
    %c0_i32_0 = arith.constant 0 : i32
    return %arg0, %arg1, %c0_i32 : i32, i32, i32
  }
}

</mosaic_0001>

<llo_original>
// kernel: flowhead_cla.1
$region0: #{flowhead_cla.1}
  #allocation0 [shape = 'u32[]', space=smem, size = 0x4, offset = 0x4, fixed_abs, tag = 'smem constant byte address 0x4 - core index']
  #allocation1 [shape = 'u32[144,128]{1,0:T(1,128)}', space=vmem, size = 0x12000, scoped, tag = 'internal scratch']
  %s0 = inlined_call_operand.vmem [shape: bf16[2,1,480,256], index: 0, kind: input, shape index: {}]
  %s1 = inlined_call_operand.vmem [shape: bf16[256,1152], index: 1, kind: input, shape index: {}]
  %s2 = inlined_call_operand.vmem [shape: f32[1,128], index: 2, kind: input, shape index: {}]
  %s3 = inlined_call_operand.vmem [shape: bf16[128,128], index: 3, kind: input, shape index: {}]
  %s4 = inlined_call_operand.vmem [shape: f32[1,128], index: 4, kind: input, shape index: {}]
  %s5 = inlined_call_operand.vmem [shape: bf16[2,384,128], index: 5, kind: output, shape index: {}]
  %s6 = sld [smem:[#allocation0]]
  $region53: #{flowhead_cla.1} parent=0
    _
  %s8 = ssub.s32 1, %s6
  %s9 = scalar_select 0, %s8, %s6
  loop: start=0, step=1, limit=4
  $region2: #{flowhead_cla.1} parent=0 // loop_pre_header
    _
  $region3: #{flowhead_cla.1} parent=0 // loop_header
    %s11 = sphi 0, %s15
    %p12 = scmp.ge.s32.totalorder %s11, 4
    %s18 = sphi 0, %s30
    %s19 = sphi 0, %s26
    %s20 = sphi 0, %s18
    %s21 = sphi 0, %s19
    %s22 = sphi 0, %s20
    %s23 = sphi 0, %s21
    %s35 = sphi 0, %s37
    %s38 = sphi 0, %s35
    %s39 = sphi 0, %s38
    %s55 = sphi 0, %s39
    %s59 = sphi 0, %s59
    %s61 = sphi 0, %s59
    %s62 = sphi 0, %s61
    %s76 = sphi 0, %s62
    %s80 = sphi 0, %s80
    %s82 = sphi 0, %s80
    %s83 = sphi 0, %s82
    %s97 = sphi 0, %s83
    %s101 = sphi 0, %s101
    %s103 = sphi 0, %s101
    %s104 = sphi 0, %s103
    %s118 = sphi 0, %s104
    %s122 = sphi 0, %s122
    %s124 = sphi 0, %s122
    %s125 = sphi 0, %s124
    %s139 = sphi 0, %s125
    %s147 = sphi 0, %s149
    %s150 = sphi 0, %s147
    %s151 = sphi 0, %s150
    %s167 = sphi 0, %s151
  $region4: #{flowhead_cla.1} parent=0 // loop_header_branch
    %14 = sbr.rel (%p12) target = $region8
  $region5: #{flowhead_cla.1} parent=0 // loop_body
    %s16 = ssub.s32 %s11, 1
    %s17 = ssub.s32 %s11, 2
    %s24 = sadd.s32 1, %s19
    %p25 = scmp.ge.s32.totalorder %s24, 1
    %s26 = scalar_select %p25, 0, %s24
    %s27 = sadd.s32 1, %s18
    %s28 = scalar_select %p25, %s27, %s18
    %p29 = scmp.ge.s32.totalorder %s28, 2
    %s30 = scalar_select %p29, 0, %s28
    %s31 = ssub.s32 %s18, %s30
    %s32 = ssub.s32 %s19, %s26
    %s33 = sor.u32 %s31, %s32
    %p34 = scmp.eq.s32.totalorder %s33, 0
    %s36 = sadd.s32 %s35, 1
    %s37 = scalar_select %p34, %s35, %s36
    %p40 = pneg %p34
    %p41 = scmp.eq.s32.totalorder %s11, 1
    %p42 = por %p40, %p41
    %p43 = scmp.ne.s32.totalorder %s35, %s38
    %p44 = scmp.eq.s32.totalorder %s11, 0
    %p45 = por %p43, %p44
    %p46 = scmp.ne.s32.totalorder %s35, %s38
    %p47 = scmp.eq.s32.totalorder %s16, 1
    %p48 = por %p46, %p47
    %p49 = scmp.ne.s32.totalorder %s38, %s39
    %p50 = scmp.eq.s32.totalorder %s16, 0
    %p51 = por %p49, %p50
    %p52 = scmp.ne.s32.totalorder %s38, %s39
    %p53 = scmp.eq.s32.totalorder %s17, 1
    %p54 = por %p52, %p53
    %p56 = scmp.ne.s32.totalorder %s39, %s55
    %p57 = scmp.eq.s32.totalorder %s17, 0
    %p58 = por %p56, %p57
    %s60 = sadd.s32 %s59, 1
    %p63 = scmp.eq.s32.totalorder %s11, 1
    %p64 = scmp.ne.s32.totalorder %s59, %s61
    %p65 = scmp.eq.s32.totalorder %s11, 0
    %p66 = por %p64, %p65
    %p67 = scmp.ne.s32.totalorder %s59, %s61
    %p68 = scmp.eq.s32.totalorder %s16, 1
    %p69 = por %p67, %p68
    %p70 = scmp.ne.s32.totalorder %s61, %s62
    %p71 = scmp.eq.s32.totalorder %s16, 0
    %p72 = por %p70, %p71
    %p73 = scmp.ne.s32.totalorder %s61, %s62
    %p74 = scmp.eq.s32.totalorder %s17, 1
    %p75 = por %p73, %p74
    %p77 = scmp.ne.s32.totalorder %s62, %s76
    %p78 = scmp.eq.s32.totalorder %s17, 0
    %p79 = por %p77, %p78
    %s81 = sadd.s32 %s80, 1
    %p84 = scmp.eq.s32.totalorder %s11, 1
    %p85 = scmp.ne.s32.totalorder %s80, %s82
    %p86 = scmp.eq.s32.totalorder %s11, 0
    %p87 = por %p85, %p86
    %p88 = scmp.ne.s32.totalorder %s80, %s82
    %p89 = scmp.eq.s32.totalorder %s16, 1
    %p90 = por %p88, %p89
    %p91 = scmp.ne.s32.totalorder %s82, %s83
    %p92 = scmp.eq.s32.totalorder %s16, 0
    %p93 = por %p91, %p92
    %p94 = scmp.ne.s32.totalorder %s82, %s83
    %p95 = scmp.eq.s32.totalorder %s17, 1
    %p96 = por %p94, %p95
    %p98 = scmp.ne.s32.totalorder %s83, %s97
    %p99 = scmp.eq.s32.totalorder %s17, 0
    %p100 = por %p98, %p99
    %s102 = sadd.s32 %s101, 1
    %p105 = scmp.eq.s32.totalorder %s11, 1
    %p106 = scmp.ne.s32.totalorder %s101, %s103
    %p107 = scmp.eq.s32.totalorder %s11, 0
    %p108 = por %p106, %p107
    %p109 = scmp.ne.s32.totalorder %s101, %s103
    %p110 = scmp.eq.s32.totalorder %s16, 1
    %p111 = por %p109, %p110
    %p112 = scmp.ne.s32.totalorder %s103, %s104
    %p113 = scmp.eq.s32.totalorder %s16, 0
    %p114 = por %p112, %p113
    %p115 = scmp.ne.s32.totalorder %s103, %s104
    %p116 = scmp.eq.s32.totalorder %s17, 1
    %p117 = por %p115, %p116
    %p119 = scmp.ne.s32.totalorder %s104, %s118
    %p120 = scmp.eq.s32.totalorder %s17, 0
    %p121 = por %p119, %p120
    %s123 = sadd.s32 %s122, 1
    %p126 = scmp.eq.s32.totalorder %s11, 1
    %p127 = scmp.ne.s32.totalorder %s122, %s124
    %p128 = scmp.eq.s32.totalorder %s11, 0
    %p129 = por %p127, %p128
    %p130 = scmp.ne.s32.totalorder %s122, %s124
    %p131 = scmp.eq.s32.totalorder %s16, 1
    %p132 = por %p130, %p131
    %p133 = scmp.ne.s32.totalorder %s124, %s125
    %p134 = scmp.eq.s32.totalorder %s16, 0
    %p135 = por %p133, %p134
    %p136 = scmp.ne.s32.totalorder %s124, %s125
    %p137 = scmp.eq.s32.totalorder %s17, 1
    %p138 = por %p136, %p137
    %p140 = scmp.ne.s32.totalorder %s125, %s139
    %p141 = scmp.eq.s32.totalorder %s17, 0
    %p142 = por %p140, %p141
    %s143 = ssub.s32 %s18, %s30
    %s144 = ssub.s32 %s19, %s26
    %s145 = sor.u32 %s143, %s144
    %p146 = scmp.eq.s32.totalorder %s145, 0
    %s148 = sadd.s32 %s147, 1
    %s149 = scalar_select %p146, %s147, %s148
    %p152 = pneg %p146
    %p153 = scmp.eq.s32.totalorder %s11, 1
    %p154 = por %p152, %p153
    %p155 = scmp.ne.s32.totalorder %s147, %s150
    %p156 = scmp.eq.s32.totalorder %s11, 0
    %p157 = por %p155, %p156
    %p158 = scmp.ne.s32.totalorder %s147, %s150
    %p159 = scmp.eq.s32.totalorder %s16, 1
    %p160 = por %p158, %p159
    %p161 = scmp.ne.s32.totalorder %s150, %s151
    %p162 = scmp.eq.s32.totalorder %s16, 0
    %p163 = por %p161, %p162
    %p164 = scmp.ne.s32.totalorder %s150, %s151
    %p165 = scmp.eq.s32.totalorder %s17, 1
    %p166 = por %p164, %p165
    %p168 = scmp.ne.s32.totalorder %s151, %s167
    %p169 = scmp.eq.s32.totalorder %s17, 0
    %p170 = por %p168, %p169
    %p171 = scmp.le.s32.totalorder 1, %s11
    %p172 = scmp.lt.s32.totalorder %s11, 3
    %p173 = pnand %p171, %p172
    %p174 = pneg %p173
    // Predicated region
    $region9: #{flowhead_cla.1} parent=5 // pred_check
      _
    $region10: #{flowhead_cla.1} parent=5 // pred_check_branch
      %176 = sbr.rel (%p173) target = $region12
    $region11: #{flowhead_cla.1} parent=5 // pred_region
      %s177 = ssub.s32 %s11, 1
      // Predicated region
      $region13: #{flowhead_cla.1} parent=11 // pred_check
        %p178 = pneg %p72
      $region14: #{flowhead_cla.1} parent=11 // pred_check_branch
        %180 = sbr.rel (%p178) target = $region16
      $region15: #{flowhead_cla.1} parent=11 // pred_region
        _
      $region16: #{flowhead_cla.1} parent=11 // pred_fallthru
        _
      // Predicated region
      $region17: #{flowhead_cla.1} parent=11 // pred_check
        %p181 = pneg %p93
      $region18: #{flowhead_cla.1} parent=11 // pred_check_branch
        %183 = sbr.rel (%p181) target = $region20
      $region19: #{flowhead_cla.1} parent=11 // pred_region
        _
      $region20: #{flowhead_cla.1} parent=11 // pred_fallthru
        _
      // Predicated region
      $region21: #{flowhead_cla.1} parent=11 // pred_check
        %p184 = pneg %p114
      $region22: #{flowhead_cla.1} parent=11 // pred_check_branch
        %186 = sbr.rel (%p184) target = $region24
      $region23: #{flowhead_cla.1} parent=11 // pred_region
        _
      $region24: #{flowhead_cla.1} parent=11 // pred_fallthru
        _
      // Predicated region
      $region25: #{flowhead_cla.1} parent=11 // pred_check
        %p187 = pneg %p135
      $region26: #{flowhead_cla.1} parent=11 // pred_check_branch
        %189 = sbr.rel (%p187) target = $region28
      $region27: #{flowhead_cla.1} parent=11 // pred_region
        _
      $region28: #{flowhead_cla.1} parent=11 // pred_fallthru
        _
    $region12: #{flowhead_cla.1} parent=5 // pred_fallthru
      _
    %p190 = scmp.lt.s32.totalorder %s11, 2
    // Predicated region
    $region29: #{flowhead_cla.1} parent=5 // pred_check
      %p191 = pneg %p190
    $region30: #{flowhead_cla.1} parent=5 // pred_check_branch
      %193 = sbr.rel (%p191) target = $region32
    $region31: #{flowhead_cla.1} parent=5 // pred_region
      // Predicated region
      $region33: #{flowhead_cla.1} parent=31 // pred_check
        %p194 = pneg %p45
      $region34: #{flowhead_cla.1} parent=31 // pred_check_branch
        %196 = sbr.rel (%p194) target = $region36
      $region35: #{flowhead_cla.1} parent=31 // pred_region
        %p197 = scmp.lt.s32.totalorder %s18, 1
        %s198 = scalar_select %p197, %s18, 1
        %p199 = scmp.lt.s32.totalorder %s19, 0
        %s200 = scalar_select %p199, %s19, 0
        %s201 = smul.addr %s200, 120
        %s202 = smul.addr %s198, 120
        %s203 = sadd.s32 %s201, %s202
        %s204 = smul.addr %s203, 4
        %s205 = scalar_lea.vmem %s0, %s204
      $region36: #{flowhead_cla.1} parent=31 // pred_fallthru
        _
    $region32: #{flowhead_cla.1} parent=5 // pred_fallthru
      _
    %p206 = scmp.le.s32.totalorder 1, %s11
    %p207 = scmp.lt.s32.totalorder %s11, 3
    %p208 = pnand %p206, %p207
    %p209 = pneg %p208
    // Predicated region
    $region37: #{flowhead_cla.1} parent=5 // pred_check
      _
    $region38: #{flowhead_cla.1} parent=5 // pred_check_branch
      %211 = sbr.rel (%p208) target = $region40
    $region39: #{flowhead_cla.1} parent=5 // pred_region
      %s212 = ssub.s32 %s11, 1
      %p213 = scmp.lt.s32.totalorder %s20, 1
      %s214 = scalar_select %p213, %s20, 1
      %p215 = scmp.lt.s32.totalorder %s21, 0
      %s216 = scalar_select %p215, %s21, 0
      %s217 = smul.addr %s216, 120
      %s218 = smul.addr %s214, 120
      %s219 = sadd.s32 %s217, %s218
      %s220 = smul.addr %s219, 4
      %s221 = scalar_lea.vmem %s0, %s220
      %p222 = pneg %p51
      %p223 = pneg %p48
      %p224 = pneg %p72
      %p225 = pneg %p69
      %p226 = pneg %p93
      %p227 = pneg %p90
      %p228 = pneg %p114
      %p229 = pneg %p111
      %p230 = pneg %p135
      %p231 = pneg %p132
      %p232 = pneg %p163
      %p233 = pneg %p160
      %s234 = smul.u32 48, %s21
      %p235 = scmp.lt.s32.totalorder %s20, 1
      %s236 = scalar_select %p235, %s20, 1
      %p237 = scmp.lt.s32.totalorder %s234, 47
      %s238 = scalar_select %p237, %s234, 47
      %s239 = smul.addr %s236, 48
      %s240 = sadd.s32 %s238, %s239
      %s241 = smul.addr %s240, 4
      %s242 = scalar_lea.vmem %s5, %s241
      %p243 = scmp.lt.s32.totalorder %s20, 1
      %s244 = scalar_select %p243, %s20, 1
      %p245 = scmp.lt.s32.totalorder %s21, 0
      %s246 = scalar_select %p245, %s21, 0
      %s247 = smul.addr %s246, 120
      %s248 = smul.addr %s244, 120
      %s249 = sadd.s32 %s247, %s248
      %s250 = smul.addr %s249, 4
      %s251 = scalar_lea.vmem %s0, %s250
      %s252 = smul.u32 48, %s21
      %p253 = scmp.lt.s32.totalorder %s20, 1
      %s254 = scalar_select %p253, %s20, 1
      %p255 = scmp.lt.s32.totalorder %s252, 47
      %s256 = scalar_select %p255, %s252, 47
      %s257 = smul.addr %s254, 48
      %s258 = sadd.s32 %s256, %s257
      %s259 = smul.addr %s258, 4
      %s260 = scalar_lea.vmem %s5, %s259
      %s261 = smul.u32 48, %s21
      %v263 = vld [vmem:[%s251] sm:$0xff]
      %v264 = vld [vmem:[%s251 + $0x8] sm:$0xff]
      %v265 = vld [vmem:[%s251 + $0x10] sm:$0xff]
      %v266 = vld [vmem:[%s251 + $0x18] sm:$0xff]
      %v267 = vld [vmem:[%s251 + $0x20] sm:$0xff]
      %v268 = vld [vmem:[%s251 + $0x28] sm:$0xff]
      %v269 = vld [vmem:[%s251 + $0x30] sm:$0xff]
      %v270 = vld [vmem:[%s251 + $0x38] sm:$0xff]
      %v271 = vld [vmem:[%s251 + $0x40] sm:$0xff]
      %v272 = vld [vmem:[%s251 + $0x48] sm:$0xff]
      %v273 = vld [vmem:[%s251 + $0x50] sm:$0xff]
      %v274 = vld [vmem:[%s251 + $0x58] sm:$0xff]
      %v275 = vld [vmem:[%s251 + $0x60] sm:$0xff]
      %v276 = vld [vmem:[%s251 + $0x68] sm:$0xff]
      %v277 = vld [vmem:[%s251 + $0x70] sm:$0xff]
      %v278 = vld [vmem:[%s251 + $0x78] sm:$0xff]
      %v279 = vld [vmem:[%s251 + $0x80] sm:$0xff]
      %v280 = vld [vmem:[%s251 + $0x88] sm:$0xff]
      %v281 = vld [vmem:[%s251 + $0x90] sm:$0xff]
      %v282 = vld [vmem:[%s251 + $0x98] sm:$0xff]
      %v283 = vld [vmem:[%s251 + $0xa0] sm:$0xff]
      %v284 = vld [vmem:[%s251 + $0xa8] sm:$0xff]
      %v285 = vld [vmem:[%s251 + $0xb0] sm:$0xff]
      %v286 = vld [vmem:[%s251 + $0xb8] sm:$0xff]
      %v287 = vld [vmem:[%s251 + $0xc0] sm:$0xff]
      %v288 = vld [vmem:[%s251 + $0xc8] sm:$0xff]
      %v289 = vld [vmem:[%s251 + $0xd0] sm:$0xff]
      %v290 = vld [vmem:[%s251 + $0xd8] sm:$0xff]
      %v291 = vld [vmem:[%s251 + $0xe0] sm:$0xff]
      %v292 = vld [vmem:[%s251 + $0xe8] sm:$0xff]
      %v293 = vld [vmem:[%s251 + $0xf0] sm:$0xff]
      %v294 = vld [vmem:[%s251 + $0xf8] sm:$0xff]
      %v295 = vld [vmem:[%s251 + $0x100] sm:$0xff]
      %v296 = vld [vmem:[%s251 + $0x108] sm:$0xff]
      %v297 = vld [vmem:[%s251 + $0x110] sm:$0xff]
      %v298 = vld [vmem:[%s251 + $0x118] sm:$0xff]
      %v299 = vld [vmem:[%s251 + $0x120] sm:$0xff]
      %v300 = vld [vmem:[%s251 + $0x128] sm:$0xff]
      %v301 = vld [vmem:[%s251 + $0x130] sm:$0xff]
      %v302 = vld [vmem:[%s251 + $0x138] sm:$0xff]
      %v303 = vld [vmem:[%s251 + $0x140] sm:$0xff]
      %v304 = vld [vmem:[%s251 + $0x148] sm:$0xff]
      %v305 = vld [vmem:[%s251 + $0x150] sm:$0xff]
      %v306 = vld [vmem:[%s251 + $0x158] sm:$0xff]
      %v307 = vld [vmem:[%s251 + $0x160] sm:$0xff]
      %v308 = vld [vmem:[%s251 + $0x168] sm:$0xff]
      %v309 = vld [vmem:[%s251 + $0x170] sm:$0xff]
      %v310 = vld [vmem:[%s251 + $0x178] sm:$0xff]
      %v311 = vld [vmem:[%s251 + $0x180] sm:$0xff]
      %v312 = vld [vmem:[%s251 + $0x188] sm:$0xff]
      %v313 = vld [vmem:[%s251 + $0x190] sm:$0xff]
      %v314 = vld [vmem:[%s251 + $0x198] sm:$0xff]
      %v315 = vld [vmem:[%s251 + $0x1a0] sm:$0xff]
      %v316 = vld [vmem:[%s251 + $0x1a8] sm:$0xff]
      %v317 = vld [vmem:[%s251 + $0x1b0] sm:$0xff]
      %v318 = vld [vmem:[%s251 + $0x1b8] sm:$0xff]
      %v319 = vld [vmem:[%s251 + $0x1c0] sm:$0xff]
      %v320 = vld [vmem:[%s251 + $0x1c8] sm:$0xff]
      %v321 = vld [vmem:[%s251 + $0x1d0] sm:$0xff]
      %v322 = vld [vmem:[%s251 + $0x1d8] sm:$0xff]
      %v323 = vld [vmem:[%s1] sm:$0xff]
      %v324 = vld [vmem:[%s1 + $0x8] sm:$0xf]
      %v325 = vld [vmem:[%s1 + $0x24] sm:$0xff]
      %v326 = vld [vmem:[%s1 + $0x2c] sm:$0xf]
      %v327 = vld [vmem:[%s1 + $0x48] sm:$0xff]
      %v328 = vld [vmem:[%s1 + $0x50] sm:$0xf]
      %v329 = vld [vmem:[%s1 + $0x6c] sm:$0xff]
      %v330 = vld [vmem:[%s1 + $0x74] sm:$0xf]
      %v331 = vld [vmem:[%s1 + $0x90] sm:$0xff]
      %v332 = vld [vmem:[%s1 + $0x98] sm:$0xf]
      %v333 = vld [vmem:[%s1 + $0xb4] sm:$0xff]
      %v334 = vld [vmem:[%s1 + $0xbc] sm:$0xf]
      %v335 = vld [vmem:[%s1 + $0xd8] sm:$0xff]
      %v336 = vld [vmem:[%s1 + $0xe0] sm:$0xf]
      %v337 = vld [vmem:[%s1 + $0xfc] sm:$0xff]
      %v338 = vld [vmem:[%s1 + $0x104] sm:$0xf]
      %v339 = vld [vmem:[%s1 + $0x120] sm:$0xff]
      %v340 = vld [vmem:[%s1 + $0x128] sm:$0xf]
      %v341 = vld [vmem:[%s1 + $0x144] sm:$0xff]
      %v342 = vld [vmem:[%s1 + $0x14c] sm:$0xf]
      %v343 = vld [vmem:[%s1 + $0x168] sm:$0xff]
      %v344 = vld [vmem:[%s1 + $0x170] sm:$0xf]
      %v345 = vld [vmem:[%s1 + $0x18c] sm:$0xff]
      %v346 = vld [vmem:[%s1 + $0x194] sm:$0xf]
      %v347 = vld [vmem:[%s1 + $0x1b0] sm:$0xff]
      %v348 = vld [vmem:[%s1 + $0x1b8] sm:$0xf]
      %v349 = vld [vmem:[%s1 + $0x1d4] sm:$0xff]
      %v350 = vld [vmem:[%s1 + $0x1dc] sm:$0xf]
      %v351 = vld [vmem:[%s1 + $0x1f8] sm:$0xff]
      %v352 = vld [vmem:[%s1 + $0x200] sm:$0xf]
      %v353 = vld [vmem:[%s1 + $0x21c] sm:$0xff]
      %v354 = vld [vmem:[%s1 + $0x224] sm:$0xf]
      %v355 = vld [vmem:[%s1 + $0x240] sm:$0xff]
      %v356 = vld [vmem:[%s1 + $0x248] sm:$0xf]
      %v357 = vld [vmem:[%s1 + $0x264] sm:$0xff]
      %v358 = vld [vmem:[%s1 + $0x26c] sm:$0xf]
      %v359 = vld [vmem:[%s1 + $0x288] sm:$0xff]
      %v360 = vld [vmem:[%s1 + $0x290] sm:$0xf]
      %v361 = vld [vmem:[%s1 + $0x2ac] sm:$0xff]
      %v362 = vld [vmem:[%s1 + $0x2b4] sm:$0xf]
      %v363 = vld [vmem:[%s1 + $0x2d0] sm:$0xff]
      %v364 = vld [vmem:[%s1 + $0x2d8] sm:$0xf]
      %v365 = vld [vmem:[%s1 + $0x2f4] sm:$0xff]
      %v366 = vld [vmem:[%s1 + $0x2fc] sm:$0xf]
      %v367 = vld [vmem:[%s1 + $0x318] sm:$0xff]
      %v368 = vld [vmem:[%s1 + $0x320] sm:$0xf]
      %v369 = vld [vmem:[%s1 + $0x33c] sm:$0xff]
      %v370 = vld [vmem:[%s1 + $0x344] sm:$0xf]
      %v371 = vld [vmem:[%s1 + $0x360] sm:$0xff]
      %v372 = vld [vmem:[%s1 + $0x368] sm:$0xf]
      %v373 = vld [vmem:[%s1 + $0x384] sm:$0xff]
      %v374 = vld [vmem:[%s1 + $0x38c] sm:$0xf]
      %v375 = vld [vmem:[%s1 + $0x3a8] sm:$0xff]
      %v376 = vld [vmem:[%s1 + $0x3b0] sm:$0xf]
      %v377 = vld [vmem:[%s1 + $0x3cc] sm:$0xff]
      %v378 = vld [vmem:[%s1 + $0x3d4] sm:$0xf]
      %v379 = vld [vmem:[%s1 + $0x3f0] sm:$0xff]
      %v380 = vld [vmem:[%s1 + $0x3f8] sm:$0xf]
      %v381 = vld [vmem:[%s1 + $0x414] sm:$0xff]
      %v382 = vld [vmem:[%s1 + $0x41c] sm:$0xf]
      %v383 = vld [vmem:[%s1 + $0x438] sm:$0xff]
      %v384 = vld [vmem:[%s1 + $0x440] sm:$0xf]
      %v385 = vld [vmem:[%s1 + $0x45c] sm:$0xff]
      %v386 = vld [vmem:[%s1 + $0x464] sm:$0xf]
      %v447 = vunpack.c.l.b16 %v263
      %v448 = vunpack.c.h.b16 %v263
      %v449 = vunpack.c.l.b16 %v264
      %v450 = vunpack.c.h.b16 %v264
      %v451 = vunpack.c.l.b16 %v265
      %v452 = vunpack.c.h.b16 %v265
      %v453 = vunpack.c.l.b16 %v266
      %v454 = vunpack.c.h.b16 %v266
      %v455 = vunpack.c.l.b16 %v267
      %v456 = vunpack.c.h.b16 %v267
      %v457 = vunpack.c.l.b16 %v268
      %v458 = vunpack.c.h.b16 %v268
      %v459 = vunpack.c.l.b16 %v269
      %v460 = vunpack.c.h.b16 %v269
      %v461 = vunpack.c.l.b16 %v270
      %v462 = vunpack.c.h.b16 %v270
      %v463 = vunpack.c.l.b16 %v271
      %v464 = vunpack.c.h.b16 %v271
      %v465 = vunpack.c.l.b16 %v272
      %v466 = vunpack.c.h.b16 %v272
      %v467 = vunpack.c.l.b16 %v273
      %v468 = vunpack.c.h.b16 %v273
      %v469 = vunpack.c.l.b16 %v274
      %v470 = vunpack.c.h.b16 %v274
      %v471 = vunpack.c.l.b16 %v275
      %v472 = vunpack.c.h.b16 %v275
      %v473 = vunpack.c.l.b16 %v276
      %v474 = vunpack.c.h.b16 %v276
      %v475 = vunpack.c.l.b16 %v277
      %v476 = vunpack.c.h.b16 %v277
      %v477 = vunpack.c.l.b16 %v278
      %v478 = vunpack.c.h.b16 %v278
      %v479 = vunpack.c.l.b16 %v279
      %v480 = vunpack.c.h.b16 %v279
      %v481 = vunpack.c.l.b16 %v280
      %v482 = vunpack.c.h.b16 %v280
      %v483 = vunpack.c.l.b16 %v281
      %v484 = vunpack.c.h.b16 %v281
      %v485 = vunpack.c.l.b16 %v282
      %v486 = vunpack.c.h.b16 %v282
      %v487 = vunpack.c.l.b16 %v283
      %v488 = vunpack.c.h.b16 %v283
      %v489 = vunpack.c.l.b16 %v284
      %v490 = vunpack.c.h.b16 %v284
      %v491 = vunpack.c.l.b16 %v285
      %v492 = vunpack.c.h.b16 %v285
      %v493 = vunpack.c.l.b16 %v286
      %v494 = vunpack.c.h.b16 %v286
      %v495 = vunpack.c.l.b16 %v287
      %v496 = vunpack.c.h.b16 %v287
      %v497 = vunpack.c.l.b16 %v288
      %v498 = vunpack.c.h.b16 %v288
      %v499 = vunpack.c.l.b16 %v289
      %v500 = vunpack.c.h.b16 %v289
      %v501 = vunpack.c.l.b16 %v290
      %v502 = vunpack.c.h.b16 %v290
      %v503 = vunpack.c.l.b16 %v291
      %v504 = vunpack.c.h.b16 %v291
      %v505 = vunpack.c.l.b16 %v292
      %v506 = vunpack.c.h.b16 %v292
      %v507 = vunpack.c.l.b16 %v293
      %v508 = vunpack.c.h.b16 %v293
      %v509 = vunpack.c.l.b16 %v294
      %v510 = vunpack.c.h.b16 %v294
      %v511 = vunpack.c.l.b16 %v295
      %v512 = vunpack.c.h.b16 %v295
      %v513 = vunpack.c.l.b16 %v296
      %v514 = vunpack.c.h.b16 %v296
      %v515 = vunpack.c.l.b16 %v297
      %v516 = vunpack.c.h.b16 %v297
      %v517 = vunpack.c.l.b16 %v298
      %v518 = vunpack.c.h.b16 %v298
      %v519 = vunpack.c.l.b16 %v299
      %v520 = vunpack.c.h.b16 %v299
      %v521 = vunpack.c.l.b16 %v300
      %v522 = vunpack.c.h.b16 %v300
      %v523 = vunpack.c.l.b16 %v301
      %v524 = vunpack.c.h.b16 %v301
      %v525 = vunpack.c.l.b16 %v302
      %v526 = vunpack.c.h.b16 %v302
      %v527 = vunpack.c.l.b16 %v303
      %v528 = vunpack.c.h.b16 %v303
      %v529 = vunpack.c.l.b16 %v304
      %v530 = vunpack.c.h.b16 %v304
      %v531 = vunpack.c.l.b16 %v305
      %v532 = vunpack.c.h.b16 %v305
      %v533 = vunpack.c.l.b16 %v306
      %v534 = vunpack.c.h.b16 %v306
      %v535 = vunpack.c.l.b16 %v307
      %v536 = vunpack.c.h.b16 %v307
      %v537 = vunpack.c.l.b16 %v308
      %v538 = vunpack.c.h.b16 %v308
      %v539 = vunpack.c.l.b16 %v309
      %v540 = vunpack.c.h.b16 %v309
      %v541 = vunpack.c.l.b16 %v310
      %v542 = vunpack.c.h.b16 %v310
      %v543 = vunpack.c.l.b16 %v311
      %v544 = vunpack.c.h.b16 %v311
      %v545 = vunpack.c.l.b16 %v312
      %v546 = vunpack.c.h.b16 %v312
      %v547 = vunpack.c.l.b16 %v313
      %v548 = vunpack.c.h.b16 %v313
      %v549 = vunpack.c.l.b16 %v314
      %v550 = vunpack.c.h.b16 %v314
      %v551 = vunpack.c.l.b16 %v315
      %v552 = vunpack.c.h.b16 %v315
      %v553 = vunpack.c.l.b16 %v316
      %v554 = vunpack.c.h.b16 %v316
      %v555 = vunpack.c.l.b16 %v317
      %v556 = vunpack.c.h.b16 %v317
      %v557 = vunpack.c.l.b16 %v318
      %v558 = vunpack.c.h.b16 %v318
      %v559 = vunpack.c.l.b16 %v319
      %v560 = vunpack.c.h.b16 %v319
      %v561 = vunpack.c.l.b16 %v320
      %v562 = vunpack.c.h.b16 %v320
      %v563 = vunpack.c.l.b16 %v321
      %v564 = vunpack.c.h.b16 %v321
      %v565 = vunpack.c.l.b16 %v322
      %v566 = vunpack.c.h.b16 %v322
      %v567 = vpack.c.b16 %v449, %v447
      %v568 = vpack.c.b16 %v450, %v448
      %v569 = vpack.c.b16 %v453, %v451
      %v570 = vpack.c.b16 %v454, %v452
      %v571 = vpack.c.b16 %v457, %v455
      %v572 = vpack.c.b16 %v458, %v456
      %v573 = vpack.c.b16 %v461, %v459
      %v574 = vpack.c.b16 %v462, %v460
      %v575 = vpack.c.b16 %v465, %v463
      %v576 = vpack.c.b16 %v466, %v464
      %v577 = vpack.c.b16 %v469, %v467
      %v578 = vpack.c.b16 %v470, %v468
      %v579 = vpack.c.b16 %v473, %v471
      %v580 = vpack.c.b16 %v474, %v472
      %v581 = vpack.c.b16 %v477, %v475
      %v582 = vpack.c.b16 %v478, %v476
      %v583 = vpack.c.b16 %v481, %v479
      %v584 = vpack.c.b16 %v482, %v480
      %v585 = vpack.c.b16 %v485, %v483
      %v586 = vpack.c.b16 %v486, %v484
      %v587 = vpack.c.b16 %v489, %v487
      %v588 = vpack.c.b16 %v490, %v488
      %v589 = vpack.c.b16 %v493, %v491
      %v590 = vpack.c.b16 %v494, %v492
      %v591 = vpack.c.b16 %v497, %v495
      %v592 = vpack.c.b16 %v498, %v496
      %v593 = vpack.c.b16 %v501, %v499
      %v594 = vpack.c.b16 %v502, %v500
      %v595 = vpack.c.b16 %v505, %v503
      %v596 = vpack.c.b16 %v506, %v504
      %v597 = vpack.c.b16 %v509, %v507
      %v598 = vpack.c.b16 %v510, %v508
      %v599 = vpack.c.b16 %v513, %v511
      %v600 = vpack.c.b16 %v514, %v512
      %v601 = vpack.c.b16 %v517, %v515
      %v602 = vpack.c.b16 %v518, %v516
      %v603 = vpack.c.b16 %v521, %v519
      %v604 = vpack.c.b16 %v522, %v520
      %v605 = vpack.c.b16 %v525, %v523
      %v606 = vpack.c.b16 %v526, %v524
      %v607 = vpack.c.b16 %v529, %v527
      %v608 = vpack.c.b16 %v530, %v528
      %v609 = vpack.c.b16 %v533, %v531
      %v610 = vpack.c.b16 %v534, %v532
      %v611 = vpack.c.b16 %v537, %v535
      %v612 = vpack.c.b16 %v538, %v536
      %v613 = vpack.c.b16 %v541, %v539
      %v614 = vpack.c.b16 %v542, %v540
      %v615 = vpack.c.b16 %v545, %v543
      %v616 = vpack.c.b16 %v546, %v544
      %v617 = vpack.c.b16 %v549, %v547
      %v618 = vpack.c.b16 %v550, %v548
      %v619 = vpack.c.b16 %v553, %v551
      %v620 = vpack.c.b16 %v554, %v552
      %v621 = vpack.c.b16 %v557, %v555
      %v622 = vpack.c.b16 %v558, %v556
      %v623 = vpack.c.b16 %v561, %v559
      %v624 = vpack.c.b16 %v562, %v560
      %v625 = vpack.c.b16 %v565, %v563
      %v626 = vpack.c.b16 %v566, %v564
      %v751 = vunpack.c.l.b16 %v323
      %v752 = vunpack.c.h.b16 %v323
      %v753 = vunpack.c.l.b16 %v324
      %v754 = vunpack.c.l.b16 %v325
      %v755 = vunpack.c.h.b16 %v325
      %v756 = vunpack.c.l.b16 %v326
      %v757 = vunpack.c.l.b16 %v327
      %v758 = vunpack.c.h.b16 %v327
      %v759 = vunpack.c.l.b16 %v328
      %v760 = vunpack.c.l.b16 %v329
      %v761 = vunpack.c.h.b16 %v329
      %v762 = vunpack.c.l.b16 %v330
      %v763 = vunpack.c.l.b16 %v331
      %v764 = vunpack.c.h.b16 %v331
      %v765 = vunpack.c.l.b16 %v332
      %v766 = vunpack.c.l.b16 %v333
      %v767 = vunpack.c.h.b16 %v333
      %v768 = vunpack.c.l.b16 %v334
      %v769 = vunpack.c.l.b16 %v335
      %v770 = vunpack.c.h.b16 %v335
      %v771 = vunpack.c.l.b16 %v336
      %v772 = vunpack.c.l.b16 %v337
      %v773 = vunpack.c.h.b16 %v337
      %v774 = vunpack.c.l.b16 %v338
      %v775 = vunpack.c.l.b16 %v339
      %v776 = vunpack.c.h.b16 %v339
      %v777 = vunpack.c.l.b16 %v340
      %v778 = vunpack.c.l.b16 %v341
      %v779 = vunpack.c.h.b16 %v341
      %v780 = vunpack.c.l.b16 %v342
      %v781 = vunpack.c.l.b16 %v343
      %v782 = vunpack.c.h.b16 %v343
      %v783 = vunpack.c.l.b16 %v344
      %v784 = vunpack.c.l.b16 %v345
      %v785 = vunpack.c.h.b16 %v345
      %v786 = vunpack.c.l.b16 %v346
      %v787 = vunpack.c.l.b16 %v347
      %v788 = vunpack.c.h.b16 %v347
      %v789 = vunpack.c.l.b16 %v348
      %v790 = vunpack.c.l.b16 %v349
      %v791 = vunpack.c.h.b16 %v349
      %v792 = vunpack.c.l.b16 %v350
      %v793 = vunpack.c.l.b16 %v351
      %v794 = vunpack.c.h.b16 %v351
      %v795 = vunpack.c.l.b16 %v352
      %v796 = vunpack.c.l.b16 %v353
      %v797 = vunpack.c.h.b16 %v353
      %v798 = vunpack.c.l.b16 %v354
      %v799 = vunpack.c.l.b16 %v355
      %v800 = vunpack.c.h.b16 %v355
      %v801 = vunpack.c.l.b16 %v356
      %v802 = vunpack.c.l.b16 %v357
      %v803 = vunpack.c.h.b16 %v357
      %v804 = vunpack.c.l.b16 %v358
      %v805 = vunpack.c.l.b16 %v359
      %v806 = vunpack.c.h.b16 %v359
      %v807 = vunpack.c.l.b16 %v360
      %v808 = vunpack.c.l.b16 %v361
      %v809 = vunpack.c.h.b16 %v361
      %v810 = vunpack.c.l.b16 %v362
      %v811 = vunpack.c.l.b16 %v363
      %v812 = vunpack.c.h.b16 %v363
      %v813 = vunpack.c.l.b16 %v364
      %v814 = vunpack.c.l.b16 %v365
      %v815 = vunpack.c.h.b16 %v365
      %v816 = vunpack.c.l.b16 %v366
      %v817 = vunpack.c.l.b16 %v367
      %v818 = vunpack.c.h.b16 %v367
      %v819 = vunpack.c.l.b16 %v368
      %v820 = vunpack.c.l.b16 %v369
      %v821 = vunpack.c.h.b16 %v369
      %v822 = vunpack.c.l.b16 %v370
      %v823 = vunpack.c.l.b16 %v371
      %v824 = vunpack.c.h.b16 %v371
      %v825 = vunpack.c.l.b16 %v372
      %v826 = vunpack.c.l.b16 %v373
      %v827 = vunpack.c.h.b16 %v373
      %v828 = vunpack.c.l.b16 %v374
      %v829 = vunpack.c.l.b16 %v375
      %v830 = vunpack.c.h.b16 %v375
      %v831 = vunpack.c.l.b16 %v376
      %v832 = vunpack.c.l.b16 %v377
      %v833 = vunpack.c.h.b16 %v377
      %v834 = vunpack.c.l.b16 %v378
      %v835 = vunpack.c.l.b16 %v379
      %v836 = vunpack.c.h.b16 %v379
      %v837 = vunpack.c.l.b16 %v380
      %v838 = vunpack.c.l.b16 %v381
      %v839 = vunpack.c.h.b16 %v381
      %v840 = vunpack.c.l.b16 %v382
      %v841 = vunpack.c.l.b16 %v383
      %v842 = vunpack.c.h.b16 %v383
      %v843 = vunpack.c.l.b16 %v384
      %v844 = vunpack.c.l.b16 %v385
      %v845 = vunpack.c.h.b16 %v385
      %v846 = vunpack.c.l.b16 %v386
      %v847 = vpack.c.b16 %v754, %v751
      %v848 = vpack.c.b16 %v755, %v752
      %v849 = vpack.c.b16 %v756, %v753
      %v850 = vpack.c.b16 %v760, %v757
      %v851 = vpack.c.b16 %v761, %v758
      %v852 = vpack.c.b16 %v762, %v759
      %v853 = vpack.c.b16 %v766, %v763
      %v854 = vpack.c.b16 %v767, %v764
      %v855 = vpack.c.b16 %v768, %v765
      %v856 = vpack.c.b16 %v772, %v769
      %v857 = vpack.c.b16 %v773, %v770
      %v858 = vpack.c.b16 %v774, %v771
      %v859 = vpack.c.b16 %v778, %v775
      %v860 = vpack.c.b16 %v779, %v776
      %v861 = vpack.c.b16 %v780, %v777
      %v862 = vpack.c.b16 %v784, %v781
      %v863 = vpack.c.b16 %v785, %v782
      %v864 = vpack.c.b16 %v786, %v783
      %v865 = vpack.c.b16 %v790, %v787
      %v866 = vpack.c.b16 %v791, %v788
      %v867 = vpack.c.b16 %v792, %v789
      %v868 = vpack.c.b16 %v796, %v793
      %v869 = vpack.c.b16 %v797, %v794
      %v870 = vpack.c.b16 %v798, %v795
      %v871 = vpack.c.b16 %v802, %v799
      %v872 = vpack.c.b16 %v803, %v800
      %v873 = vpack.c.b16 %v804, %v801
      %v874 = vpack.c.b16 %v808, %v805
      %v875 = vpack.c.b16 %v809, %v806
      %v876 = vpack.c.b16 %v810, %v807
      %v877 = vpack.c.b16 %v814, %v811
      %v878 = vpack.c.b16 %v815, %v812
      %v879 = vpack.c.b16 %v816, %v813
      %v880 = vpack.c.b16 %v820, %v817
      %v881 = vpack.c.b16 %v821, %v818
      %v882 = vpack.c.b16 %v822, %v819
      %v883 = vpack.c.b16 %v826, %v823
      %v884 = vpack.c.b16 %v827, %v824
      %v885 = vpack.c.b16 %v828, %v825
      %v886 = vpack.c.b16 %v832, %v829
      %v887 = vpack.c.b16 %v833, %v830
      %v888 = vpack.c.b16 %v834, %v831
      %v889 = vpack.c.b16 %v838, %v835
      %v890 = vpack.c.b16 %v839, %v836
      %v891 = vpack.c.b16 %v840, %v837
      %v892 = vpack.c.b16 %v844, %v841
      %v893 = vpack.c.b16 %v845, %v842
      %v894 = vpack.c.b16 %v846, %v843
      %943 = vmatprep.subr.bf16.mxu0 %v848
      %944 = vmatpush1.bf16.msra.mxu0 %v847
      %945 = vmatprep.subr.bf16.mxu0 %v851
      %946 = vmatpush1.bf16.msra.mxu0 %v850
      %947 = vmatprep.subr.bf16.mxu0 %v854
      %948 = vmatpush1.bf16.msra.mxu0 %v853
      %949 = vmatprep.subr.bf16.mxu0 %v857
      %950 = vmatpush1.bf16.msra.mxu0 %v856
      %951 = vmatprep.subr.bf16.mxu0 %v860
      %952 = vmatpush1.bf16.msra.mxu0 %v859
      %953 = vmatprep.subr.bf16.mxu0 %v863
      %954 = vmatpush1.bf16.msra.mxu0 %v862
      %955 = vmatprep.subr.bf16.mxu0 %v866
      %956 = vmatpush1.bf16.msra.mxu0 %v865
      %957 = vmatprep.subr.bf16.mxu0 %v869
      %958 = vmatpush1.bf16.msra.mxu0 %v868
      %959 = vmatprep.subr.bf16.mxu0 %v872
      %960 = vmatpush1.bf16.msra.mxu0 %v871
      %961 = vmatprep.subr.bf16.mxu0 %v875
      %962 = vmatpush1.bf16.msra.mxu0 %v874
      %963 = vmatprep.subr.bf16.mxu0 %v878
      %964 = vmatpush1.bf16.msra.mxu0 %v877
      %965 = vmatprep.subr.bf16.mxu0 %v881
      %966 = vmatpush1.bf16.msra.mxu0 %v880
      %967 = vmatprep.subr.bf16.mxu0 %v884
      %968 = vmatpush1.bf16.msra.mxu0 %v883
      %969 = vmatprep.subr.bf16.mxu0 %v887
      %970 = vmatpush1.bf16.msra.mxu0 %v886
      %971 = vmatprep.subr.bf16.mxu0 %v890
      %972 = vmatpush1.bf16.msra.mxu0 %v889
      %973 = vmatprep.subr.bf16.mxu0 %v893
      %974 = vmatpush1.bf16.msra.mxu0 %v892
      %975 = vmatprep.mubr.bf16.mxu0 %v568
      %976 = vmatmul.mubr.bf16.gmra.mrb[0].mxu0 %v567
      %v977 = vpop.f32.mrb[0].mxu0
      %v978 = vadd.f32 0.0, %v977
      %v979 = vpop.f32.mrb[0].mxu0
      %v980 = vpop.f32.mrb[0].mxu0
      %v981 = vadd.f32 0.0, %v980
      %v982 = vpop.f32.mrb[0].mxu0
      %983 = vmatprep.mubr.bf16.mxu0 %v570
      %984 = vmatmul.mubr.bf16.gmra.mrb[0].mxu0 %v569
      %v985 = vpop.f32.mrb[0].mxu0
      %v986 = vadd.f32 0.0, %v985
      %v987 = vpop.f32.mrb[0].mxu0
      %v988 = vpop.f32.mrb[0].mxu0
      %v989 = vadd.f32 0.0, %v988
      %v990 = vpop.f32.mrb[0].mxu0
      %v991 = vadd.f32 0.0, %v990
      %992 = vmatprep.mubr.bf16.mxu0 %v572
      %993 = vmatmul.mubr.bf16.gmra.mrb[0].mxu0 %v571
      %v994 = vpop.f32.mrb[0].mxu0
      %v995 = vadd.f32 0.0, %v994
      %v996 = vpop.f32.mrb[0].mxu0
      %v997 = vadd.f32 0.0, %v996
      %v998 = vpop.f32.mrb[0].mxu0
      %v999 = vadd.f32 0.0, %v998
      %v1000 = vpop.f32.mrb[0].mxu0
      %v1001 = vadd.f32 0.0, %v1000
      %1002 = vmatprep.mubr.bf16.mxu0 %v574
      %1003 = vmatmul.mubr.bf16.gmra.mrb[0].mxu0 %v573
      %v1004 = vpop.f32.mrb[0].mxu0
      %v1005 = vadd.f32 0.0, %v1004
      %v1006 = vpop.f32.mrb[0].mxu0
      %v1007 = vadd.f32 0.0, %v1006
      %v1008 = vpop.f32.mrb[0].mxu0
      %v1009 = vadd.f32 0.0, %v1008
      %v1010 = vpop.f32.mrb[0].mxu0
      %v1011 = vadd.f32 0.0, %v1010
      %1012 = vmatprep.mubr.bf16.mxu0 %v576
      %1013 = vmatmul.mubr.bf16.gmra.mrb[0].mxu0 %v575
      %v1014 = vpop.f32.mrb[0].mxu0
      %v1015 = vadd.f32 0.0, %v1014
      %v1016 = vpop.f32.mrb[0].mxu0
      %v1017 = vadd.f32 0.0, %v1016
      %v1018 = vpop.f32.mrb[0].mxu0
      %v1019 = vadd.f32 0.0, %v1018
      %v1020 = vpop.f32.mrb[0].mxu0
      %v1021 = vadd.f32 0.0, %v1020
      %1022 = vmatprep.mubr.bf16.mxu0 %v578
      %1023 = vmatmul.mubr.bf16.gmra.mrb[0].mxu0 %v577
      %v1024 = vpop.f32.mrb[0].mxu0
      %v1025 = vadd.f32 0.0, %v1024
      %v1026 = vpop.f32.mrb[0].mxu0
      %v1027 = vadd.f32 0.0, %v1026
      %v1028 = vpop.f32.mrb[0].mxu0
      %v1029 = vadd.f32 0.0, %v1028
      %v1030 = vpop.f32.mrb[0].mxu0
      %v1031 = vadd.f32 0.0, %v1030
      %1032 = vmatprep.mubr.bf16.mxu0 %v580
      %1033 = vmatmul.mubr.bf16.gmra.mrb[0].mxu0 %v579
      %v1034 = vpop.f32.mrb[0].mxu0
      %v1035 = vadd.f32 0.0, %v1034
      %v1036 = vpop.f32.mrb[0].mxu0
      %v1037 = vadd.f32 0.0, %v1036
      %v1038 = vpop.f32.mrb[0].mxu0
      %v1039 = vadd.f32 0.0, %v1038
      %v1040 = vpop.f32.mrb[0].mxu0
      %v1041 = vadd.f32 0.0, %v1040
      %1042 = vmatprep.mubr.bf16.mxu0 %v582
      %1043 = vmatmul.mubr.bf16.gmra.mrb[0].mxu0 %v581
      %v1044 = vpop.f32.mrb[0].mxu0
      %v1045 = vadd.f32 0.0, %v1044
      %v1046 = vpop.f32.mrb[0].mxu0
      %v1047 = vadd.f32 0.0, %v1046
      %v1048 = vpop.f32.mrb[0].mxu0
      %v1049 = vadd.f32 0.0, %v1048
      %v1050 = vpop.f32.mrb[0].mxu0
      %v1051 = vadd.f32 0.0, %v1050
      %1052 = vmatprep.mubr.bf16.mxu0 %v584
      %1053 = vmatmul.mubr.bf16.gmra.mrb[0].mxu0 %v583
      %v1054 = vpop.f32.mrb[0].mxu0
      %v1055 = vadd.f32 0.0, %v1054
      %v1056 = vpop.f32.mrb[0].mxu0
      %v1057 = vadd.f32 0.0, %v1056
      %v1058 = vpop.f32.mrb[0].mxu0
      %v1059 = vadd.f32 0.0, %v1058
      %v1060 = vpop.f32.mrb[0].mxu0
      %v1061 = vadd.f32 0.0, %v1060
      %1062 = vmatprep.mubr.bf16.mxu0 %v586
      %1063 = vmatmul.mubr.bf16.gmra.mrb[0].mxu0 %v585
      %v1064 = vpop.f32.mrb[0].mxu0
      %v1065 = vadd.f32 0.0, %v1064
      %v1066 = vpop.f32.mrb[0].mxu0
      %v1067 = vadd.f32 0.0, %v1066
      %v1068 = vpop.f32.mrb[0].mxu0
      %v1069 = vadd.f32 0.0, %v1068
      %v1070 = vpop.f32.mrb[0].mxu0
      %v1071 = vadd.f32 0.0, %v1070
      %1072 = vmatprep.mubr.bf16.mxu0 %v588
      %1073 = vmatmul.mubr.bf16.gmra.mrb[0].mxu0 %v587
      %v1074 = vpop.f32.mrb[0].mxu0
      %v1075 = vadd.f32 0.0, %v1074
      %v1076 = vpop.f32.mrb[0].mxu0
      %v1077 = vadd.f32 0.0, %v1076
      %v1078 = vpop.f32.mrb[0].mxu0
      %v1079 = vadd.f32 0.0, %v1078
      %v1080 = vpop.f32.mrb[0].mxu0
      %v1081 = vadd.f32 0.0, %v1080
      %1082 = vmatprep.mubr.bf16.mxu0 %v590
      %1083 = vmatmul.mubr.bf16.gmra.mrb[0].mxu0 %v589
      %v1084 = vpop.f32.mrb[0].mxu0
      %v1085 = vadd.f32 0.0, %v1084
      %v1086 = vpop.f32.mrb[0].mxu0
      %v1087 = vadd.f32 0.0, %v1086
      %v1088 = vpop.f32.mrb[0].mxu0
      %v1089 = vadd.f32 0.0, %v1088
      %v1090 = vpop.f32.mrb[0].mxu0
      %v1091 = vadd.f32 0.0, %v1090
      %1092 = vmatprep.mubr.bf16.mxu0 %v592
      %1093 = vmatmul.mubr.bf16.gmra.mrb[0].mxu0 %v591
      %v1094 = vpop.f32.mrb[0].mxu0
      %v1095 = vadd.f32 0.0, %v1094
      %v1096 = vpop.f32.mrb[0].mxu0
      %v1097 = vadd.f32 0.0, %v1096
      %v1098 = vpop.f32.mrb[0].mxu0
      %v1099 = vadd.f32 0.0, %v1098
      %v1100 = vpop.f32.mrb[0].mxu0
      %v1101 = vadd.f32 0.0, %v1100
      %1102 = vmatprep.mubr.bf16.mxu0 %v594
      %1103 = vmatmul.mubr.bf16.gmra.mrb[0].mxu0 %v593
      %v1104 = vpop.f32.mrb[0].mxu0
      %v1105 = vadd.f32 0.0, %v1104
      %v1106 = vpop.f32.mrb[0].mxu0
      %v1107 = vadd.f32 0.0, %v1106
      %v1108 = vpop.f32.mrb[0].mxu0
      %v1109 = vadd.f32 0.0, %v1108
      %v1110 = vpop.f32.mrb[0].mxu0
      %v1111 = vadd.f32 0.0, %v1110
      %1112 = vmatprep.mubr.bf16.mxu0 %v596
      %1113 = vmatmul.mubr.bf16.gmra.mrb[0].mxu0 %v595
      %v1114 = vpop.f32.mrb[0].mxu0
      %v1115 = vadd.f32 0.0, %v1114
      %v1116 = vpop.f32.mrb[0].mxu0
      %v1117 = vadd.f32 0.0, %v1116
      %v1118 = vpop.f32.mrb[0].mxu0
      %v1119 = vadd.f32 0.0, %v1118
      %v1120 = vpop.f32.mrb[0].mxu0
      %v1121 = vadd.f32 0.0, %v1120
      %1122 = vmatprep.mubr.bf16.mxu0 %v598
      %1123 = vmatmul.mubr.bf16.gmra.mrb[0].mxu0 %v597
      %v1124 = vpop.f32.mrb[0].mxu0
      %v1125 = vadd.f32 0.0, %v1124
      %v1126 = vpop.f32.mrb[0].mxu0
      %v1127 = vadd.f32 0.0, %v1126
      %v1128 = vpop.f32.mrb[0].mxu0
      %v1129 = vadd.f32 0.0, %v1128
      %v1130 = vpop.f32.mrb[0].mxu0
      %v1131 = vadd.f32 0.0, %v1130
      %1132 = vmatprep.mubr.bf16.mxu0 %v600
      %1133 = vmatmul.mubr.bf16.gmra.mrb[0].mxu0 %v599
      %v1134 = vpop.f32.mrb[0].mxu0
      %v1135 = vadd.f32 0.0, %v1134
      %v1136 = vpop.f32.mrb[0].mxu0
      %v1137 = vadd.f32 0.0, %v1136
      %v1138 = vpop.f32.mrb[0].mxu0
      %v1139 = vadd.f32 0.0, %v1138
      %v1140 = vpop.f32.mrb[0].mxu0
      %v1141 = vadd.f32 0.0, %v1140
      %1142 = vmatprep.mubr.bf16.mxu0 %v602
      %1143 = vmatmul.mubr.bf16.gmra.mrb[0].mxu0 %v601
      %v1144 = vpop.f32.mrb[0].mxu0
      %v1145 = vadd.f32 0.0, %v1144
      %v1146 = vpop.f32.mrb[0].mxu0
      %v1147 = vadd.f32 0.0, %v1146
      %v1148 = vpop.f32.mrb[0].mxu0
      %v1149 = vadd.f32 0.0, %v1148
      %v1150 = vpop.f32.mrb[0].mxu0
      %v1151 = vadd.f32 0.0, %v1150
      %1152 = vmatprep.mubr.bf16.mxu0 %v604
      %1153 = vmatmul.mubr.bf16.gmra.mrb[0].mxu0 %v603
      %v1154 = vpop.f32.mrb[0].mxu0
      %v1155 = vadd.f32 0.0, %v1154
      %v1156 = vpop.f32.mrb[0].mxu0
      %v1157 = vadd.f32 0.0, %v1156
      %v1158 = vpop.f32.mrb[0].mxu0
      %v1159 = vadd.f32 0.0, %v1158
      %v1160 = vpop.f32.mrb[0].mxu0
      %v1161 = vadd.f32 0.0, %v1160
      %1162 = vmatprep.mubr.bf16.mxu0 %v606
      %1163 = vmatmul.mubr.bf16.gmra.mrb[0].mxu0 %v605
      %v1164 = vpop.f32.mrb[0].mxu0
      %v1165 = vadd.f32 0.0, %v1164
      %v1166 = vpop.f32.mrb[0].mxu0
      %v1167 = vadd.f32 0.0, %v1166
      %v1168 = vpop.f32.mrb[0].mxu0
      %v1169 = vadd.f32 0.0, %v1168
      %v1170 = vpop.f32.mrb[0].mxu0
      %v1171 = vadd.f32 0.0, %v1170
      %1172 = vmatprep.mubr.bf16.mxu0 %v608
      %1173 = vmatmul.mubr.bf16.gmra.mrb[0].mxu0 %v607
      %v1174 = vpop.f32.mrb[0].mxu0
      %v1175 = vadd.f32 0.0, %v1174
      %v1176 = vpop.f32.mrb[0].mxu0
      %v1177 = vadd.f32 0.0, %v1176
      %v1178 = vpop.f32.mrb[0].mxu0
      %v1179 = vadd.f32 0.0, %v1178
      %v1180 = vpop.f32.mrb[0].mxu0
      %v1181 = vadd.f32 0.0, %v1180
      %1182 = vmatprep.mubr.bf16.mxu0 %v610
      %1183 = vmatmul.mubr.bf16.gmra.mrb[0].mxu0 %v609
      %v1184 = vpop.f32.mrb[0].mxu0
      %v1185 = vadd.f32 0.0, %v1184
      %v1186 = vpop.f32.mrb[0].mxu0
      %v1187 = vadd.f32 0.0, %v1186
      %v1188 = vpop.f32.mrb[0].mxu0
      %v1189 = vadd.f32 0.0, %v1188
      %v1190 = vpop.f32.mrb[0].mxu0
      %v1191 = vadd.f32 0.0, %v1190
      %1192 = vmatprep.mubr.bf16.mxu0 %v612
      %1193 = vmatmul.mubr.bf16.gmra.mrb[0].mxu0 %v611
      %v1194 = vpop.f32.mrb[0].mxu0
      %v1195 = vadd.f32 0.0, %v1194
      %v1196 = vpop.f32.mrb[0].mxu0
      %v1197 = vadd.f32 0.0, %v1196
      %v1198 = vpop.f32.mrb[0].mxu0
      %v1199 = vadd.f32 0.0, %v1198
      %v1200 = vpop.f32.mrb[0].mxu0
      %v1201 = vadd.f32 0.0, %v1200
      %1202 = vmatprep.mubr.bf16.mxu0 %v614
      %1203 = vmatmul.mubr.bf16.gmra.mrb[0].mxu0 %v613
      %v1204 = vpop.f32.mrb[0].mxu0
      %v1205 = vadd.f32 0.0, %v1204
      %v1206 = vpop.f32.mrb[0].mxu0
      %v1207 = vadd.f32 0.0, %v1206
      %v1208 = vpop.f32.mrb[0].mxu0
      %v1209 = vadd.f32 0.0, %v1208
      %v1210 = vpop.f32.mrb[0].mxu0
      %v1211 = vadd.f32 0.0, %v1210
      %1212 = vmatprep.mubr.bf16.mxu0 %v616
      %1213 = vmatmul.mubr.bf16.gmra.mrb[0].mxu0 %v615
      %v1214 = vpop.f32.mrb[0].mxu0
      %v1215 = vpop.f32.mrb[0].mxu0
      %v1216 = vadd.f32 0.0, %v1215
      %v1217 = vpop.f32.mrb[0].mxu0
      %v1218 = vpop.f32.mrb[0].mxu0
      %v1219 = vadd.f32 0.0, %v1218
      %1220 = vmatprep.mubr.bf16.mxu0 %v618
      %1221 = vmatmul.mubr.bf16.gmra.mrb[0].mxu0 %v617
      %v1222 = vpop.f32.mrb[0].mxu0
      %v1223 = vpop.f32.mrb[0].mxu0
      %v1224 = vadd.f32 0.0, %v1223
      %v1225 = vpop.f32.mrb[0].mxu0
      %v1226 = vpop.f32.mrb[0].mxu0
      %1227 = vmatprep.mubr.bf16.mxu0 %v620
      %1228 = vmatmul.mubr.bf16.gmra.mrb[0].mxu0 %v619
      %v1229 = vpop.f32.mrb[0].mxu0
      %v1230 = vpop.f32.mrb[0].mxu0
      %v1231 = vpop.f32.mrb[0].mxu0
      %v1232 = vpop.f32.mrb[0].mxu0
      %1233 = vmatprep.mubr.bf16.mxu0 %v622
      %1234 = vmatmul.mubr.bf16.gmra.mrb[0].mxu0 %v621
      %v1235 = vpop.f32.mrb[0].mxu0
      %v1236 = vpop.f32.mrb[0].mxu0
      %v1237 = vpop.f32.mrb[0].mxu0
      %v1238 = vpop.f32.mrb[0].mxu0
      %1239 = vmatprep.mubr.bf16.mxu0 %v624
      %1240 = vmatmul.mubr.bf16.gmra.mrb[0].mxu0 %v623
      %v1241 = vpop.f32.mrb[0].mxu0
      %v1242 = vpop.f32.mrb[0].mxu0
      %v1243 = vpop.f32.mrb[0].mxu0
      %v1244 = vpop.f32.mrb[0].mxu0
      %1245 = vmatprep.mubr.bf16.mxu0 %v626
      %1246 = vmatmul.mubr.bf16.gmra.mrb[0].mxu0 %v625
      %v1247 = vpop.f32.mrb[0].mxu0
      %v1248 = vpop.f32.mrb[0].mxu0
      %v1249 = vpop.f32.mrb[0].mxu0
      %v1250 = vpop.f32.mrb[0].mxu0
      %1251 = vdwg.mxu0
      %1252 = vmatprep.subr.bf16.mxu0 0
      %1253 = vmatpush1.bf16.msra.mxu0 %v849
      %1254 = vmatprep.subr.bf16.mxu0 0
      %1255 = vmatpush1.bf16.msra.mxu0 %v852
      %1256 = vmatprep.subr.bf16.mxu0 0
      %1257 = vmatpush1.bf16.msra.mxu0 %v855
      %1258 = vmatprep.subr.bf16.mxu0 0
      %1259 = vmatpush1.bf16.msra.mxu0 %v858
      %1260 = vmatprep.subr.bf16.mxu0 0
      %1261 = vmatpush1.bf16.msra.mxu0 %v861
      %1262 = vmatprep.subr.bf16.mxu0 0
      %1263 = vmatpush1.bf16.msra.mxu0 %v864
      %1264 = vmatprep.subr.bf16.mxu0 0
      %1265 = vmatpush1.bf16.msra.mxu0 %v867
      %1266 = vmatprep.subr.bf16.mxu0 0
      %1267 = vmatpush1.bf16.msra.mxu0 %v870
      %1268 = vmatprep.subr.bf16.mxu0 0
      %1269 = vmatpush1.bf16.msra.mxu0 %v873
      %1270 = vmatprep.subr.bf16.mxu0 0
      %1271 = vmatpush1.bf16.msra.mxu0 %v876
      %1272 = vmatprep.subr.bf16.mxu0 0
      %1273 = vmatpush1.bf16.msra.mxu0 %v879
      %1274 = vmatprep.subr.bf16.mxu0 0
      %1275 = vmatpush1.bf16.msra.mxu0 %v882
      %1276 = vmatprep.subr.bf16.mxu0 0
      %1277 = vmatpush1.bf16.msra.mxu0 %v885
      %1278 = vmatprep.subr.bf16.mxu0 0
      %1279 = vmatpush1.bf16.msra.mxu0 %v888
      %1280 = vmatprep.subr.bf16.mxu0 0
      %1281 = vmatpush1.bf16.msra.mxu0 %v891
      %1282 = vmatprep.subr.bf16.mxu0 0
      %1283 = vmatpush1.bf16.msra.mxu0 %v894
      %1284 = vmatprep.mubr.bf16.mxu0 %v568
      %1285 = vmatmul.mubr.bf16.gmra.mrb[0].mxu0 %v567
      %v1286 = vpop.f32.mrb[0].mxu0
      %v1287 = vpop.f32.mrb[0].mxu0
      %v1288 = vpop.f32.mrb[0].mxu0
      %v1289 = vpop.f32.mrb[0].mxu0
      %1290 = vmatprep.mubr.bf16.mxu0 %v570
      %1291 = vmatmul.mubr.bf16.gmra.mrb[0].mxu0 %v569
      %v1292 = vpop.f32.mrb[0].mxu0
      %v1293 = vpop.f32.mrb[0].mxu0
      %v1294 = vpop.f32.mrb[0].mxu0
      %v1295 = vpop.f32.mrb[0].mxu0
      %1296 = vmatprep.mubr.bf16.mxu0 %v572
      %1297 = vmatmul.mubr.bf16.gmra.mrb[0].mxu0 %v571
      %v1298 = vpop.f32.mrb[0].mxu0
      %v1299 = vpop.f32.mrb[0].mxu0
      %v1300 = vpop.f32.mrb[0].mxu0
      %v1301 = vpop.f32.mrb[0].mxu0
      %1302 = vmatprep.mubr.bf16.mxu0 %v574
      %1303 = vmatmul.mubr.bf16.gmra.mrb[0].mxu0 %v573
      %v1304 = vpop.f32.mrb[0].mxu0
      %v1305 = vadd.f32 0.0, %v1304
      %v1306 = vpop.f32.mrb[0].mxu0
      %v1307 = vpop.f32.mrb[0].mxu0
      %v1308 = vadd.f32 0.0, %v1307
      %v1309 = vpop.f32.mrb[0].mxu0
      %1310 = vmatprep.mubr.bf16.mxu0 %v576
      %1311 = vmatmul.mubr.bf16.gmra.mrb[0].mxu0 %v575
      %v1312 = vpop.f32.mrb[0].mxu0
      %v1313 = vadd.f32 0.0, %v1312
      %v1314 = vpop.f32.mrb[0].mxu0
      %v1315 = vpop.f32.mrb[0].mxu0
      %v1316 = vadd.f32 0.0, %v1315
      %v1317 = vpop.f32.mrb[0].mxu0
      %1318 = vmatprep.mubr.bf16.mxu0 %v578
      %1319 = vmatmul.mubr.bf16.gmra.mrb[0].mxu0 %v577
      %v1320 = vpop.f32.mrb[0].mxu0
      %v1321 = vadd.f32 0.0, %v1320
      %v1322 = vpop.f32.mrb[0].mxu0
      %v1323 = vpop.f32.mrb[0].mxu0
      %v1324 = vadd.f32 0.0, %v1323
      %v1325 = vpop.f32.mrb[0].mxu0
      %1326 = vmatprep.mubr.bf16.mxu0 %v580
      %1327 = vmatmul.mubr.bf16.gmra.mrb[0].mxu0 %v579
      %v1328 = vpop.f32.mrb[0].mxu0
      %v1329 = vadd.f32 0.0, %v1328
      %v1330 = vpop.f32.mrb[0].mxu0
      %v1331 = vpop.f32.mrb[0].mxu0
      %v1332 = vadd.f32 0.0, %v1331
      %v1333 = vpop.f32.mrb[0].mxu0
      %1334 = vmatprep.mubr.bf16.mxu0 %v582
      %1335 = vmatmul.mubr.bf16.gmra.mrb[0].mxu0 %v581
      %v1336 = vpop.f32.mrb[0].mxu0
      %v1337 = vadd.f32 0.0, %v1336
      %v1338 = vpop.f32.mrb[0].mxu0
      %v1339 = vpop.f32.mrb[0].mxu0
      %v1340 = vadd.f32 0.0, %v1339
      %v1341 = vpop.f32.mrb[0].mxu0
      %1342 = vmatprep.mubr.bf16.mxu0 %v584
      %1343 = vmatmul.mubr.bf16.gmra.mrb[0].mxu0 %v583
      %v1344 = vpop.f32.mrb[0].mxu0
      %v1345 = vadd.f32 0.0, %v1344
      %v1346 = vpop.f32.mrb[0].mxu0
      %v1347 = vpop.f32.mrb[0].mxu0
      %v1348 = vadd.f32 0.0, %v1347
      %v1349 = vpop.f32.mrb[0].mxu0
      %1350 = vmatprep.mubr.bf16.mxu0 %v586
      %1351 = vmatmul.mubr.bf16.gmra.mrb[0].mxu0 %v585
      %v1352 = vpop.f32.mrb[0].mxu0
      %v1353 = vadd.f32 0.0, %v1352
      %v1354 = vpop.f32.mrb[0].mxu0
      %v1355 = vpop.f32.mrb[0].mxu0
      %v1356 = vadd.f32 0.0, %v1355
      %v1357 = vpop.f32.mrb[0].mxu0
      %1358 = vmatprep.mubr.bf16.mxu0 %v588
      %1359 = vmatmul.mubr.bf16.gmra.mrb[0].mxu0 %v587
      %v1360 = vpop.f32.mrb[0].mxu0
      %v1361 = vadd.f32 0.0, %v1360
      %v1362 = vpop.f32.mrb[0].mxu0
      %v1363 = vpop.f32.mrb[0].mxu0
      %v1364 = vadd.f32 0.0, %v1363
      %v1365 = vpop.f32.mrb[0].mxu0
      %1366 = vmatprep.mubr.bf16.mxu0 %v590
      %1367 = vmatmul.mubr.bf16.gmra.mrb[0].mxu0 %v589
      %v1368 = vpop.f32.mrb[0].mxu0
      %v1369 = vadd.f32 0.0, %v1368
      %v1370 = vpop.f32.mrb[0].mxu0
      %v1371 = vpop.f32.mrb[0].mxu0
      %v1372 = vadd.f32 0.0, %v1371
      %v1373 = vpop.f32.mrb[0].mxu0
      %1374 = vmatprep.mubr.bf16.mxu0 %v592
      %1375 = vmatmul.mubr.bf16.gmra.mrb[0].mxu0 %v591
      %v1376 = vpop.f32.mrb[0].mxu0
      %v1377 = vadd.f32 0.0, %v1376
      %v1378 = vpop.f32.mrb[0].mxu0
      %v1379 = vpop.f32.mrb[0].mxu0
      %v1380 = vadd.f32 0.0, %v1379
      %v1381 = vpop.f32.mrb[0].mxu0
      %1382 = vmatprep.mubr.bf16.mxu0 %v594
      %1383 = vmatmul.mubr.bf16.gmra.mrb[0].mxu0 %v593
      %v1384 = vpop.f32.mrb[0].mxu0
      %v1385 = vadd.f32 0.0, %v1384
      %v1386 = vpop.f32.mrb[0].mxu0
      %v1387 = vpop.f32.mrb[0].mxu0
      %v1388 = vadd.f32 0.0, %v1387
      %v1389 = vpop.f32.mrb[0].mxu0
      %1390 = vmatprep.mubr.bf16.mxu0 %v596
      %1391 = vmatmul.mubr.bf16.gmra.mrb[0].mxu0 %v595
      %v1392 = vpop.f32.mrb[0].mxu0
      %v1393 = vadd.f32 0.0, %v1392
      %v1394 = vpop.f32.mrb[0].mxu0
      %v1395 = vpop.f32.mrb[0].mxu0
      %v1396 = vadd.f32 0.0, %v1395
      %v1397 = vpop.f32.mrb[0].mxu0
      %1398 = vmatprep.mubr.bf16.mxu0 %v598
      %1399 = vmatmul.mubr.bf16.gmra.mrb[0].mxu0 %v597
      %v1400 = vpop.f32.mrb[0].mxu0
      %v1401 = vadd.f32 0.0, %v1400
      %v1402 = vpop.f32.mrb[0].mxu0
      %v1403 = vpop.f32.mrb[0].mxu0
      %v1404 = vadd.f32 0.0, %v1403
      %v1405 = vpop.f32.mrb[0].mxu0
      %1406 = vmatprep.mubr.bf16.mxu0 %v600
      %1407 = vmatmul.mubr.bf16.gmra.mrb[0].mxu0 %v599
      %v1408 = vpop.f32.mrb[0].mxu0
      %v1409 = vadd.f32 0.0, %v1408
      %v1410 = vpop.f32.mrb[0].mxu0
      %v1411 = vpop.f32.mrb[0].mxu0
      %v1412 = vadd.f32 0.0, %v1411
      %v1413 = vpop.f32.mrb[0].mxu0
      %1414 = vmatprep.mubr.bf16.mxu0 %v602
      %1415 = vmatmul.mubr.bf16.gmra.mrb[0].mxu0 %v601
      %v1416 = vpop.f32.mrb[0].mxu0
      %v1417 = vadd.f32 0.0, %v1416
      %v1418 = vpop.f32.mrb[0].mxu0
      %v1419 = vpop.f32.mrb[0].mxu0
      %v1420 = vadd.f32 0.0, %v1419
      %v1421 = vpop.f32.mrb[0].mxu0
      %1422 = vmatprep.mubr.bf16.mxu0 %v604
      %1423 = vmatmul.mubr.bf16.gmra.mrb[0].mxu0 %v603
      %v1424 = vpop.f32.mrb[0].mxu0
      %v1425 = vadd.f32 0.0, %v1424
      %v1426 = vpop.f32.mrb[0].mxu0
      %v1427 = vpop.f32.mrb[0].mxu0
      %v1428 = vadd.f32 0.0, %v1427
      %v1429 = vpop.f32.mrb[0].mxu0
      %1430 = vmatprep.mubr.bf16.mxu0 %v606
      %1431 = vmatmul.mubr.bf16.gmra.mrb[0].mxu0 %v605
      %v1432 = vpop.f32.mrb[0].mxu0
      %v1433 = vadd.f32 0.0, %v1432
      %v1434 = vpop.f32.mrb[0].mxu0
      %v1435 = vpop.f32.mrb[0].mxu0
      %v1436 = vadd.f32 0.0, %v1435
      %v1437 = vpop.f32.mrb[0].mxu0
      %1438 = vmatprep.mubr.bf16.mxu0 %v608
      %1439 = vmatmul.mubr.bf16.gmra.mrb[0].mxu0 %v607
      %v1440 = vpop.f32.mrb[0].mxu0
      %v1441 = vadd.f32 0.0, %v1440
      %v1442 = vpop.f32.mrb[0].mxu0
      %v1443 = vpop.f32.mrb[0].mxu0
      %v1444 = vadd.f32 0.0, %v1443
      %v1445 = vpop.f32.mrb[0].mxu0
      %1446 = vmatprep.mubr.bf16.mxu0 %v610
      %1447 = vmatmul.mubr.bf16.gmra.mrb[0].mxu0 %v609
      %v1448 = vpop.f32.mrb[0].mxu0
      %v1449 = vadd.f32 0.0, %v1448
      %v1450 = vpop.f32.mrb[0].mxu0
      %v1451 = vpop.f32.mrb[0].mxu0
      %v1452 = vadd.f32 0.0, %v1451
      %v1453 = vpop.f32.mrb[0].mxu0
      %1454 = vmatprep.mubr.bf16.mxu0 %v612
      %1455 = vmatmul.mubr.bf16.gmra.mrb[0].mxu0 %v611
      %v1456 = vpop.f32.mrb[0].mxu0
      %v1457 = vadd.f32 0.0, %v1456
      %v1458 = vpop.f32.mrb[0].mxu0
      %v1459 = vpop.f32.mrb[0].mxu0
      %v1460 = vadd.f32 0.0, %v1459
      %v1461 = vpop.f32.mrb[0].mxu0
      %1462 = vmatprep.mubr.bf16.mxu0 %v614
      %1463 = vmatmul.mubr.bf16.gmra.mrb[0].mxu0 %v613
      %v1464 = vpop.f32.mrb[0].mxu0
      %v1465 = vadd.f32 0.0, %v1464
      %v1466 = vpop.f32.mrb[0].mxu0
      %v1467 = vpop.f32.mrb[0].mxu0
      %v1468 = vadd.f32 0.0, %v1467
      %v1469 = vpop.f32.mrb[0].mxu0
      %1470 = vmatprep.mubr.bf16.mxu0 %v616
      %1471 = vmatmul.mubr.bf16.gmra.mrb[0].mxu0 %v615
      %v1472 = vpop.f32.mrb[0].mxu0
      %v1473 = vadd.f32 0.0, %v1472
      %v1474 = vpop.f32.mrb[0].mxu0
      %v1475 = vpop.f32.mrb[0].mxu0
      %v1476 = vadd.f32 0.0, %v1475
      %v1477 = vpop.f32.mrb[0].mxu0
      %1478 = vmatprep.mubr.bf16.mxu0 %v618
      %1479 = vmatmul.mubr.bf16.gmra.mrb[0].mxu0 %v617
      %v1480 = vpop.f32.mrb[0].mxu0
      %v1481 = vadd.f32 0.0, %v1480
      %v1482 = vpop.f32.mrb[0].mxu0
      %v1483 = vpop.f32.mrb[0].mxu0
      %v1484 = vadd.f32 0.0, %v1483
      %v1485 = vpop.f32.mrb[0].mxu0
      %1486 = vmatprep.mubr.bf16.mxu0 %v620
      %1487 = vmatmul.mubr.bf16.gmra.mrb[0].mxu0 %v619
      %v1488 = vpop.f32.mrb[0].mxu0
      %v1489 = vadd.f32 0.0, %v1488
      %v1490 = vpop.f32.mrb[0].mxu0
      %v1491 = vpop.f32.mrb[0].mxu0
      %v1492 = vadd.f32 0.0, %v1491
      %v1493 = vpop.f32.mrb[0].mxu0
      %1494 = vmatprep.mubr.bf16.mxu0 %v622
      %1495 = vmatmul.mubr.bf16.gmra.mrb[0].mxu0 %v621
      %v1496 = vpop.f32.mrb[0].mxu0
      %v1497 = vpop.f32.mrb[0].mxu0
      %v1498 = vpop.f32.mrb[0].mxu0
      %v1499 = vpop.f32.mrb[0].mxu0
      %1500 = vmatprep.mubr.bf16.mxu0 %v624
      %1501 = vmatmul.mubr.bf16.gmra.mrb[0].mxu0 %v623
      %v1502 = vpop.f32.mrb[0].mxu0
      %v1503 = vpop.f32.mrb[0].mxu0
      %v1504 = vpop.f32.mrb[0].mxu0
      %v1505 = vpop.f32.mrb[0].mxu0
      %1506 = vmatprep.mubr.bf16.mxu0 %v626
      %1507 = vmatmul.mubr.bf16.gmra.mrb[0].mxu0 %v625
      %v1508 = vpop.f32.mrb[0].mxu0
      %v1509 = vpop.f32.mrb[0].mxu0
      %v1510 = vpop.f32.mrb[0].mxu0
      %v1511 = vpop.f32.mrb[0].mxu0
      %1512 = vdwg.mxu0
      %v1513 = vadd.f32 %v978, %v991
      %v1514 = vadd.f32 %v981, %v997
      %v1515 = vadd.f32 %v986, %v1001
      %v1516 = vadd.f32 %v989, %v1007
      %v1517 = vadd.f32 %v995, %v1011
      %v1518 = vadd.f32 %v999, %v1017
      %v1519 = vadd.f32 %v1005, %v1021
      %v1520 = vadd.f32 %v1009, %v1027
      %v1521 = vadd.f32 %v1015, %v1031
      %v1522 = vadd.f32 %v1019, %v1037
      %v1523 = vadd.f32 %v1025, %v1041
      %v1524 = vadd.f32 %v1029, %v1047
      %v1525 = vadd.f32 %v1035, %v1051
      %v1526 = vadd.f32 %v1039, %v1057
      %v1527 = vadd.f32 %v1045, %v1061
      %v1528 = vadd.f32 %v1049, %v1067
      %v1529 = vadd.f32 %v1055, %v1071
      %v1530 = vadd.f32 %v1059, %v1077
      %v1531 = vadd.f32 %v1065, %v1081
      %v1532 = vadd.f32 %v1069, %v1087
      %v1533 = vadd.f32 %v1075, %v1091
      %v1534 = vadd.f32 %v1079, %v1097
      %v1535 = vadd.f32 %v1085, %v1101
      %v1536 = vadd.f32 %v1089, %v1107
      %v1537 = vadd.f32 %v1095, %v1111
      %v1538 = vadd.f32 %v1099, %v1117
      %v1539 = vadd.f32 %v1105, %v1121
      %v1540 = vadd.f32 %v1109, %v1127
      %v1541 = vadd.f32 %v1115, %v1131
      %v1542 = vadd.f32 %v1119, %v1137
      %v1543 = vadd.f32 %v1125, %v1141
      %v1544 = vadd.f32 %v1129, %v1147
      %v1545 = vadd.f32 %v1135, %v1151
      %v1546 = vadd.f32 %v1139, %v1157
      %v1547 = vadd.f32 %v1145, %v1161
      %v1548 = vadd.f32 %v1149, %v1167
      %v1549 = vadd.f32 %v1155, %v1171
      %v1550 = vadd.f32 %v1159, %v1177
      %v1551 = vadd.f32 %v1165, %v1181
      %v1552 = vadd.f32 %v1169, %v1187
      %v1553 = vadd.f32 %v1175, %v1191
      %v1554 = vadd.f32 %v1179, %v1197
      %v1555 = vadd.f32 %v1185, %v1201
      %v1556 = vadd.f32 %v1189, %v1207
      %v1557 = vadd.f32 %v1195, %v1211
      %v1558 = vadd.f32 %v1199, %v1216
      %v1559 = vadd.f32 %v1205, %v1219
      %v1560 = vadd.f32 %v1209, %v1224
      %v1561 = vadd.f32 %v1513, %v1305
      %v1562 = vadd.f32 %v1514, %v1308
      %v1563 = vadd.f32 %v1515, %v1313
      %v1564 = vadd.f32 %v1516, %v1316
      %v1565 = vadd.f32 %v1517, %v1321
      %v1566 = vadd.f32 %v1518, %v1324
      %v1567 = vadd.f32 %v1519, %v1329
      %v1568 = vadd.f32 %v1520, %v1332
      %v1569 = vadd.f32 %v1521, %v1337
      %v1570 = vadd.f32 %v1522, %v1340
      %v1571 = vadd.f32 %v1523, %v1345
      %v1572 = vadd.f32 %v1524, %v1348
      %v1573 = vadd.f32 %v1525, %v1353
      %v1574 = vadd.f32 %v1526, %v1356
      %v1575 = vadd.f32 %v1527, %v1361
      %v1576 = vadd.f32 %v1528, %v1364
      %v1577 = vadd.f32 %v1529, %v1369
      %v1578 = vadd.f32 %v1530, %v1372
      %v1579 = vadd.f32 %v1531, %v1377
      %v1580 = vadd.f32 %v1532, %v1380
      %v1581 = vadd.f32 %v1533, %v1385
      %v1582 = vadd.f32 %v1534, %v1388
      %v1583 = vadd.f32 %v1535, %v1393
      %v1584 = vadd.f32 %v1536, %v1396
      %v1585 = vadd.f32 %v1537, %v1401
      %v1586 = vadd.f32 %v1538, %v1404
      %v1587 = vadd.f32 %v1539, %v1409
      %v1588 = vadd.f32 %v1540, %v1412
      %v1589 = vadd.f32 %v1541, %v1417
      %v1590 = vadd.f32 %v1542, %v1420
      %v1591 = vadd.f32 %v1543, %v1425
      %v1592 = vadd.f32 %v1544, %v1428
      %v1593 = vadd.f32 %v1545, %v1433
      %v1594 = vadd.f32 %v1546, %v1436
      %v1595 = vadd.f32 %v1547, %v1441
      %v1596 = vadd.f32 %v1548, %v1444
      %v1597 = vadd.f32 %v1549, %v1449
      %v1598 = vadd.f32 %v1550, %v1452
      %v1599 = vadd.f32 %v1551, %v1457
      %v1600 = vadd.f32 %v1552, %v1460
      %v1601 = vadd.f32 %v1553, %v1465
      %v1602 = vadd.f32 %v1554, %v1468
      %v1603 = vadd.f32 %v1555, %v1473
      %v1604 = vadd.f32 %v1556, %v1476
      %v1605 = vadd.f32 %v1557, %v1481
      %v1606 = vadd.f32 %v1558, %v1484
      %v1607 = vadd.f32 %v1559, %v1489
      %v1608 = vadd.f32 %v1560, %v1492
      %v1609 = vld [vmem:[%s1 + $0xc] sm:$0xff]
      %v1610 = vld [vmem:[%s1 + $0x14] sm:$0xf]
      %v1611 = vld [vmem:[%s1 + $0x30] sm:$0xff]
      %v1612 = vld [vmem:[%s1 + $0x38] sm:$0xf]
      %v1613 = vld [vmem:[%s1 + $0x54] sm:$0xff]
      %v1614 = vld [vmem:[%s1 + $0x5c] sm:$0xf]
      %v1615 = vld [vmem:[%s1 + $0x78] sm:$0xff]
      %v1616 = vld [vmem:[%s1 + $0x80] sm:$0xf]
      %v1617 = vld [vmem:[%s1 + $0x9c] sm:$0xff]
      %v1618 = vld [vmem:[%s1 + $0xa4] sm:$0xf]
      %v1619 = vld [vmem:[%s1 + $0xc0] sm:$0xff]
      %v1620 = vld [vmem:[%s1 + $0xc8] sm:$0xf]
      %v1621 = vld [vmem:[%s1 + $0xe4] sm:$0xff]
      %v1622 = vld [vmem:[%s1 + $0xec] sm:$0xf]
      %v1623 = vld [vmem:[%s1 + $0x108] sm:$0xff]
      %v1624 = vld [vmem:[%s1 + $0x110] sm:$0xf]
      %v1625 = vld [vmem:[%s1 + $0x12c] sm:$0xff]
      %v1626 = vld [vmem:[%s1 + $0x134] sm:$0xf]
      %v1627 = vld [vmem:[%s1 + $0x150] sm:$0xff]
      %v1628 = vld [vmem:[%s1 + $0x158] sm:$0xf]
      %v1629 = vld [vmem:[%s1 + $0x174] sm:$0xff]
      %v1630 = vld [vmem:[%s1 + $0x17c] sm:$0xf]
      %v1631 = vld [vmem:[%s1 + $0x198] sm:$0xff]
      %v1632 = vld [vmem:[%s1 + $0x1a0] sm:$0xf]
      %v1633 = vld [vmem:[%s1 + $0x1bc] sm:$0xff]
      %v1634 = vld [vmem:[%s1 + $0x1c4] sm:$0xf]
      %v1635 = vld [vmem:[%s1 + $0x1e0] sm:$0xff]
      %v1636 = vld [vmem:[%s1 + $0x1e8] sm:$0xf]
      %v1637 = vld [vmem:[%s1 + $0x204] sm:$0xff]
      %v1638 = vld [vmem:[%s1 + $0x20c] sm:$0xf]
      %v1639 = vld [vmem:[%s1 + $0x228] sm:$0xff]
      %v1640 = vld [vmem:[%s1 + $0x230] sm:$0xf]
      %v1641 = vld [vmem:[%s1 + $0x24c] sm:$0xff]
      %v1642 = vld [vmem:[%s1 + $0x254] sm:$0xf]
      %v1643 = vld [vmem:[%s1 + $0x270] sm:$0xff]
      %v1644 = vld [vmem:[%s1 + $0x278] sm:$0xf]
      %v1645 = vld [vmem:[%s1 + $0x294] sm:$0xff]
      %v1646 = vld [vmem:[%s1 + $0x29c] sm:$0xf]
      %v1647 = vld [vmem:[%s1 + $0x2b8] sm:$0xff]
      %v1648 = vld [vmem:[%s1 + $0x2c0] sm:$0xf]
      %v1649 = vld [vmem:[%s1 + $0x2dc] sm:$0xff]
      %v1650 = vld [vmem:[%s1 + $0x2e4] sm:$0xf]
      %v1651 = vld [vmem:[%s1 + $0x300] sm:$0xff]
      %v1652 = vld [vmem:[%s1 + $0x308] sm:$0xf]
      %v1653 = vld [vmem:[%s1 + $0x324] sm:$0xff]
      %v1654 = vld [vmem:[%s1 + $0x32c] sm:$0xf]
      %v1655 = vld [vmem:[%s1 + $0x348] sm:$0xff]
      %v1656 = vld [vmem:[%s1 + $0x350] sm:$0xf]
      %v1657 = vld [vmem:[%s1 + $0x36c] sm:$0xff]
      %v1658 = vld [vmem:[%s1 + $0x374] sm:$0xf]
      %v1659 = vld [vmem:[%s1 + $0x390] sm:$0xff]
      %v1660 = vld [vmem:[%s1 + $0x398] sm:$0xf]
      %v1661 = vld [vmem:[%s1 + $0x3b4] sm:$0xff]
      %v1662 = vld [vmem:[%s1 + $0x3bc] sm:$0xf]
      %v1663 = vld [vmem:[%s1 + $0x3d8] sm:$0xff]
      %v1664 = vld [vmem:[%s1 + $0x3e0] sm:$0xf]
      %v1665 = vld [vmem:[%s1 + $0x3fc] sm:$0xff]
      %v1666 = vld [vmem:[%s1 + $0x404] sm:$0xf]
      %v1667 = vld [vmem:[%s1 + $0x420] sm:$0xff]
      %v1668 = vld [vmem:[%s1 + $0x428] sm:$0xf]
      %v1669 = vld [vmem:[%s1 + $0x444] sm:$0xff]
      %v1670 = vld [vmem:[%s1 + $0x44c] sm:$0xf]
      %v1671 = vld [vmem:[%s1 + $0x468] sm:$0xff]
      %v1672 = vld [vmem:[%s1 + $0x470] sm:$0xf]
      %v1737 = vunpack.c.l.b16 %v1609
      %v1738 = vunpack.c.h.b16 %v1609
      %v1739 = vunpack.c.l.b16 %v1610
      %v1740 = vunpack.c.l.b16 %v1611
      %v1741 = vunpack.c.h.b16 %v1611
      %v1742 = vunpack.c.l.b16 %v1612
      %v1743 = vunpack.c.l.b16 %v1613
      %v1744 = vunpack.c.h.b16 %v1613
      %v1745 = vunpack.c.l.b16 %v1614
      %v1746 = vunpack.c.l.b16 %v1615
      %v1747 = vunpack.c.h.b16 %v1615
      %v1748 = vunpack.c.l.b16 %v1616
      %v1749 = vunpack.c.l.b16 %v1617
      %v1750 = vunpack.c.h.b16 %v1617
      %v1751 = vunpack.c.l.b16 %v1618
      %v1752 = vunpack.c.l.b16 %v1619
      %v1753 = vunpack.c.h.b16 %v1619
      %v1754 = vunpack.c.l.b16 %v1620
      %v1755 = vunpack.c.l.b16 %v1621
      %v1756 = vunpack.c.h.b16 %v1621
      %v1757 = vunpack.c.l.b16 %v1622
      %v1758 = vunpack.c.l.b16 %v1623
      %v1759 = vunpack.c.h.b16 %v1623
      %v1760 = vunpack.c.l.b16 %v1624
      %v1761 = vunpack.c.l.b16 %v1625
      %v1762 = vunpack.c.h.b16 %v1625
      %v1763 = vunpack.c.l.b16 %v1626
      %v1764 = vunpack.c.l.b16 %v1627
      %v1765 = vunpack.c.h.b16 %v1627
      %v1766 = vunpack.c.l.b16 %v1628
      %v1767 = vunpack.c.l.b16 %v1629
      %v1768 = vunpack.c.h.b16 %v1629
      %v1769 = vunpack.c.l.b16 %v1630
      %v1770 = vunpack.c.l.b16 %v1631
      %v1771 = vunpack.c.h.b16 %v1631
      %v1772 = vunpack.c.l.b16 %v1632
      %v1773 = vunpack.c.l.b16 %v1633
      %v1774 = vunpack.c.h.b16 %v1633
      %v1775 = vunpack.c.l.b16 %v1634
      %v1776 = vunpack.c.l.b16 %v1635
      %v1777 = vunpack.c.h.b16 %v1635
      %v1778 = vunpack.c.l.b16 %v1636
      %v1779 = vunpack.c.l.b16 %v1637
      %v1780 = vunpack.c.h.b16 %v1637
      %v1781 = vunpack.c.l.b16 %v1638
      %v1782 = vunpack.c.l.b16 %v1639
      %v1783 = vunpack.c.h.b16 %v1639
      %v1784 = vunpack.c.l.b16 %v1640
      %v1785 = vunpack.c.l.b16 %v1641
      %v1786 = vunpack.c.h.b16 %v1641
      %v1787 = vunpack.c.l.b16 %v1642
      %v1788 = vunpack.c.l.b16 %v1643
      %v1789 = vunpack.c.h.b16 %v1643
      %v1790 = vunpack.c.l.b16 %v1644
      %v1791 = vunpack.c.l.b16 %v1645
      %v1792 = vunpack.c.h.b16 %v1645
      %v1793 = vunpack.c.l.b16 %v1646
      %v1794 = vunpack.c.l.b16 %v1647
      %v1795 = vunpack.c.h.b16 %v1647
      %v1796 = vunpack.c.l.b16 %v1648
      %v1797 = vunpack.c.l.b16 %v1649
      %v1798 = vunpack.c.h.b16 %v1649
      %v1799 = vunpack.c.l.b16 %v1650
      %v1800 = vunpack.c.l.b16 %v1651
      %v1801 = vunpack.c.h.b16 %v1651
      %v1802 = vunpack.c.l.b16 %v1652
      %v1803 = vunpack.c.l.b16 %v1653
      %v1804 = vunpack.c.h.b16 %v1653
      %v1805 = vunpack.c.l.b16 %v1654
      %v1806 = vunpack.c.l.b16 %v1655
      %v1807 = vunpack.c.h.b16 %v1655
      %v1808 = vunpack.c.l.b16 %v1656
      %v1809 = vunpack.c.l.b16 %v1657
      %v1810 = vunpack.c.h.b16 %v1657
      %v1811 = vunpack.c.l.b16 %v1658
      %v1812 = vunpack.c.l.b16 %v1659
      %v1813 = vunpack.c.h.b16 %v1659
      %v1814 = vunpack.c.l.b16 %v1660
      %v1815 = vunpack.c.l.b16 %v1661
      %v1816 = vunpack.c.h.b16 %v1661
      %v1817 = vunpack.c.l.b16 %v1662
      %v1818 = vunpack.c.l.b16 %v1663
      %v1819 = vunpack.c.h.b16 %v1663
      %v1820 = vunpack.c.l.b16 %v1664
      %v1821 = vunpack.c.l.b16 %v1665
      %v1822 = vunpack.c.h.b16 %v1665
      %v1823 = vunpack.c.l.b16 %v1666
      %v1824 = vunpack.c.l.b16 %v1667
      %v1825 = vunpack.c.h.b16 %v1667
      %v1826 = vunpack.c.l.b16 %v1668
      %v1827 = vunpack.c.l.b16 %v1669
      %v1828 = vunpack.c.h.b16 %v1669
      %v1829 = vunpack.c.l.b16 %v1670
      %v1830 = vunpack.c.l.b16 %v1671
      %v1831 = vunpack.c.h.b16 %v1671
      %v1832 = vunpack.c.l.b16 %v1672
      %v1833 = vpack.c.b16 %v1740, %v1737
      %v1834 = vpack.c.b16 %v1741, %v1738
      %v1835 = vpack.c.b16 %v1742, %v1739
      %v1836 = vpack.c.b16 %v1746, %v1743
      %v1837 = vpack.c.b16 %v1747, %v1744
      %v1838 = vpack.c.b16 %v1748, %v1745
      %v1839 = vpack.c.b16 %v1752, %v1749
      %v1840 = vpack.c.b16 %v1753, %v1750
      %v1841 = vpack.c.b16 %v1754, %v1751
      %v1842 = vpack.c.b16 %v1758, %v1755
      %v1843 = vpack.c.b16 %v1759, %v1756
      %v1844 = vpack.c.b16 %v1760, %v1757
      %v1845 = vpack.c.b16 %v1764, %v1761
      %v1846 = vpack.c.b16 %v1765, %v1762
      %v1847 = vpack.c.b16 %v1766, %v1763
      %v1848 = vpack.c.b16 %v1770, %v1767
      %v1849 = vpack.c.b16 %v1771, %v1768
      %v1850 = vpack.c.b16 %v1772, %v1769
      %v1851 = vpack.c.b16 %v1776, %v1773
      %v1852 = vpack.c.b16 %v1777, %v1774
      %v1853 = vpack.c.b16 %v1778, %v1775
      %v1854 = vpack.c.b16 %v1782, %v1779
      %v1855 = vpack.c.b16 %v1783, %v1780
      %v1856 = vpack.c.b16 %v1784, %v1781
      %v1857 = vpack.c.b16 %v1788, %v1785
      %v1858 = vpack.c.b16 %v1789, %v1786
      %v1859 = vpack.c.b16 %v1790, %v1787
      %v1860 = vpack.c.b16 %v1794, %v1791
      %v1861 = vpack.c.b16 %v1795, %v1792
      %v1862 = vpack.c.b16 %v1796, %v1793
      %v1863 = vpack.c.b16 %v1800, %v1797
      %v1864 = vpack.c.b16 %v1801, %v1798
      %v1865 = vpack.c.b16 %v1802, %v1799
      %v1866 = vpack.c.b16 %v1806, %v1803
      %v1867 = vpack.c.b16 %v1807, %v1804
      %v1868 = vpack.c.b16 %v1808, %v1805
      %v1869 = vpack.c.b16 %v1812, %v1809
      %v1870 = vpack.c.b16 %v1813, %v1810
      %v1871 = vpack.c.b16 %v1814, %v1811
      %v1872 = vpack.c.b16 %v1818, %v1815
      %v1873 = vpack.c.b16 %v1819, %v1816
      %v1874 = vpack.c.b16 %v1820, %v1817
      %v1875 = vpack.c.b16 %v1824, %v1821
      %v1876 = vpack.c.b16 %v1825, %v1822
      %v1877 = vpack.c.b16 %v1826, %v1823
      %v1878 = vpack.c.b16 %v1830, %v1827
      %v1879 = vpack.c.b16 %v1831, %v1828
      %v1880 = vpack.c.b16 %v1832, %v1829
      %1929 = vmatprep.subr.bf16.mxu0 %v1834
      %1930 = vmatpush1.bf16.msra.mxu0 %v1833
      %1931 = vmatprep.subr.bf16.mxu0 %v1837
      %1932 = vmatpush1.bf16.msra.mxu0 %v1836
      %1933 = vmatprep.subr.bf16.mxu0 %v1840
      %1934 = vmatpush1.bf16.msra.mxu0 %v1839
      %1935 = vmatprep.subr.bf16.mxu0 %v1843
      %1936 = vmatpush1.bf16.msra.mxu0 %v1842
      %1937 = vmatprep.subr.bf16.mxu0 %v1846
      %1938 = vmatpush1.bf16.msra.mxu0 %v1845
      %1939 = vmatprep.subr.bf16.mxu0 %v1849
      %1940 = vmatpush1.bf16.msra.mxu0 %v1848
      %1941 = vmatprep.subr.bf16.mxu0 %v1852
      %1942 = vmatpush1.bf16.msra.mxu0 %v1851
      %1943 = vmatprep.subr.bf16.mxu0 %v1855
      %1944 = vmatpush1.bf16.msra.mxu0 %v1854
      %1945 = vmatprep.subr.bf16.mxu0 %v1858
      %1946 = vmatpush1.bf16.msra.mxu0 %v1857
      %1947 = vmatprep.subr.bf16.mxu0 %v1861
      %1948 = vmatpush1.bf16.msra.mxu0 %v1860
      %1949 = vmatprep.subr.bf16.mxu0 %v1864
      %1950 = vmatpush1.bf16.msra.mxu0 %v1863
      %1951 = vmatprep.subr.bf16.mxu0 %v1867
      %1952 = vmatpush1.bf16.msra.mxu0 %v1866
      %1953 = vmatprep.subr.bf16.mxu0 %v1870
      %1954 = vmatpush1.bf16.msra.mxu0 %v1869
      %1955 = vmatprep.subr.bf16.mxu0 %v1873
      %1956 = vmatpush1.bf16.msra.mxu0 %v1872
      %1957 = vmatprep.subr.bf16.mxu0 %v1876
      %1958 = vmatpush1.bf16.msra.mxu0 %v1875
      %1959 = vmatprep.subr.bf16.mxu0 %v1879
      %1960 = vmatpush1.bf16.msra.mxu0 %v1878
      %1961 = vmatprep.mubr.bf16.mxu0 %v568
      %1962 = vmatmul.mubr.bf16.gmra.mrb[0].mxu0 %v567
      %v1963 = vpop.f32.mrb[0].mxu0
      %v1964 = vadd.f32 0.0, %v1963
      %v1965 = vpop.f32.mrb[0].mxu0
      %v1966 = vpop.f32.mrb[0].mxu0
      %v1967 = vadd.f32 0.0, %v1966
      %v1968 = vpop.f32.mrb[0].mxu0
      %1969 = vmatprep.mubr.bf16.mxu0 %v570
      %1970 = vmatmul.mubr.bf16.gmra.mrb[0].mxu0 %v569
      %v1971 = vpop.f32.mrb[0].mxu0
      %v1972 = vadd.f32 0.0, %v1971
      %v1973 = vpop.f32.mrb[0].mxu0
      %v1974 = vpop.f32.mrb[0].mxu0
      %v1975 = vadd.f32 0.0, %v1974
      %v1976 = vpop.f32.mrb[0].mxu0
      %v1977 = vadd.f32 0.0, %v1976
      %1978 = vmatprep.mubr.bf16.mxu0 %v572
      %1979 = vmatmul.mubr.bf16.gmra.mrb[0].mxu0 %v571
      %v1980 = vpop.f32.mrb[0].mxu0
      %v1981 = vadd.f32 0.0, %v1980
      %v1982 = vpop.f32.mrb[0].mxu0
      %v1983 = vadd.f32 0.0, %v1982
      %v1984 = vpop.f32.mrb[0].mxu0
      %v1985 = vadd.f32 0.0, %v1984
      %v1986 = vpop.f32.mrb[0].mxu0
      %v1987 = vadd.f32 0.0, %v1986
      %1988 = vmatprep.mubr.bf16.mxu0 %v574
      %1989 = vmatmul.mubr.bf16.gmra.mrb[0].mxu0 %v573
      %v1990 = vpop.f32.mrb[0].mxu0
      %v1991 = vadd.f32 0.0, %v1990
      %v1992 = vpop.f32.mrb[0].mxu0
      %v1993 = vadd.f32 0.0, %v1992
      %v1994 = vpop.f32.mrb[0].mxu0
      %v1995 = vadd.f32 0.0, %v1994
      %v1996 = vpop.f32.mrb[0].mxu0
      %v1997 = vadd.f32 0.0, %v1996
      %1998 = vmatprep.mubr.bf16.mxu0 %v576
      %1999 = vmatmul.mubr.bf16.gmra.mrb[0].mxu0 %v575
      %v2000 = vpop.f32.mrb[0].mxu0
      %v2001 = vadd.f32 0.0, %v2000
      %v2002 = vpop.f32.mrb[0].mxu0
      %v2003 = vadd.f32 0.0, %v2002
      %v2004 = vpop.f32.mrb[0].mxu0
      %v2005 = vadd.f32 0.0, %v2004
      %v2006 = vpop.f32.mrb[0].mxu0
      %v2007 = vadd.f32 0.0, %v2006
      %2008 = vmatprep.mubr.bf16.mxu0 %v578
      %2009 = vmatmul.mubr.bf16.gmra.mrb[0].mxu0 %v577
      %v2010 = vpop.f32.mrb[0].mxu0
      %v2011 = vadd.f32 0.0, %v2010
      %v2012 = vpop.f32.mrb[0].mxu0
      %v2013 = vadd.f32 0.0, %v2012
      %v2014 = vpop.f32.mrb[0].mxu0
      %v2015 = vadd.f32 0.0, %v2014
      %v2016 = vpop.f32.mrb[0].mxu0
      %v2017 = vadd.f32 0.0, %v2016
      %2018 = vmatprep.mubr.bf16.mxu0 %v580
      %2019 = vmatmul.mubr.bf16.gmra.mrb[0].mxu0 %v579
      %v2020 = vpop.f32.mrb[0].mxu0
      %v2021 = vadd.f32 0.0, %v2020
      %v2022 = vpop.f32.mrb[0].mxu0
      %v2023 = vadd.f32 0.0, %v2022
      %v2024 = vpop.f32.mrb[0].mxu0
      %v2025 = vadd.f32 0.0, %v2024
      %v2026 = vpop.f32.mrb[0].mxu0
      %v2027 = vadd.f32 0.0, %v2026
      %2028 = vmatprep.mubr.bf16.mxu0 %v582
      %2029 = vmatmul.mubr.bf16.gmra.mrb[0].mxu0 %v581
      %v2030 = vpop.f32.mrb[0].mxu0
      %v2031 = vadd.f32 0.0, %v2030
      %v2032 = vpop.f32.mrb[0].mxu0
      %v2033 = vadd.f32 0.0, %v2032
      %v2034 = vpop.f32.mrb[0].mxu0
      %v2035 = vadd.f32 0.0, %v2034
      %v2036 = vpop.f32.mrb[0].mxu0
      %v2037 = vadd.f32 0.0, %v2036
      %2038 = vmatprep.mubr.bf16.mxu0 %v584
      %2039 = vmatmul.mubr.bf16.gmra.mrb[0].mxu0 %v583
      %v2040 = vpop.f32.mrb[0].mxu0
      %v2041 = vadd.f32 0.0, %v2040
      %v2042 = vpop.f32.mrb[0].mxu0
      %v2043 = vadd.f32 0.0, %v2042
      %v2044 = vpop.f32.mrb[0].mxu0
      %v2045 = vadd.f32 0.0, %v2044
      %v2046 = vpop.f32.mrb[0].mxu0
      %v2047 = vadd.f32 0.0, %v2046
      %2048 = vmatprep.mubr.bf16.mxu0 %v586
      %2049 = vmatmul.mubr.bf16.gmra.mrb[0].mxu0 %v585
      %v2050 = vpop.f32.mrb[0].mxu0
      %v2051 = vadd.f32 0.0, %v2050
      %v2052 = vpop.f32.mrb[0].mxu0
      %v2053 = vadd.f32 0.0, %v2052
      %v2054 = vpop.f32.mrb[0].mxu0
      %v2055 = vadd.f32 0.0, %v2054
      %v2056 = vpop.f32.mrb[0].mxu0
      %v2057 = vadd.f32 0.0, %v2056
      %2058 = vmatprep.mubr.bf16.mxu0 %v588
      %2059 = vmatmul.mubr.bf16.gmra.mrb[0].mxu0 %v587
      %v2060 = vpop.f32.mrb[0].mxu0
      %v2061 = vadd.f32 0.0, %v2060
      %v2062 = vpop.f32.mrb[0].mxu0
      %v2063 = vadd.f32 0.0, %v2062
      %v2064 = vpop.f32.mrb[0].mxu0
      %v2065 = vadd.f32 0.0, %v2064
      %v2066 = vpop.f32.mrb[0].mxu0
      %v2067 = vadd.f32 0.0, %v2066
      %2068 = vmatprep.mubr.bf16.mxu0 %v590
      %2069 = vmatmul.mubr.bf16.gmra.mrb[0].mxu0 %v589
      %v2070 = vpop.f32.mrb[0].mxu0
      %v2071 = vadd.f32 0.0, %v2070
      %v2072 = vpop.f32.mrb[0].mxu0
      %v2073 = vadd.f32 0.0, %v2072
      %v2074 = vpop.f32.mrb[0].mxu0
      %v2075 = vadd.f32 0.0, %v2074
      %v2076 = vpop.f32.mrb[0].mxu0
      %v2077 = vadd.f32 0.0, %v2076
      %2078 = vmatprep.mubr.bf16.mxu0 %v592
      %2079 = vmatmul.mubr.bf16.gmra.mrb[0].mxu0 %v591
      %v2080 = vpop.f32.mrb[0].mxu0
      %v2081 = vadd.f32 0.0, %v2080
      %v2082 = vpop.f32.mrb[0].mxu0
      %v2083 = vadd.f32 0.0, %v2082
      %v2084 = vpop.f32.mrb[0].mxu0
      %v2085 = vadd.f32 0.0, %v2084
      %v2086 = vpop.f32.mrb[0].mxu0
      %v2087 = vadd.f32 0.0, %v2086
      %2088 = vmatprep.mubr.bf16.mxu0 %v594
      %2089 = vmatmul.mubr.bf16.gmra.mrb[0].mxu0 %v593
      %v2090 = vpop.f32.mrb[0].mxu0
      %v2091 = vadd.f32 0.0, %v2090
      %v2092 = vpop.f32.mrb[0].mxu0
      %v2093 = vadd.f32 0.0, %v2092
      %v2094 = vpop.f32.mrb[0].mxu0
      %v2095 = vadd.f32 0.0, %v2094
      %v2096 = vpop.f32.mrb[0].mxu0
      %v2097 = vadd.f32 0.0, %v2096
      %2098 = vmatprep.mubr.bf16.mxu0 %v596
      %2099 = vmatmul.mubr.bf16.gmra.mrb[0].mxu0 %v595
      %v2100 = vpop.f32.mrb[0].mxu0
      %v2101 = vadd.f32 0.0, %v2100
      %v2102 = vpop.f32.mrb[0].mxu0
      %v2103 = vadd.f32 0.0, %v2102
      %v2104 = vpop.f32.mrb[0].mxu0
      %v2105 = vadd.f32 0.0, %v2104
      %v2106 = vpop.f32.mrb[0].mxu0
      %v2107 = vadd.f32 0.0, %v2106
      %2108 = vmatprep.mubr.bf16.mxu0 %v598
      %2109 = vmatmul.mubr.bf16.gmra.mrb[0].mxu0 %v597
      %v2110 = vpop.f32.mrb[0].mxu0
      %v2111 = vadd.f32 0.0, %v2110
      %v2112 = vpop.f32.mrb[0].mxu0
      %v2113 = vadd.f32 0.0, %v2112
      %v2114 = vpop.f32.mrb[0].mxu0
      %v2115 = vadd.f32 0.0, %v2114
      %v2116 = vpop.f32.mrb[0].mxu0
      %v2117 = vadd.f32 0.0, %v2116
      %2118 = vmatprep.mubr.bf16.mxu0 %v600
      %2119 = vmatmul.mubr.bf16.gmra.mrb[0].mxu0 %v599
      %v2120 = vpop.f32.mrb[0].mxu0
      %v2121 = vadd.f32 0.0, %v2120
      %v2122 = vpop.f32.mrb[0].mxu0
      %v2123 = vadd.f32 0.0, %v2122
      %v2124 = vpop.f32.mrb[0].mxu0
      %v2125 = vadd.f32 0.0, %v2124
      %v2126 = vpop.f32.mrb[0].mxu0
      %v2127 = vadd.f32 0.0, %v2126
      %2128 = vmatprep.mubr.bf16.mxu0 %v602
      %2129 = vmatmul.mubr.bf16.gmra.mrb[0].mxu0 %v601
      %v2130 = vpop.f32.mrb[0].mxu0
      %v2131 = vadd.f32 0.0, %v2130
      %v2132 = vpop.f32.mrb[0].mxu0
      %v2133 = vadd.f32 0.0, %v2132
      %v2134 = vpop.f32.mrb[0].mxu0
      %v2135 = vadd.f32 0.0, %v2134
      %v2136 = vpop.f32.mrb[0].mxu0
      %v2137 = vadd.f32 0.0, %v2136
      %2138 = vmatprep.mubr.bf16.mxu0 %v604
      %2139 = vmatmul.mubr.bf16.gmra.mrb[0].mxu0 %v603
      %v2140 = vpop.f32.mrb[0].mxu0
      %v2141 = vadd.f32 0.0, %v2140
      %v2142 = vpop.f32.mrb[0].mxu0
      %v2143 = vadd.f32 0.0, %v2142
      %v2144 = vpop.f32.mrb[0].mxu0
      %v2145 = vadd.f32 0.0, %v2144
      %v2146 = vpop.f32.mrb[0].mxu0
      %v2147 = vadd.f32 0.0, %v2146
      %2148 = vmatprep.mubr.bf16.mxu0 %v606
      %2149 = vmatmul.mubr.bf16.gmra.mrb[0].mxu0 %v605
      %v2150 = vpop.f32.mrb[0].mxu0
      %v2151 = vadd.f32 0.0, %v2150
      %v2152 = vpop.f32.mrb[0].mxu0
      %v2153 = vadd.f32 0.0, %v2152
      %v2154 = vpop.f32.mrb[0].mxu0
      %v2155 = vadd.f32 0.0, %v2154
      %v2156 = vpop.f32.mrb[0].mxu0
      %v2157 = vadd.f32 0.0, %v2156
      %2158 = vmatprep.mubr.bf16.mxu0 %v608
      %2159 = vmatmul.mubr.bf16.gmra.mrb[0].mxu0 %v607
      %v2160 = vpop.f32.mrb[0].mxu0
      %v2161 = vadd.f32 0.0, %v2160
      %v2162 = vpop.f32.mrb[0].mxu0
      %v2163 = vadd.f32 0.0, %v2162
      %v2164 = vpop.f32.mrb[0].mxu0
      %v2165 = vadd.f32 0.0, %v2164
      %v2166 = vpop.f32.mrb[0].mxu0
      %v2167 = vadd.f32 0.0, %v2166
      %2168 = vmatprep.mubr.bf16.mxu0 %v610
      %2169 = vmatmul.mubr.bf16.gmra.mrb[0].mxu0 %v609
      %v2170 = vpop.f32.mrb[0].mxu0
      %v2171 = vadd.f32 0.0, %v2170
      %v2172 = vpop.f32.mrb[0].mxu0
      %v2173 = vadd.f32 0.0, %v2172
      %v2174 = vpop.f32.mrb[0].mxu0
      %v2175 = vadd.f32 0.0, %v2174
      %v2176 = vpop.f32.mrb[0].mxu0
      %v2177 = vadd.f32 0.0, %v2176
      %2178 = vmatprep.mubr.bf16.mxu0 %v612
      %2179 = vmatmul.mubr.bf16.gmra.mrb[0].mxu0 %v611
      %v2180 = vpop.f32.mrb[0].mxu0
      %v2181 = vadd.f32 0.0, %v2180
      %v2182 = vpop.f32.mrb[0].mxu0
      %v2183 = vadd.f32 0.0, %v2182
      %v2184 = vpop.f32.mrb[0].mxu0
      %v2185 = vadd.f32 0.0, %v2184
      %v2186 = vpop.f32.mrb[0].mxu0
      %v2187 = vadd.f32 0.0, %v2186
      %2188 = vmatprep.mubr.bf16.mxu0 %v614
      %2189 = vmatmul.mubr.bf16.gmra.mrb[0].mxu0 %v613
      %v2190 = vpop.f32.mrb[0].mxu0
      %v2191 = vadd.f32 0.0, %v2190
      %v2192 = vpop.f32.mrb[0].mxu0
      %v2193 = vadd.f32 0.0, %v2192
      %v2194 = vpop.f32.mrb[0].mxu0
      %v2195 = vadd.f32 0.0, %v2194
      %v2196 = vpop.f32.mrb[0].mxu0
      %v2197 = vadd.f32 0.0, %v2196
      %2198 = vmatprep.mubr.bf16.mxu0 %v616
      %2199 = vmatmul.mubr.bf16.gmra.mrb[0].mxu0 %v615
      %v2200 = vpop.f32.mrb[0].mxu0
      %v2201 = vadd.f32 0.0, %v2200
      %v2202 = vpop.f32.mrb[0].mxu0
      %v2203 = vadd.f32 0.0, %v2202
      %v2204 = vpop.f32.mrb[0].mxu0
      %v2205 = vpop.f32.mrb[0].mxu0
      %v2206 = vadd.f32 0.0, %v2205
      %2207 = vmatprep.mubr.bf16.mxu0 %v618
      %2208 = vmatmul.mubr.bf16.gmra.mrb[0].mxu0 %v617
      %v2209 = vpop.f32.mrb[0].mxu0
      %v2210 = vpop.f32.mrb[0].mxu0
      %v2211 = vadd.f32 0.0, %v2210
      %v2212 = vpop.f32.mrb[0].mxu0
      %v2213 = vpop.f32.mrb[0].mxu0
      %v2214 = vadd.f32 0.0, %v2213
      %2215 = vmatprep.mubr.bf16.mxu0 %v620
      %2216 = vmatmul.mubr.bf16.gmra.mrb[0].mxu0 %v619
      %v2217 = vpop.f32.mrb[0].mxu0
      %v2218 = vpop.f32.mrb[0].mxu0
      %v2219 = vpop.f32.mrb[0].mxu0
      %v2220 = vpop.f32.mrb[0].mxu0
      %2221 = vmatprep.mubr.bf16.mxu0 %v622
      %2222 = vmatmul.mubr.bf16.gmra.mrb[0].mxu0 %v621
      %v2223 = vpop.f32.mrb[0].mxu0
      %v2224 = vpop.f32.mrb[0].mxu0
      %v2225 = vpop.f32.mrb[0].mxu0
      %v2226 = vpop.f32.mrb[0].mxu0
      %2227 = vmatprep.mubr.bf16.mxu0 %v624
      %2228 = vmatmul.mubr.bf16.gmra.mrb[0].mxu0 %v623
      %v2229 = vpop.f32.mrb[0].mxu0
      %v2230 = vpop.f32.mrb[0].mxu0
      %v2231 = vpop.f32.mrb[0].mxu0
      %v2232 = vpop.f32.mrb[0].mxu0
      %2233 = vmatprep.mubr.bf16.mxu0 %v626
      %2234 = vmatmul.mubr.bf16.gmra.mrb[0].mxu0 %v625
      %v2235 = vpop.f32.mrb[0].mxu0
      %v2236 = vpop.f32.mrb[0].mxu0
      %v2237 = vpop.f32.mrb[0].mxu0
      %v2238 = vpop.f32.mrb[0].mxu0
      %2239 = vdwg.mxu0
      %2240 = vmatprep.subr.bf16.mxu0 0
      %2241 = vmatpush1.bf16.msra.mxu0 %v1835
      %2242 = vmatprep.subr.bf16.mxu0 0
      %2243 = vmatpush1.bf16.msra.mxu0 %v1838
      %2244 = vmatprep.subr.bf16.mxu0 0
      %2245 = vmatpush1.bf16.msra.mxu0 %v1841
      %2246 = vmatprep.subr.bf16.mxu0 0
      %2247 = vmatpush1.bf16.msra.mxu0 %v1844
      %2248 = vmatprep.subr.bf16.mxu0 0
      %2249 = vmatpush1.bf16.msra.mxu0 %v1847
      %2250 = vmatprep.subr.bf16.mxu0 0
      %2251 = vmatpush1.bf16.msra.mxu0 %v1850
      %2252 = vmatprep.subr.bf16.mxu0 0
      %2253 = vmatpush1.bf16.msra.mxu0 %v1853
      %2254 = vmatprep.subr.bf16.mxu0 0
      %2255 = vmatpush1.bf16.msra.mxu0 %v1856
      %2256 = vmatprep.subr.bf16.mxu0 0
      %2257 = vmatpush1.bf16.msra.mxu0 %v1859
      %2258 = vmatprep.subr.bf16.mxu0 0
      %2259 = vmatpush1.bf16.msra.mxu0 %v1862
      %2260 = vmatprep.subr.bf16.mxu0 0
      %2261 = vmatpush1.bf16.msra.mxu0 %v1865
      %2262 = vmatprep.subr.bf16.mxu0 0
      %2263 = vmatpush1.bf16.msra.mxu0 %v1868
      %2264 = vmatprep.subr.bf16.mxu0 0
      %2265 = vmatpush1.bf16.msra.mxu0 %v1871
      %2266 = vmatprep.subr.bf16.mxu0 0
      %2267 = vmatpush1.bf16.msra.mxu0 %v1874
      %2268 = vmatprep.subr.bf16.mxu0 0
      %2269 = vmatpush1.bf16.msra.mxu0 %v1877
      %2270 = vmatprep.subr.bf16.mxu0 0
      %2271 = vmatpush1.bf16.msra.mxu0 %v1880
      %2272 = vmatprep.mubr.bf16.mxu0 %v568
      %2273 = vmatmul.mubr.bf16.gmra.mrb[0].mxu0 %v567
      %v2274 = vpop.f32.mrb[0].mxu0
      %v2275 = vpop.f32.mrb[0].mxu0
      %v2276 = vpop.f32.mrb[0].mxu0
      %v2277 = vpop.f32.mrb[0].mxu0
      %2278 = vmatprep.mubr.bf16.mxu0 %v570
      %2279 = vmatmul.mubr.bf16.gmra.mrb[0].mxu0 %v569
      %v2280 = vpop.f32.mrb[0].mxu0
      %v2281 = vpop.f32.mrb[0].mxu0
      %v2282 = vpop.f32.mrb[0].mxu0
      %v2283 = vpop.f32.mrb[0].mxu0
      %2284 = vmatprep.mubr.bf16.mxu0 %v572
      %2285 = vmatmul.mubr.bf16.gmra.mrb[0].mxu0 %v571
      %v2286 = vpop.f32.mrb[0].mxu0
      %v2287 = vpop.f32.mrb[0].mxu0
      %v2288 = vpop.f32.mrb[0].mxu0
      %v2289 = vpop.f32.mrb[0].mxu0
      %2290 = vmatprep.mubr.bf16.mxu0 %v574
      %2291 = vmatmul.mubr.bf16.gmra.mrb[0].mxu0 %v573
      %v2292 = vpop.f32.mrb[0].mxu0
      %v2293 = vadd.f32 0.0, %v2292
      %v2294 = vpop.f32.mrb[0].mxu0
      %v2295 = vpop.f32.mrb[0].mxu0
      %v2296 = vadd.f32 0.0, %v2295
      %v2297 = vpop.f32.mrb[0].mxu0
      %2298 = vmatprep.mubr.bf16.mxu0 %v576
      %2299 = vmatmul.mubr.bf16.gmra.mrb[0].mxu0 %v575
      %v2300 = vpop.f32.mrb[0].mxu0
      %v2301 = vadd.f32 0.0, %v2300
      %v2302 = vpop.f32.mrb[0].mxu0
      %v2303 = vpop.f32.mrb[0].mxu0
      %v2304 = vadd.f32 0.0, %v2303
      %v2305 = vpop.f32.mrb[0].mxu0
      %2306 = vmatprep.mubr.bf16.mxu0 %v578
      %2307 = vmatmul.mubr.bf16.gmra.mrb[0].mxu0 %v577
      %v2308 = vpop.f32.mrb[0].mxu0
      %v2309 = vadd.f32 0.0, %v2308
      %v2310 = vpop.f32.mrb[0].mxu0
      %v2311 = vpop.f32.mrb[0].mxu0
      %v2312 = vadd.f32 0.0, %v2311
      %v2313 = vpop.f32.mrb[0].mxu0
      %2314 = vmatprep.mubr.bf16.mxu0 %v580
      %2315 = vmatmul.mubr.bf16.gmra.mrb[0].mxu0 %v579
      %v2316 = vpop.f32.mrb[0].mxu0
      %v2317 = vadd.f32 0.0, %v2316
      %v2318 = vpop.f32.mrb[0].mxu0
      %v2319 = vpop.f32.mrb[0].mxu0
      %v2320 = vadd.f32 0.0, %v2319
      %v2321 = vpop.f32.mrb[0].mxu0
      %2322 = vmatprep.mubr.bf16.mxu0 %v582
      %2323 = vmatmul.mubr.bf16.gmra.mrb[0].mxu0 %v581
      %v2324 = vpop.f32.mrb[0].mxu0
      %v2325 = vadd.f32 0.0, %v2324
      %v2326 = vpop.f32.mrb[0].mxu0
      %v2327 = vpop.f32.mrb[0].mxu0
      %v2328 = vadd.f32 0.0, %v2327
      %v2329 = vpop.f32.mrb[0].mxu0
      %2330 = vmatprep.mubr.bf16.mxu0 %v584
      %2331 = vmatmul.mubr.bf16.gmra.mrb[0].mxu0 %v583
      %v2332 = vpop.f32.mrb[0].mxu0
      %v2333 = vadd.f32 0.0, %v2332
      %v2334 = vpop.f32.mrb[0].mxu0
      %v2335 = vpop.f32.mrb[0].mxu0
      %v2336 = vadd.f32 0.0, %v2335
      %v2337 = vpop.f32.mrb[0].mxu0
      %2338 = vmatprep.mubr.bf16.mxu0 %v586
      %2339 = vmatmul.mubr.bf16.gmra.mrb[0].mxu0 %v585
      %v2340 = vpop.f32.mrb[0].mxu0
      %v2341 = vadd.f32 0.0, %v2340
      %v2342 = vpop.f32.mrb[0].mxu0
      %v2343 = vpop.f32.mrb[0].mxu0
      %v2344 = vadd.f32 0.0, %v2343
      %v2345 = vpop.f32.mrb[0].mxu0
      %2346 = vmatprep.mubr.bf16.mxu0 %v588
      %2347 = vmatmul.mubr.bf16.gmra.mrb[0].mxu0 %v587
      %v2348 = vpop.f32.mrb[0].mxu0
      %v2349 = vadd.f32 0.0, %v2348
      %v2350 = vpop.f32.mrb[0].mxu0
      %v2351 = vpop.f32.mrb[0].mxu0
      %v2352 = vadd.f32 0.0, %v2351
      %v2353 = vpop.f32.mrb[0].mxu0
      %2354 = vmatprep.mubr.bf16.mxu0 %v590
      %2355 = vmatmul.mubr.bf16.gmra.mrb[0].mxu0 %v589
      %v2356 = vpop.f32.mrb[0].mxu0
      %v2357 = vadd.f32 0.0, %v2356
      %v2358 = vpop.f32.mrb[0].mxu0
      %v2359 = vpop.f32.mrb[0].mxu0
      %v2360 = vadd.f32 0.0, %v2359
      %v2361 = vpop.f32.mrb[0].mxu0
      %2362 = vmatprep.mubr.bf16.mxu0 %v592
      %2363 = vmatmul.mubr.bf16.gmra.mrb[0].mxu0 %v591
      %v2364 = vpop.f32.mrb[0].mxu0
      %v2365 = vadd.f32 0.0, %v2364
      %v2366 = vpop.f32.mrb[0].mxu0
      %v2367 = vpop.f32.mrb[0].mxu0
      %v2368 = vadd.f32 0.0, %v2367
      %v2369 = vpop.f32.mrb[0].mxu0
      %2370 = vmatprep.mubr.bf16.mxu0 %v594
      %2371 = vmatmul.mubr.bf16.gmra.mrb[0].mxu0 %v593
      %v2372 = vpop.f32.mrb[0].mxu0
      %v2373 = vadd.f32 0.0, %v2372
      %v2374 = vpop.f32.mrb[0].mxu0
      %v2375 = vpop.f32.mrb[0].mxu0
      %v2376 = vadd.f32 0.0, %v2375
      %v2377 = vpop.f32.mrb[0].mxu0
      %2378 = vmatprep.mubr.bf16.mxu0 %v596
      %2379 = vmatmul.mubr.bf16.gmra.mrb[0].mxu0 %v595
      %v2380 = vpop.f32.mrb[0].mxu0
      %v2381 = vadd.f32 0.0, %v2380
      %v2382 = vpop.f32.mrb[0].mxu0
      %v2383 = vpop.f32.mrb[0].mxu0
      %v2384 = vadd.f32 0.0, %v2383
      %v2385 = vpop.f32.mrb[0].mxu0
      %2386 = vmatprep.mubr.bf16.mxu0 %v598
      %2387 = vmatmul.mubr.bf16.gmra.mrb[0].mxu0 %v597
      %v2388 = vpop.f32.mrb[0].mxu0
      %v2389 = vadd.f32 0.0, %v2388
      %v2390 = vpop.f32.mrb[0].mxu0
      %v2391 = vpop.f32.mrb[0].mxu0
      %v2392 = vadd.f32 0.0, %v2391
      %v2393 = vpop.f32.mrb[0].mxu0
      %2394 = vmatprep.mubr.bf16.mxu0 %v600
      %2395 = vmatmul.mubr.bf16.gmra.mrb[0].mxu0 %v599
      %v2396 = vpop.f32.mrb[0].mxu0
      %v2397 = vadd.f32 0.0, %v2396
      %v2398 = vpop.f32.mrb[0].mxu0
      %v2399 = vpop.f32.mrb[0].mxu0
      %v2400 = vadd.f32 0.0, %v2399
      %v2401 = vpop.f32.mrb[0].mxu0
      %2402 = vmatprep.mubr.bf16.mxu0 %v602
      %2403 = vmatmul.mubr.bf16.gmra.mrb[0].mxu0 %v601
      %v2404 = vpop.f32.mrb[0].mxu0
      %v2405 = vadd.f32 0.0, %v2404
      %v2406 = vpop.f32.mrb[0].mxu0
      %v2407 = vpop.f32.mrb[0].mxu0
      %v2408 = vadd.f32 0.0, %v2407
      %v2409 = vpop.f32.mrb[0].mxu0
      %2410 = vmatprep.mubr.bf16.mxu0 %v604
      %2411 = vmatmul.mubr.bf16.gmra.mrb[0].mxu0 %v603
      %v2412 = vpop.f32.mrb[0].mxu0
      %v2413 = vadd.f32 0.0, %v2412
      %v2414 = vpop.f32.mrb[0].mxu0
      %v2415 = vpop.f32.mrb[0].mxu0
      %v2416 = vadd.f32 0.0, %v2415
      %v2417 = vpop.f32.mrb[0].mxu0
      %2418 = vmatprep.mubr.bf16.mxu0 %v606
      %2419 = vmatmul.mubr.bf16.gmra.mrb[0].mxu0 %v605
      %v2420 = vpop.f32.mrb[0].mxu0
      %v2421 = vadd.f32 0.0, %v2420
      %v2422 = vpop.f32.mrb[0].mxu0
      %v2423 = vpop.f32.mrb[0].mxu0
      %v2424 = vadd.f32 0.0, %v2423
      %v2425 = vpop.f32.mrb[0].mxu0
      %2426 = vmatprep.mubr.bf16.mxu0 %v608
      %2427 = vmatmul.mubr.bf16.gmra.mrb[0].mxu0 %v607
      %v2428 = vpop.f32.mrb[0].mxu0
      %v2429 = vadd.f32 0.0, %v2428
      %v2430 = vpop.f32.mrb[0].mxu0
      %v2431 = vpop.f32.mrb[0].mxu0
      %v2432 = vadd.f32 0.0, %v2431
      %v2433 = vpop.f32.mrb[0].mxu0
      %2434 = vmatprep.mubr.bf16.mxu0 %v610
      %2435 = vmatmul.mubr.bf16.gmra.mrb[0].mxu0 %v609
      %v2436 = vpop.f32.mrb[0].mxu0
      %v2437 = vadd.f32 0.0, %v2436
      %v2438 = vpop.f32.mrb[0].mxu0
      %v2439 = vpop.f32.mrb[0].mxu0
      %v2440 = vadd.f32 0.0, %v2439
      %v2441 = vpop.f32.mrb[0].mxu0
      %2442 = vmatprep.mubr.bf16.mxu0 %v612
      %2443 = vmatmul.mubr.bf16.gmra.mrb[0].mxu0 %v611
      %v2444 = vpop.f32.mrb[0].mxu0
      %v2445 = vadd.f32 0.0, %v2444
      %v2446 = vpop.f32.mrb[0].mxu0
      %v2447 = vpop.f32.mrb[0].mxu0
      %v2448 = vadd.f32 0.0, %v2447
      %v2449 = vpop.f32.mrb[0].mxu0
      %2450 = vmatprep.mubr.bf16.mxu0 %v614
      %2451 = vmatmul.mubr.bf16.gmra.mrb[0].mxu0 %v613
      %v2452 = vpop.f32.mrb[0].mxu0
      %v2453 = vadd.f32 0.0, %v2452
      %v2454 = vpop.f32.mrb[0].mxu0
      %v2455 = vpop.f32.mrb[0].mxu0
      %v2456 = vadd.f32 0.0, %v2455
      %v2457 = vpop.f32.mrb[0].mxu0
      %2458 = vmatprep.mubr.bf16.mxu0 %v616
      %2459 = vmatmul.mubr.bf16.gmra.mrb[0].mxu0 %v615
      %v2460 = vpop.f32.mrb[0].mxu0
      %v2461 = vadd.f32 0.0, %v2460
      %v2462 = vpop.f32.mrb[0].mxu0
      %v2463 = vpop.f32.mrb[0].mxu0
      %v2464 = vadd.f32 0.0, %v2463
      %v2465 = vpop.f32.mrb[0].mxu0
      %2466 = vmatprep.mubr.bf16.mxu0 %v618
      %2467 = vmatmul.mubr.bf16.gmra.mrb[0].mxu0 %v617
      %v2468 = vpop.f32.mrb[0].mxu0
      %v2469 = vadd.f32 0.0, %v2468
      %v2470 = vpop.f32.mrb[0].mxu0
      %v2471 = vpop.f32.mrb[0].mxu0
      %v2472 = vadd.f32 0.0, %v2471
      %v2473 = vpop.f32.mrb[0].mxu0
      %2474 = vmatprep.mubr.bf16.mxu0 %v620
      %2475 = vmatmul.mubr.bf16.gmra.mrb[0].mxu0 %v619
      %v2476 = vpop.f32.mrb[0].mxu0
      %v2477 = vadd.f32 0.0, %v2476
      %v2478 = vpop.f32.mrb[0].mxu0
      %v2479 = vpop.f32.mrb[0].mxu0
      %v2480 = vadd.f32 0.0, %v2479
      %v2481 = vpop.f32.mrb[0].mxu0
      %2482 = vmatprep.mubr.bf16.mxu0 %v622
      %2483 = vmatmul.mubr.bf16.gmra.mrb[0].mxu0 %v621
      %v2484 = vpop.f32.mrb[0].mxu0
      %v2485 = vadd.f32 0.0, %v2484
      %v2486 = vpop.f32.mrb[0].mxu0
      %v2487 = vpop.f32.mrb[0].mxu0
      %v2488 = vpop.f32.mrb[0].mxu0
      %2489 = vmatprep.mubr.bf16.mxu0 %v624
      %2490 = vmatmul.mubr.bf16.gmra.mrb[0].mxu0 %v623
      %v2491 = vpop.f32.mrb[0].mxu0
      %v2492 = vpop.f32.mrb[0].mxu0
      %v2493 = vpop.f32.mrb[0].mxu0
      %v2494 = vpop.f32.mrb[0].mxu0
      %2495 = vmatprep.mubr.bf16.mxu0 %v626
      %2496 = vmatmul.mubr.bf16.gmra.mrb[0].mxu0 %v625
      %v2497 = vpop.f32.mrb[0].mxu0
      %v2498 = vpop.f32.mrb[0].mxu0
      %v2499 = vpop.f32.mrb[0].mxu0
      %v2500 = vpop.f32.mrb[0].mxu0
      %2501 = vdwg.mxu0
      %v2502 = vadd.f32 %v1964, %v1977
      %v2503 = vadd.f32 %v1967, %v1983
      %v2504 = vadd.f32 %v1972, %v1987
      %v2505 = vadd.f32 %v1975, %v1993
      %v2506 = vadd.f32 %v1981, %v1997
      %v2507 = vadd.f32 %v1985, %v2003
      %v2508 = vadd.f32 %v1991, %v2007
      %v2509 = vadd.f32 %v1995, %v2013
      %v2510 = vadd.f32 %v2001, %v2017
      %v2511 = vadd.f32 %v2005, %v2023
      %v2512 = vadd.f32 %v2011, %v2027
      %v2513 = vadd.f32 %v2015, %v2033
      %v2514 = vadd.f32 %v2021, %v2037
      %v2515 = vadd.f32 %v2025, %v2043
      %v2516 = vadd.f32 %v2031, %v2047
      %v2517 = vadd.f32 %v2035, %v2053
      %v2518 = vadd.f32 %v2041, %v2057
      %v2519 = vadd.f32 %v2045, %v2063
      %v2520 = vadd.f32 %v2051, %v2067
      %v2521 = vadd.f32 %v2055, %v2073
      %v2522 = vadd.f32 %v2061, %v2077
      %v2523 = vadd.f32 %v2065, %v2083
      %v2524 = vadd.f32 %v2071, %v2087
      %v2525 = vadd.f32 %v2075, %v2093
      %v2526 = vadd.f32 %v2081, %v2097
      %v2527 = vadd.f32 %v2085, %v2103
      %v2528 = vadd.f32 %v2091, %v2107
      %v2529 = vadd.f32 %v2095, %v2113
      %v2530 = vadd.f32 %v2101, %v2117
      %v2531 = vadd.f32 %v2105, %v2123
      %v2532 = vadd.f32 %v2111, %v2127
      %v2533 = vadd.f32 %v2115, %v2133
      %v2534 = vadd.f32 %v2121, %v2137
      %v2535 = vadd.f32 %v2125, %v2143
      %v2536 = vadd.f32 %v2131, %v2147
      %v2537 = vadd.f32 %v2135, %v2153
      %v2538 = vadd.f32 %v2141, %v2157
      %v2539 = vadd.f32 %v2145, %v2163
      %v2540 = vadd.f32 %v2151, %v2167
      %v2541 = vadd.f32 %v2155, %v2173
      %v2542 = vadd.f32 %v2161, %v2177
      %v2543 = vadd.f32 %v2165, %v2183
      %v2544 = vadd.f32 %v2171, %v2187
      %v2545 = vadd.f32 %v2175, %v2193
      %v2546 = vadd.f32 %v2181, %v2197
      %v2547 = vadd.f32 %v2185, %v2203
      %v2548 = vadd.f32 %v2191, %v2206
      %v2549 = vadd.f32 %v2195, %v2211
      %v2550 = vadd.f32 %v2201, %v2214
      %v2551 = vadd.f32 %v2502, %v2293
      %v2552 = vadd.f32 %v2503, %v2296
      %v2553 = vadd.f32 %v2504, %v2301
      %v2554 = vadd.f32 %v2505, %v2304
      %v2555 = vadd.f32 %v2506, %v2309
      %v2556 = vadd.f32 %v2507, %v2312
      %v2557 = vadd.f32 %v2508, %v2317
      %v2558 = vadd.f32 %v2509, %v2320
      %v2559 = vadd.f32 %v2510, %v2325
      %v2560 = vadd.f32 %v2511, %v2328
      %v2561 = vadd.f32 %v2512, %v2333
      %v2562 = vadd.f32 %v2513, %v2336
      %v2563 = vadd.f32 %v2514, %v2341
      %v2564 = vadd.f32 %v2515, %v2344
      %v2565 = vadd.f32 %v2516, %v2349
      %v2566 = vadd.f32 %v2517, %v2352
      %v2567 = vadd.f32 %v2518, %v2357
      %v2568 = vadd.f32 %v2519, %v2360
      %v2569 = vadd.f32 %v2520, %v2365
      %v2570 = vadd.f32 %v2521, %v2368
      %v2571 = vadd.f32 %v2522, %v2373
      %v2572 = vadd.f32 %v2523, %v2376
      %v2573 = vadd.f32 %v2524, %v2381
      %v2574 = vadd.f32 %v2525, %v2384
      %v2575 = vadd.f32 %v2526, %v2389
      %v2576 = vadd.f32 %v2527, %v2392
      %v2577 = vadd.f32 %v2528, %v2397
      %v2578 = vadd.f32 %v2529, %v2400
      %v2579 = vadd.f32 %v2530, %v2405
      %v2580 = vadd.f32 %v2531, %v2408
      %v2581 = vadd.f32 %v2532, %v2413
      %v2582 = vadd.f32 %v2533, %v2416
      %v2583 = vadd.f32 %v2534, %v2421
      %v2584 = vadd.f32 %v2535, %v2424
      %v2585 = vadd.f32 %v2536, %v2429
      %v2586 = vadd.f32 %v2537, %v2432
      %v2587 = vadd.f32 %v2538, %v2437
      %v2588 = vadd.f32 %v2539, %v2440
      %v2589 = vadd.f32 %v2540, %v2445
      %v2590 = vadd.f32 %v2541, %v2448
      %v2591 = vadd.f32 %v2542, %v2453
      %v2592 = vadd.f32 %v2543, %v2456
      %v2593 = vadd.f32 %v2544, %v2461
      %v2594 = vadd.f32 %v2545, %v2464
      %v2595 = vadd.f32 %v2546, %v2469
      %v2596 = vadd.f32 %v2547, %v2472
      %v2597 = vadd.f32 %v2548, %v2477
      %v2598 = vadd.f32 %v2549, %v2480
      %v2599 = vadd.f32 %v2550, %v2485
      %vm2649 = vcmask 1046528
      %v2650 = vrot.slane %v2551, 1
      %v2651 = vrot.slane %v2552, 1
      %v2652 = vsel %vm2649, %v2650, %v2651
      %v2653 = vrot.slane %v2553, 1
      %v2654 = vsel %vm2649, %v2651, %v2653
      %v2655 = vrot.slane %v2554, 1
      %v2656 = vsel %vm2649, %v2653, %v2655
      %v2657 = vrot.slane %v2555, 1
      %v2658 = vsel %vm2649, %v2655, %v2657
      %v2659 = vrot.slane %v2556, 1
      %v2660 = vsel %vm2649, %v2657, %v2659
      %v2661 = vrot.slane %v2557, 1
      %v2662 = vsel %vm2649, %v2659, %v2661
      %v2663 = vrot.slane %v2558, 1
      %v2664 = vsel %vm2649, %v2661, %v2663
      %v2665 = vrot.slane %v2559, 1
      %v2666 = vsel %vm2649, %v2663, %v2665
      %v2667 = vrot.slane %v2560, 1
      %v2668 = vsel %vm2649, %v2665, %v2667
      %v2669 = vrot.slane %v2561, 1
      %v2670 = vsel %vm2649, %v2667, %v2669
      %v2671 = vrot.slane %v2562, 1
      %v2672 = vsel %vm2649, %v2669, %v2671
      %v2673 = vrot.slane %v2563, 1
      %v2674 = vsel %vm2649, %v2671, %v2673
      %v2675 = vrot.slane %v2564, 1
      %v2676 = vsel %vm2649, %v2673, %v2675
      %v2677 = vrot.slane %v2565, 1
      %v2678 = vsel %vm2649, %v2675, %v2677
      %v2679 = vrot.slane %v2566, 1
      %v2680 = vsel %vm2649, %v2677, %v2679
      %v2681 = vrot.slane %v2567, 1
      %v2682 = vsel %vm2649, %v2679, %v2681
      %v2683 = vrot.slane %v2568, 1
      %v2684 = vsel %vm2649, %v2681, %v2683
      %v2685 = vrot.slane %v2569, 1
      %v2686 = vsel %vm2649, %v2683, %v2685
      %v2687 = vrot.slane %v2570, 1
      %v2688 = vsel %vm2649, %v2685, %v2687
      %v2689 = vrot.slane %v2571, 1
      %v2690 = vsel %vm2649, %v2687, %v2689
      %v2691 = vrot.slane %v2572, 1
      %v2692 = vsel %vm2649, %v2689, %v2691
      %v2693 = vrot.slane %v2573, 1
      %v2694 = vsel %vm2649, %v2691, %v2693
      %v2695 = vrot.slane %v2574, 1
      %v2696 = vsel %vm2649, %v2693, %v2695
      %v2697 = vrot.slane %v2575, 1
      %v2698 = vsel %vm2649, %v2695, %v2697
      %v2699 = vrot.slane %v2576, 1
      %v2700 = vsel %vm2649, %v2697, %v2699
      %v2701 = vrot.slane %v2577, 1
      %v2702 = vsel %vm2649, %v2699, %v2701
      %v2703 = vrot.slane %v2578, 1
      %v2704 = vsel %vm2649, %v2701, %v2703
      %v2705 = vrot.slane %v2579, 1
      %v2706 = vsel %vm2649, %v2703, %v2705
      %v2707 = vrot.slane %v2580, 1
      %v2708 = vsel %vm2649, %v2705, %v2707
      %v2709 = vrot.slane %v2581, 1
      %v2710 = vsel %vm2649, %v2707, %v2709
      %v2711 = vrot.slane %v2582, 1
      %v2712 = vsel %vm2649, %v2709, %v2711
      %v2713 = vrot.slane %v2583, 1
      %v2714 = vsel %vm2649, %v2711, %v2713
      %v2715 = vrot.slane %v2584, 1
      %v2716 = vsel %vm2649, %v2713, %v2715
      %v2717 = vrot.slane %v2585, 1
      %v2718 = vsel %vm2649, %v2715, %v2717
      %v2719 = vrot.slane %v2586, 1
      %v2720 = vsel %vm2649, %v2717, %v2719
      %v2721 = vrot.slane %v2587, 1
      %v2722 = vsel %vm2649, %v2719, %v2721
      %v2723 = vrot.slane %v2588, 1
      %v2724 = vsel %vm2649, %v2721, %v2723
      %v2725 = vrot.slane %v2589, 1
      %v2726 = vsel %vm2649, %v2723, %v2725
      %v2727 = vrot.slane %v2590, 1
      %v2728 = vsel %vm2649, %v2725, %v2727
      %v2729 = vrot.slane %v2591, 1
      %v2730 = vsel %vm2649, %v2727, %v2729
      %v2731 = vrot.slane %v2592, 1
      %v2732 = vsel %vm2649, %v2729, %v2731
      %v2733 = vrot.slane %v2593, 1
      %v2734 = vsel %vm2649, %v2731, %v2733
      %v2735 = vrot.slane %v2594, 1
      %v2736 = vsel %vm2649, %v2733, %v2735
      %v2737 = vrot.slane %v2595, 1
      %v2738 = vsel %vm2649, %v2735, %v2737
      %v2739 = vrot.slane %v2596, 1
      %v2740 = vsel %vm2649, %v2737, %v2739
      %v2741 = vrot.slane %v2597, 1
      %v2742 = vsel %vm2649, %v2739, %v2741
      %v2743 = vrot.slane %v2598, 1
      %v2744 = vsel %vm2649, %v2741, %v2743
      %v2745 = vrot.slane %v2599, 1
      %v2746 = vsel %vm2649, %v2743, %v2745
      %v2795 = vadd.f32 %v1561, %v2652
      %v2796 = vadd.f32 %v1562, %v2654
      %v2797 = vadd.f32 %v1563, %v2656
      %v2798 = vadd.f32 %v1564, %v2658
      %v2799 = vadd.f32 %v1565, %v2660
      %v2800 = vadd.f32 %v1566, %v2662
      %v2801 = vadd.f32 %v1567, %v2664
      %v2802 = vadd.f32 %v1568, %v2666
      %v2803 = vadd.f32 %v1569, %v2668
      %v2804 = vadd.f32 %v1570, %v2670
      %v2805 = vadd.f32 %v1571, %v2672
      %v2806 = vadd.f32 %v1572, %v2674
      %v2807 = vadd.f32 %v1573, %v2676
      %v2808 = vadd.f32 %v1574, %v2678
      %v2809 = vadd.f32 %v1575, %v2680
      %v2810 = vadd.f32 %v1576, %v2682
      %v2811 = vadd.f32 %v1577, %v2684
      %v2812 = vadd.f32 %v1578, %v2686
      %v2813 = vadd.f32 %v1579, %v2688
      %v2814 = vadd.f32 %v1580, %v2690
      %v2815 = vadd.f32 %v1581, %v2692
      %v2816 = vadd.f32 %v1582, %v2694
      %v2817 = vadd.f32 %v1583, %v2696
      %v2818 = vadd.f32 %v1584, %v2698
      %v2819 = vadd.f32 %v1585, %v2700
      %v2820 = vadd.f32 %v1586, %v2702
      %v2821 = vadd.f32 %v1587, %v2704
      %v2822 = vadd.f32 %v1588, %v2706
      %v2823 = vadd.f32 %v1589, %v2708
      %v2824 = vadd.f32 %v1590, %v2710
      %v2825 = vadd.f32 %v1591, %v2712
      %v2826 = vadd.f32 %v1592, %v2714
      %v2827 = vadd.f32 %v1593, %v2716
      %v2828 = vadd.f32 %v1594, %v2718
      %v2829 = vadd.f32 %v1595, %v2720
      %v2830 = vadd.f32 %v1596, %v2722
      %v2831 = vadd.f32 %v1597, %v2724
      %v2832 = vadd.f32 %v1598, %v2726
      %v2833 = vadd.f32 %v1599, %v2728
      %v2834 = vadd.f32 %v1600, %v2730
      %v2835 = vadd.f32 %v1601, %v2732
      %v2836 = vadd.f32 %v1602, %v2734
      %v2837 = vadd.f32 %v1603, %v2736
      %v2838 = vadd.f32 %v1604, %v2738
      %v2839 = vadd.f32 %v1605, %v2740
      %v2840 = vadd.f32 %v1606, %v2742
      %v2841 = vadd.f32 %v1607, %v2744
      %v2842 = vadd.f32 %v1608, %v2746
      %v2843 = vld [vmem:[%s1 + $0x18] sm:$0xff]
      %v2844 = vld [vmem:[%s1 + $0x20] sm:$0xf]
      %v2845 = vld [vmem:[%s1 + $0x3c] sm:$0xff]
      %v2846 = vld [vmem:[%s1 + $0x44] sm:$0xf]
      %v2847 = vld [vmem:[%s1 + $0x60] sm:$0xff]
      %v2848 = vld [vmem:[%s1 + $0x68] sm:$0xf]
      %v2849 = vld [vmem:[%s1 + $0x84] sm:$0xff]
      %v2850 = vld [vmem:[%s1 + $0x8c] sm:$0xf]
      %v2851 = vld [vmem:[%s1 + $0xa8] sm:$0xff]
      %v2852 = vld [vmem:[%s1 + $0xb0] sm:$0xf]
      %v2853 = vld [vmem:[%s1 + $0xcc] sm:$0xff]
      %v2854 = vld [vmem:[%s1 + $0xd4] sm:$0xf]
      %v2855 = vld [vmem:[%s1 + $0xf0] sm:$0xff]
      %v2856 = vld [vmem:[%s1 + $0xf8] sm:$0xf]
      %v2857 = vld [vmem:[%s1 + $0x114] sm:$0xff]
      %v2858 = vld [vmem:[%s1 + $0x11c] sm:$0xf]
      %v2859 = vld [vmem:[%s1 + $0x138] sm:$0xff]
      %v2860 = vld [vmem:[%s1 + $0x140] sm:$0xf]
      %v2861 = vld [vmem:[%s1 + $0x15c] sm:$0xff]
      %v2862 = vld [vmem:[%s1 + $0x164] sm:$0xf]
      %v2863 = vld [vmem:[%s1 + $0x180] sm:$0xff]
      %v2864 = vld [vmem:[%s1 + $0x188] sm:$0xf]
      %v2865 = vld [vmem:[%s1 + $0x1a4] sm:$0xff]
      %v2866 = vld [vmem:[%s1 + $0x1ac] sm:$0xf]
      %v2867 = vld [vmem:[%s1 + $0x1c8] sm:$0xff]
      %v2868 = vld [vmem:[%s1 + $0x1d0] sm:$0xf]
      %v2869 = vld [vmem:[%s1 + $0x1ec] sm:$0xff]
      %v2870 = vld [vmem:[%s1 + $0x1f4] sm:$0xf]
      %v2871 = vld [vmem:[%s1 + $0x210] sm:$0xff]
      %v2872 = vld [vmem:[%s1 + $0x218] sm:$0xf]
      %v2873 = vld [vmem:[%s1 + $0x234] sm:$0xff]
      %v2874 = vld [vmem:[%s1 + $0x23c] sm:$0xf]
      %v2875 = vld [vmem:[%s1 + $0x258] sm:$0xff]
      %v2876 = vld [vmem:[%s1 + $0x260] sm:$0xf]
      %v2877 = vld [vmem:[%s1 + $0x27c] sm:$0xff]
      %v2878 = vld [vmem:[%s1 + $0x284] sm:$0xf]
      %v2879 = vld [vmem:[%s1 + $0x2a0] sm:$0xff]
      %v2880 = vld [vmem:[%s1 + $0x2a8] sm:$0xf]
      %v2881 = vld [vmem:[%s1 + $0x2c4] sm:$0xff]
      %v2882 = vld [vmem:[%s1 + $0x2cc] sm:$0xf]
      %v2883 = vld [vmem:[%s1 + $0x2e8] sm:$0xff]
      %v2884 = vld [vmem:[%s1 + $0x2f0] sm:$0xf]
      %v2885 = vld [vmem:[%s1 + $0x30c] sm:$0xff]
      %v2886 = vld [vmem:[%s1 + $0x314] sm:$0xf]
      %v2887 = vld [vmem:[%s1 + $0x330] sm:$0xff]
      %v2888 = vld [vmem:[%s1 + $0x338] sm:$0xf]
      %v2889 = vld [vmem:[%s1 + $0x354] sm:$0xff]
      %v2890 = vld [vmem:[%s1 + $0x35c] sm:$0xf]
      %v2891 = vld [vmem:[%s1 + $0x378] sm:$0xff]
      %v2892 = vld [vmem:[%s1 + $0x380] sm:$0xf]
      %v2893 = vld [vmem:[%s1 + $0x39c] sm:$0xff]
      %v2894 = vld [vmem:[%s1 + $0x3a4] sm:$0xf]
      %v2895 = vld [vmem:[%s1 + $0x3c0] sm:$0xff]
      %v2896 = vld [vmem:[%s1 + $0x3c8] sm:$0xf]
      %v2897 = vld [vmem:[%s1 + $0x3e4] sm:$0xff]
      %v2898 = vld [vmem:[%s1 + $0x3ec] sm:$0xf]
      %v2899 = vld [vmem:[%s1 + $0x408] sm:$0xff]
      %v2900 = vld [vmem:[%s1 + $0x410] sm:$0xf]
      %v2901 = vld [vmem:[%s1 + $0x42c] sm:$0xff]
      %v2902 = vld [vmem:[%s1 + $0x434] sm:$0xf]
      %v2903 = vld [vmem:[%s1 + $0x450] sm:$0xff]
      %v2904 = vld [vmem:[%s1 + $0x458] sm:$0xf]
      %v2905 = vld [vmem:[%s1 + $0x474] sm:$0xff]
      %v2906 = vld [vmem:[%s1 + $0x47c] sm:$0xf]
      %v2971 = vunpack.c.l.b16 %v2843
      %v2972 = vunpack.c.h.b16 %v2843
      %v2973 = vunpack.c.l.b16 %v2844
      %v2974 = vunpack.c.l.b16 %v2845
      %v2975 = vunpack.c.h.b16 %v2845
      %v2976 = vunpack.c.l.b16 %v2846
      %v2977 = vunpack.c.l.b16 %v2847
      %v2978 = vunpack.c.h.b16 %v2847
      %v2979 = vunpack.c.l.b16 %v2848
      %v2980 = vunpack.c.l.b16 %v2849
      %v2981 = vunpack.c.h.b16 %v2849
      %v2982 = vunpack.c.l.b16 %v2850
      %v2983 = vunpack.c.l.b16 %v2851
      %v2984 = vunpack.c.h.b16 %v2851
      %v2985 = vunpack.c.l.b16 %v2852
      %v2986 = vunpack.c.l.b16 %v2853
      %v2987 = vunpack.c.h.b16 %v2853
      %v2988 = vunpack.c.l.b16 %v2854
      %v2989 = vunpack.c.l.b16 %v2855
      %v2990 = vunpack.c.h.b16 %v2855
      %v2991 = vunpack.c.l.b16 %v2856
      %v2992 = vunpack.c.l.b16 %v2857
      %v2993 = vunpack.c.h.b16 %v2857
      %v2994 = vunpack.c.l.b16 %v2858
      %v2995 = vunpack.c.l.b16 %v2859
      %v2996 = vunpack.c.h.b16 %v2859
      %v2997 = vunpack.c.l.b16 %v2860
      %v2998 = vunpack.c.l.b16 %v2861
      %v2999 = vunpack.c.h.b16 %v2861
      %v3000 = vunpack.c.l.b16 %v2862
      %v3001 = vunpack.c.l.b16 %v2863
      %v3002 = vunpack.c.h.b16 %v2863
      %v3003 = vunpack.c.l.b16 %v2864
      %v3004 = vunpack.c.l.b16 %v2865
      %v3005 = vunpack.c.h.b16 %v2865
      %v3006 = vunpack.c.l.b16 %v2866
      %v3007 = vunpack.c.l.b16 %v2867
      %v3008 = vunpack.c.h.b16 %v2867
      %v3009 = vunpack.c.l.b16 %v2868
      %v3010 = vunpack.c.l.b16 %v2869
      %v3011 = vunpack.c.h.b16 %v2869
      %v3012 = vunpack.c.l.b16 %v2870
      %v3013 = vunpack.c.l.b16 %v2871
      %v3014 = vunpack.c.h.b16 %v2871
      %v3015 = vunpack.c.l.b16 %v2872
      %v3016 = vunpack.c.l.b16 %v2873
      %v3017 = vunpack.c.h.b16 %v2873
      %v3018 = vunpack.c.l.b16 %v2874
      %v3019 = vunpack.c.l.b16 %v2875
      %v3020 = vunpack.c.h.b16 %v2875
      %v3021 = vunpack.c.l.b16 %v2876
      %v3022 = vunpack.c.l.b16 %v2877
      %v3023 = vunpack.c.h.b16 %v2877
      %v3024 = vunpack.c.l.b16 %v2878
      %v3025 = vunpack.c.l.b16 %v2879
      %v3026 = vunpack.c.h.b16 %v2879
      %v3027 = vunpack.c.l.b16 %v2880
      %v3028 = vunpack.c.l.b16 %v2881
      %v3029 = vunpack.c.h.b16 %v2881
      %v3030 = vunpack.c.l.b16 %v2882
      %v3031 = vunpack.c.l.b16 %v2883
      %v3032 = vunpack.c.h.b16 %v2883
      %v3033 = vunpack.c.l.b16 %v2884
      %v3034 = vunpack.c.l.b16 %v2885
      %v3035 = vunpack.c.h.b16 %v2885
      %v3036 = vunpack.c.l.b16 %v2886
      %v3037 = vunpack.c.l.b16 %v2887
      %v3038 = vunpack.c.h.b16 %v2887
      %v3039 = vunpack.c.l.b16 %v2888
      %v3040 = vunpack.c.l.b16 %v2889
      %v3041 = vunpack.c.h.b16 %v2889
      %v3042 = vunpack.c.l.b16 %v2890
      %v3043 = vunpack.c.l.b16 %v2891
      %v3044 = vunpack.c.h.b16 %v2891
      %v3045 = vunpack.c.l.b16 %v2892
      %v3046 = vunpack.c.l.b16 %v2893
      %v3047 = vunpack.c.h.b16 %v2893
      %v3048 = vunpack.c.l.b16 %v2894
      %v3049 = vunpack.c.l.b16 %v2895
      %v3050 = vunpack.c.h.b16 %v2895
      %v3051 = vunpack.c.l.b16 %v2896
      %v3052 = vunpack.c.l.b16 %v2897
      %v3053 = vunpack.c.h.b16 %v2897
      %v3054 = vunpack.c.l.b16 %v2898
      %v3055 = vunpack.c.l.b16 %v2899
      %v3056 = vunpack.c.h.b16 %v2899
      %v3057 = vunpack.c.l.b16 %v2900
      %v3058 = vunpack.c.l.b16 %v2901
      %v3059 = vunpack.c.h.b16 %v2901
      %v3060 = vunpack.c.l.b16 %v2902
      %v3061 = vunpack.c.l.b16 %v2903
      %v3062 = vunpack.c.h.b16 %v2903
      %v3063 = vunpack.c.l.b16 %v2904
      %v3064 = vunpack.c.l.b16 %v2905
      %v3065 = vunpack.c.h.b16 %v2905
      %v3066 = vunpack.c.l.b16 %v2906
      %v3067 = vpack.c.b16 %v2974, %v2971
      %v3068 = vpack.c.b16 %v2975, %v2972
      %v3069 = vpack.c.b16 %v2976, %v2973
      %v3070 = vpack.c.b16 %v2980, %v2977
      %v3071 = vpack.c.b16 %v2981, %v2978
      %v3072 = vpack.c.b16 %v2982, %v2979
      %v3073 = vpack.c.b16 %v2986, %v2983
      %v3074 = vpack.c.b16 %v2987, %v2984
      %v3075 = vpack.c.b16 %v2988, %v2985
      %v3076 = vpack.c.b16 %v2992, %v2989
      %v3077 = vpack.c.b16 %v2993, %v2990
      %v3078 = vpack.c.b16 %v2994, %v2991
      %v3079 = vpack.c.b16 %v2998, %v2995
      %v3080 = vpack.c.b16 %v2999, %v2996
      %v3081 = vpack.c.b16 %v3000, %v2997
      %v3082 = vpack.c.b16 %v3004, %v3001
      %v3083 = vpack.c.b16 %v3005, %v3002
      %v3084 = vpack.c.b16 %v3006, %v3003
      %v3085 = vpack.c.b16 %v3010, %v3007
      %v3086 = vpack.c.b16 %v3011, %v3008
      %v3087 = vpack.c.b16 %v3012, %v3009
      %v3088 = vpack.c.b16 %v3016, %v3013
      %v3089 = vpack.c.b16 %v3017, %v3014
      %v3090 = vpack.c.b16 %v3018, %v3015
      %v3091 = vpack.c.b16 %v3022, %v3019
      %v3092 = vpack.c.b16 %v3023, %v3020
      %v3093 = vpack.c.b16 %v3024, %v3021
      %v3094 = vpack.c.b16 %v3028, %v3025
      %v3095 = vpack.c.b16 %v3029, %v3026
      %v3096 = vpack.c.b16 %v3030, %v3027
      %v3097 = vpack.c.b16 %v3034, %v3031
      %v3098 = vpack.c.b16 %v3035, %v3032
      %v3099 = vpack.c.b16 %v3036, %v3033
      %v3100 = vpack.c.b16 %v3040, %v3037
      %v3101 = vpack.c.b16 %v3041, %v3038
      %v3102 = vpack.c.b16 %v3042, %v3039
      %v3103 = vpack.c.b16 %v3046, %v3043
      %v3104 = vpack.c.b16 %v3047, %v3044
      %v3105 = vpack.c.b16 %v3048, %v3045
      %v3106 = vpack.c.b16 %v3052, %v3049
      %v3107 = vpack.c.b16 %v3053, %v3050
      %v3108 = vpack.c.b16 %v3054, %v3051
      %v3109 = vpack.c.b16 %v3058, %v3055
      %v3110 = vpack.c.b16 %v3059, %v3056
      %v3111 = vpack.c.b16 %v3060, %v3057
      %v3112 = vpack.c.b16 %v3064, %v3061
      %v3113 = vpack.c.b16 %v3065, %v3062
      %v3114 = vpack.c.b16 %v3066, %v3063
      %3163 = vmatprep.subr.bf16.mxu0 %v3068
      %3164 = vmatpush1.bf16.msra.mxu0 %v3067
      %3165 = vmatprep.subr.bf16.mxu0 %v3071
      %3166 = vmatpush1.bf16.msra.mxu0 %v3070
      %3167 = vmatprep.subr.bf16.mxu0 %v3074
      %3168 = vmatpush1.bf16.msra.mxu0 %v3073
      %3169 = vmatprep.subr.bf16.mxu0 %v3077
      %3170 = vmatpush1.bf16.msra.mxu0 %v3076
      %3171 = vmatprep.subr.bf16.mxu0 %v3080
      %3172 = vmatpush1.bf16.msra.mxu0 %v3079
      %3173 = vmatprep.subr.bf16.mxu0 %v3083
      %3174 = vmatpush1.bf16.msra.mxu0 %v3082
      %3175 = vmatprep.subr.bf16.mxu0 %v3086
      %3176 = vmatpush1.bf16.msra.mxu0 %v3085
      %3177 = vmatprep.subr.bf16.mxu0 %v3089
      %3178 = vmatpush1.bf16.msra.mxu0 %v3088
      %3179 = vmatprep.subr.bf16.mxu0 %v3092
      %3180 = vmatpush1.bf16.msra.mxu0 %v3091
      %3181 = vmatprep.subr.bf16.mxu0 %v3095
      %3182 = vmatpush1.bf16.msra.mxu0 %v3094
      %3183 = vmatprep.subr.bf16.mxu0 %v3098
      %3184 = vmatpush1.bf16.msra.mxu0 %v3097
      %3185 = vmatprep.subr.bf16.mxu0 %v3101
      %3186 = vmatpush1.bf16.msra.mxu0 %v3100
      %3187 = vmatprep.subr.bf16.mxu0 %v3104
      %3188 = vmatpush1.bf16.msra.mxu0 %v3103
      %3189 = vmatprep.subr.bf16.mxu0 %v3107
      %3190 = vmatpush1.bf16.msra.mxu0 %v3106
      %3191 = vmatprep.subr.bf16.mxu0 %v3110
      %3192 = vmatpush1.bf16.msra.mxu0 %v3109
      %3193 = vmatprep.subr.bf16.mxu0 %v3113
      %3194 = vmatpush1.bf16.msra.mxu0 %v3112
      %3195 = vmatprep.mubr.bf16.mxu0 %v568
      %3196 = vmatmul.mubr.bf16.gmra.mrb[0].mxu0 %v567
      %v3197 = vpop.f32.mrb[0].mxu0
      %v3198 = vadd.f32 0.0, %v3197
      %v3199 = vpop.f32.mrb[0].mxu0
      %v3200 = vpop.f32.mrb[0].mxu0
      %v3201 = vadd.f32 0.0, %v3200
      %v3202 = vpop.f32.mrb[0].mxu0
      %3203 = vmatprep.mubr.bf16.mxu0 %v570
      %3204 = vmatmul.mubr.bf16.gmra.mrb[0].mxu0 %v569
      %v3205 = vpop.f32.mrb[0].mxu0
      %v3206 = vadd.f32 0.0, %v3205
      %v3207 = vpop.f32.mrb[0].mxu0
      %v3208 = vpop.f32.mrb[0].mxu0
      %v3209 = vadd.f32 0.0, %v3208
      %v3210 = vpop.f32.mrb[0].mxu0
      %v3211 = vadd.f32 0.0, %v3210
      %3212 = vmatprep.mubr.bf16.mxu0 %v572
      %3213 = vmatmul.mubr.bf16.gmra.mrb[0].mxu0 %v571
      %v3214 = vpop.f32.mrb[0].mxu0
      %v3215 = vadd.f32 0.0, %v3214
      %v3216 = vpop.f32.mrb[0].mxu0
      %v3217 = vadd.f32 0.0, %v3216
      %v3218 = vpop.f32.mrb[0].mxu0
      %v3219 = vadd.f32 0.0, %v3218
      %v3220 = vpop.f32.mrb[0].mxu0
      %v3221 = vadd.f32 0.0, %v3220
      %3222 = vmatprep.mubr.bf16.mxu0 %v574
      %3223 = vmatmul.mubr.bf16.gmra.mrb[0].mxu0 %v573
      %v3224 = vpop.f32.mrb[0].mxu0
      %v3225 = vadd.f32 0.0, %v3224
      %v3226 = vpop.f32.mrb[0].mxu0
      %v3227 = vadd.f32 0.0, %v3226
      %v3228 = vpop.f32.mrb[0].mxu0
      %v3229 = vadd.f32 0.0, %v3228
      %v3230 = vpop.f32.mrb[0].mxu0
      %v3231 = vadd.f32 0.0, %v3230
      %3232 = vmatprep.mubr.bf16.mxu0 %v576
      %3233 = vmatmul.mubr.bf16.gmra.mrb[0].mxu0 %v575
      %v3234 = vpop.f32.mrb[0].mxu0
      %v3235 = vadd.f32 0.0, %v3234
      %v3236 = vpop.f32.mrb[0].mxu0
      %v3237 = vadd.f32 0.0, %v3236
      %v3238 = vpop.f32.mrb[0].mxu0
      %v3239 = vadd.f32 0.0, %v3238
      %v3240 = vpop.f32.mrb[0].mxu0
      %v3241 = vadd.f32 0.0, %v3240
      %3242 = vmatprep.mubr.bf16.mxu0 %v578
      %3243 = vmatmul.mubr.bf16.gmra.mrb[0].mxu0 %v577
      %v3244 = vpop.f32.mrb[0].mxu0
      %v3245 = vadd.f32 0.0, %v3244
      %v3246 = vpop.f32.mrb[0].mxu0
      %v3247 = vadd.f32 0.0, %v3246
      %v3248 = vpop.f32.mrb[0].mxu0
      %v3249 = vadd.f32 0.0, %v3248
      %v3250 = vpop.f32.mrb[0].mxu0
      %v3251 = vadd.f32 0.0, %v3250
      %3252 = vmatprep.mubr.bf16.mxu0 %v580
      %3253 = vmatmul.mubr.bf16.gmra.mrb[0].mxu0 %v579
      %v3254 = vpop.f32.mrb[0].mxu0
      %v3255 = vadd.f32 0.0, %v3254
      %v3256 = vpop.f32.mrb[0].mxu0
      %v3257 = vadd.f32 0.0, %v3256
      %v3258 = vpop.f32.mrb[0].mxu0
      %v3259 = vadd.f32 0.0, %v3258
      %v3260 = vpop.f32.mrb[0].mxu0
      %v3261 = vadd.f32 0.0, %v3260
      %3262 = vmatprep.mubr.bf16.mxu0 %v582
      %3263 = vmatmul.mubr.bf16.gmra.mrb[0].mxu0 %v581
      %v3264 = vpop.f32.mrb[0].mxu0
      %v3265 = vadd.f32 0.0, %v3264
      %v3266 = vpop.f32.mrb[0].mxu0
      %v3267 = vadd.f32 0.0, %v3266
      %v3268 = vpop.f32.mrb[0].mxu0
      %v3269 = vadd.f32 0.0, %v3268
      %v3270 = vpop.f32.mrb[0].mxu0
      %v3271 = vadd.f32 0.0, %v3270
      %3272 = vmatprep.mubr.bf16.mxu0 %v584
      %3273 = vmatmul.mubr.bf16.gmra.mrb[0].mxu0 %v583
      %v3274 = vpop.f32.mrb[0].mxu0
      %v3275 = vadd.f32 0.0, %v3274
      %v3276 = vpop.f32.mrb[0].mxu0
      %v3277 = vadd.f32 0.0, %v3276
      %v3278 = vpop.f32.mrb[0].mxu0
      %v3279 = vadd.f32 0.0, %v3278
      %v3280 = vpop.f32.mrb[0].mxu0
      %v3281 = vadd.f32 0.0, %v3280
      %3282 = vmatprep.mubr.bf16.mxu0 %v586
      %3283 = vmatmul.mubr.bf16.gmra.mrb[0].mxu0 %v585
      %v3284 = vpop.f32.mrb[0].mxu0
      %v3285 = vadd.f32 0.0, %v3284
      %v3286 = vpop.f32.mrb[0].mxu0
      %v3287 = vadd.f32 0.0, %v3286
      %v3288 = vpop.f32.mrb[0].mxu0
      %v3289 = vadd.f32 0.0, %v3288
      %v3290 = vpop.f32.mrb[0].mxu0
      %v3291 = vadd.f32 0.0, %v3290
      %3292 = vmatprep.mubr.bf16.mxu0 %v588
      %3293 = vmatmul.mubr.bf16.gmra.mrb[0].mxu0 %v587
      %v3294 = vpop.f32.mrb[0].mxu0
      %v3295 = vadd.f32 0.0, %v3294
      %v3296 = vpop.f32.mrb[0].mxu0
      %v3297 = vadd.f32 0.0, %v3296
      %v3298 = vpop.f32.mrb[0].mxu0
      %v3299 = vadd.f32 0.0, %v3298
      %v3300 = vpop.f32.mrb[0].mxu0
      %v3301 = vadd.f32 0.0, %v3300
      %3302 = vmatprep.mubr.bf16.mxu0 %v590
      %3303 = vmatmul.mubr.bf16.gmra.mrb[0].mxu0 %v589
      %v3304 = vpop.f32.mrb[0].mxu0
      %v3305 = vadd.f32 0.0, %v3304
      %v3306 = vpop.f32.mrb[0].mxu0
      %v3307 = vadd.f32 0.0, %v3306
      %v3308 = vpop.f32.mrb[0].mxu0
      %v3309 = vadd.f32 0.0, %v3308
      %v3310 = vpop.f32.mrb[0].mxu0
      %v3311 = vadd.f32 0.0, %v3310
      %3312 = vmatprep.mubr.bf16.mxu0 %v592
      %3313 = vmatmul.mubr.bf16.gmra.mrb[0].mxu0 %v591
      %v3314 = vpop.f32.mrb[0].mxu0
      %v3315 = vadd.f32 0.0, %v3314
      %v3316 = vpop.f32.mrb[0].mxu0
      %v3317 = vadd.f32 0.0, %v3316
      %v3318 = vpop.f32.mrb[0].mxu0
      %v3319 = vadd.f32 0.0, %v3318
      %v3320 = vpop.f32.mrb[0].mxu0
      %v3321 = vadd.f32 0.0, %v3320
      %3322 = vmatprep.mubr.bf16.mxu0 %v594
      %3323 = vmatmul.mubr.bf16.gmra.mrb[0].mxu0 %v593
      %v3324 = vpop.f32.mrb[0].mxu0
      %v3325 = vadd.f32 0.0, %v3324
      %v3326 = vpop.f32.mrb[0].mxu0
      %v3327 = vadd.f32 0.0, %v3326
      %v3328 = vpop.f32.mrb[0].mxu0
      %v3329 = vadd.f32 0.0, %v3328
      %v3330 = vpop.f32.mrb[0].mxu0
      %v3331 = vadd.f32 0.0, %v3330
      %3332 = vmatprep.mubr.bf16.mxu0 %v596
      %3333 = vmatmul.mubr.bf16.gmra.mrb[0].mxu0 %v595
      %v3334 = vpop.f32.mrb[0].mxu0
      %v3335 = vadd.f32 0.0, %v3334
      %v3336 = vpop.f32.mrb[0].mxu0
      %v3337 = vadd.f32 0.0, %v3336
      %v3338 = vpop.f32.mrb[0].mxu0
      %v3339 = vadd.f32 0.0, %v3338
      %v3340 = vpop.f32.mrb[0].mxu0
      %v3341 = vadd.f32 0.0, %v3340
      %3342 = vmatprep.mubr.bf16.mxu0 %v598
      %3343 = vmatmul.mubr.bf16.gmra.mrb[0].mxu0 %v597
      %v3344 = vpop.f32.mrb[0].mxu0
      %v3345 = vadd.f32 0.0, %v3344
      %v3346 = vpop.f32.mrb[0].mxu0
      %v3347 = vadd.f32 0.0, %v3346
      %v3348 = vpop.f32.mrb[0].mxu0
      %v3349 = vadd.f32 0.0, %v3348
      %v3350 = vpop.f32.mrb[0].mxu0
      %v3351 = vadd.f32 0.0, %v3350
      %3352 = vmatprep.mubr.bf16.mxu0 %v600
      %3353 = vmatmul.mubr.bf16.gmra.mrb[0].mxu0 %v599
      %v3354 = vpop.f32.mrb[0].mxu0
      %v3355 = vadd.f32 0.0, %v3354
      %v3356 = vpop.f32.mrb[0].mxu0
      %v3357 = vadd.f32 0.0, %v3356
      %v3358 = vpop.f32.mrb[0].mxu0
      %v3359 = vadd.f32 0.0, %v3358
      %v3360 = vpop.f32.mrb[0].mxu0
      %v3361 = vadd.f32 0.0, %v3360
      %3362 = vmatprep.mubr.bf16.mxu0 %v602
      %3363 = vmatmul.mubr.bf16.gmra.mrb[0].mxu0 %v601
      %v3364 = vpop.f32.mrb[0].mxu0
      %v3365 = vadd.f32 0.0, %v3364
      %v3366 = vpop.f32.mrb[0].mxu0
      %v3367 = vadd.f32 0.0, %v3366
      %v3368 = vpop.f32.mrb[0].mxu0
      %v3369 = vadd.f32 0.0, %v3368
      %v3370 = vpop.f32.mrb[0].mxu0
      %v3371 = vadd.f32 0.0, %v3370
      %3372 = vmatprep.mubr.bf16.mxu0 %v604
      %3373 = vmatmul.mubr.bf16.gmra.mrb[0].mxu0 %v603
      %v3374 = vpop.f32.mrb[0].mxu0
      %v3375 = vadd.f32 0.0, %v3374
      %v3376 = vpop.f32.mrb[0].mxu0
      %v3377 = vadd.f32 0.0, %v3376
      %v3378 = vpop.f32.mrb[0].mxu0
      %v3379 = vadd.f32 0.0, %v3378
      %v3380 = vpop.f32.mrb[0].mxu0
      %v3381 = vadd.f32 0.0, %v3380
      %3382 = vmatprep.mubr.bf16.mxu0 %v606
      %3383 = vmatmul.mubr.bf16.gmra.mrb[0].mxu0 %v605
      %v3384 = vpop.f32.mrb[0].mxu0
      %v3385 = vadd.f32 0.0, %v3384
      %v3386 = vpop.f32.mrb[0].mxu0
      %v3387 = vadd.f32 0.0, %v3386
      %v3388 = vpop.f32.mrb[0].mxu0
      %v3389 = vadd.f32 0.0, %v3388
      %v3390 = vpop.f32.mrb[0].mxu0
      %v3391 = vadd.f32 0.0, %v3390
      %3392 = vmatprep.mubr.bf16.mxu0 %v608
      %3393 = vmatmul.mubr.bf16.gmra.mrb[0].mxu0 %v607
      %v3394 = vpop.f32.mrb[0].mxu0
      %v3395 = vadd.f32 0.0, %v3394
      %v3396 = vpop.f32.mrb[0].mxu0
      %v3397 = vadd.f32 0.0, %v3396
      %v3398 = vpop.f32.mrb[0].mxu0
      %v3399 = vadd.f32 0.0, %v3398
      %v3400 = vpop.f32.mrb[0].mxu0
      %v3401 = vadd.f32 0.0, %v3400
      %3402 = vmatprep.mubr.bf16.mxu0 %v610
      %3403 = vmatmul.mubr.bf16.gmra.mrb[0].mxu0 %v609
      %v3404 = vpop.f32.mrb[0].mxu0
      %v3405 = vadd.f32 0.0, %v3404
      %v3406 = vpop.f32.mrb[0].mxu0
      %v3407 = vadd.f32 0.0, %v3406
      %v3408 = vpop.f32.mrb[0].mxu0
      %v3409 = vadd.f32 0.0, %v3408
      %v3410 = vpop.f32.mrb[0].mxu0
      %v3411 = vadd.f32 0.0, %v3410
      %3412 = vmatprep.mubr.bf16.mxu0 %v612
      %3413 = vmatmul.mubr.bf16.gmra.mrb[0].mxu0 %v611
      %v3414 = vpop.f32.mrb[0].mxu0
      %v3415 = vadd.f32 0.0, %v3414
      %v3416 = vpop.f32.mrb[0].mxu0
      %v3417 = vadd.f32 0.0, %v3416
      %v3418 = vpop.f32.mrb[0].mxu0
      %v3419 = vadd.f32 0.0, %v3418
      %v3420 = vpop.f32.mrb[0].mxu0
      %v3421 = vadd.f32 0.0, %v3420
      %3422 = vmatprep.mubr.bf16.mxu0 %v614
      %3423 = vmatmul.mubr.bf16.gmra.mrb[0].mxu0 %v613
      %v3424 = vpop.f32.mrb[0].mxu0
      %v3425 = vadd.f32 0.0, %v3424
      %v3426 = vpop.f32.mrb[0].mxu0
      %v3427 = vadd.f32 0.0, %v3426
      %v3428 = vpop.f32.mrb[0].mxu0
      %v3429 = vadd.f32 0.0, %v3428
      %v3430 = vpop.f32.mrb[0].mxu0
      %v3431 = vadd.f32 0.0, %v3430
      %3432 = vmatprep.mubr.bf16.mxu0 %v616
      %3433 = vmatmul.mubr.bf16.gmra.mrb[0].mxu0 %v615
      %v3434 = vpop.f32.mrb[0].mxu0
      %v3435 = vadd.f32 0.0, %v3434
      %v3436 = vpop.f32.mrb[0].mxu0
      %v3437 = vadd.f32 0.0, %v3436
      %v3438 = vpop.f32.mrb[0].mxu0
      %v3439 = vpop.f32.mrb[0].mxu0
      %v3440 = vadd.f32 0.0, %v3439
      %3441 = vmatprep.mubr.bf16.mxu0 %v618
      %3442 = vmatmul.mubr.bf16.gmra.mrb[0].mxu0 %v617
      %v3443 = vpop.f32.mrb[0].mxu0
      %v3444 = vpop.f32.mrb[0].mxu0
      %v3445 = vadd.f32 0.0, %v3444
      %v3446 = vpop.f32.mrb[0].mxu0
      %v3447 = vpop.f32.mrb[0].mxu0
      %v3448 = vadd.f32 0.0, %v3447
      %3449 = vmatprep.mubr.bf16.mxu0 %v620
      %3450 = vmatmul.mubr.bf16.gmra.mrb[0].mxu0 %v619
      %v3451 = vpop.f32.mrb[0].mxu0
      %v3452 = vpop.f32.mrb[0].mxu0
      %v3453 = vpop.f32.mrb[0].mxu0
      %v3454 = vpop.f32.mrb[0].mxu0
      %3455 = vmatprep.mubr.bf16.mxu0 %v622
      %3456 = vmatmul.mubr.bf16.gmra.mrb[0].mxu0 %v621
      %v3457 = vpop.f32.mrb[0].mxu0
      %v3458 = vpop.f32.mrb[0].mxu0
      %v3459 = vpop.f32.mrb[0].mxu0
      %v3460 = vpop.f32.mrb[0].mxu0
      %3461 = vmatprep.mubr.bf16.mxu0 %v624
      %3462 = vmatmul.mubr.bf16.gmra.mrb[0].mxu0 %v623
      %v3463 = vpop.f32.mrb[0].mxu0
      %v3464 = vpop.f32.mrb[0].mxu0
      %v3465 = vpop.f32.mrb[0].mxu0
      %v3466 = vpop.f32.mrb[0].mxu0
      %3467 = vmatprep.mubr.bf16.mxu0 %v626
      %3468 = vmatmul.mubr.bf16.gmra.mrb[0].mxu0 %v625
      %v3469 = vpop.f32.mrb[0].mxu0
      %v3470 = vpop.f32.mrb[0].mxu0
      %v3471 = vpop.f32.mrb[0].mxu0
      %v3472 = vpop.f32.mrb[0].mxu0
      %3473 = vdwg.mxu0
      %3474 = vmatprep.subr.bf16.mxu0 0
      %3475 = vmatpush1.bf16.msra.mxu0 %v3069
      %3476 = vmatprep.subr.bf16.mxu0 0
      %3477 = vmatpush1.bf16.msra.mxu0 %v3072
      %3478 = vmatprep.subr.bf16.mxu0 0
      %3479 = vmatpush1.bf16.msra.mxu0 %v3075
      %3480 = vmatprep.subr.bf16.mxu0 0
      %3481 = vmatpush1.bf16.msra.mxu0 %v3078
      %3482 = vmatprep.subr.bf16.mxu0 0
      %3483 = vmatpush1.bf16.msra.mxu0 %v3081
      %3484 = vmatprep.subr.bf16.mxu0 0
      %3485 = vmatpush1.bf16.msra.mxu0 %v3084
      %3486 = vmatprep.subr.bf16.mxu0 0
      %3487 = vmatpush1.bf16.msra.mxu0 %v3087
      %3488 = vmatprep.subr.bf16.mxu0 0
      %3489 = vmatpush1.bf16.msra.mxu0 %v3090
      %3490 = vmatprep.subr.bf16.mxu0 0
      %3491 = vmatpush1.bf16.msra.mxu0 %v3093
      %3492 = vmatprep.subr.bf16.mxu0 0
      %3493 = vmatpush1.bf16.msra.mxu0 %v3096
      %3494 = vmatprep.subr.bf16.mxu0 0
      %3495 = vmatpush1.bf16.msra.mxu0 %v3099
      %3496 = vmatprep.subr.bf16.mxu0 0
      %3497 = vmatpush1.bf16.msra.mxu0 %v3102
      %3498 = vmatprep.subr.bf16.mxu0 0
      %3499 = vmatpush1.bf16.msra.mxu0 %v3105
      %3500 = vmatprep.subr.bf16.mxu0 0
      %3501 = vmatpush1.bf16.msra.mxu0 %v3108
      %3502 = vmatprep.subr.bf16.mxu0 0
      %3503 = vmatpush1.bf16.msra.mxu0 %v3111
      %3504 = vmatprep.subr.bf16.mxu0 0
      %3505 = vmatpush1.bf16.msra.mxu0 %v3114
      %3506 = vmatprep.mubr.bf16.mxu0 %v568
      %3507 = vmatmul.mubr.bf16.gmra.mrb[0].mxu0 %v567
      %v3508 = vpop.f32.mrb[0].mxu0
      %v3509 = vpop.f32.mrb[0].mxu0
      %v3510 = vpop.f32.mrb[0].mxu0
      %v3511 = vpop.f32.mrb[0].mxu0
      %3512 = vmatprep.mubr.bf16.mxu0 %v570
      %3513 = vmatmul.mubr.bf16.gmra.mrb[0].mxu0 %v569
      %v3514 = vpop.f32.mrb[0].mxu0
      %v3515 = vpop.f32.mrb[0].mxu0
      %v3516 = vpop.f32.mrb[0].mxu0
      %v3517 = vpop.f32.mrb[0].mxu0
      %3518 = vmatprep.mubr.bf16.mxu0 %v572
      %3519 = vmatmul.mubr.bf16.gmra.mrb[0].mxu0 %v571
      %v3520 = vpop.f32.mrb[0].mxu0
      %v3521 = vpop.f32.mrb[0].mxu0
      %v3522 = vpop.f32.mrb[0].mxu0
      %v3523 = vpop.f32.mrb[0].mxu0
      %3524 = vmatprep.mubr.bf16.mxu0 %v574
      %3525 = vmatmul.mubr.bf16.gmra.mrb[0].mxu0 %v573
      %v3526 = vpop.f32.mrb[0].mxu0
      %v3527 = vadd.f32 0.0, %v3526
      %v3528 = vpop.f32.mrb[0].mxu0
      %v3529 = vpop.f32.mrb[0].mxu0
      %v3530 = vadd.f32 0.0, %v3529
      %v3531 = vpop.f32.mrb[0].mxu0
      %3532 = vmatprep.mubr.bf16.mxu0 %v576
      %3533 = vmatmul.mubr.bf16.gmra.mrb[0].mxu0 %v575
      %v3534 = vpop.f32.mrb[0].mxu0
      %v3535 = vadd.f32 0.0, %v3534
      %v3536 = vpop.f32.mrb[0].mxu0
      %v3537 = vpop.f32.mrb[0].mxu0
      %v3538 = vadd.f32 0.0, %v3537
      %v3539 = vpop.f32.mrb[0].mxu0
      %3540 = vmatprep.mubr.bf16.mxu0 %v578
      %3541 = vmatmul.mubr.bf16.gmra.mrb[0].mxu0 %v577
      %v3542 = vpop.f32.mrb[0].mxu0
      %v3543 = vadd.f32 0.0, %v3542
      %v3544 = vpop.f32.mrb[0].mxu0
      %v3545 = vpop.f32.mrb[0].mxu0
      %v3546 = vadd.f32 0.0, %v3545
      %v3547 = vpop.f32.mrb[0].mxu0
      %3548 = vmatprep.mubr.bf16.mxu0 %v580
      %3549 = vmatmul.mubr.bf16.gmra.mrb[0].mxu0 %v579
      %v3550 = vpop.f32.mrb[0].mxu0
      %v3551 = vadd.f32 0.0, %v3550
      %v3552 = vpop.f32.mrb[0].mxu0
      %v3553 = vpop.f32.mrb[0].mxu0
      %v3554 = vadd.f32 0.0, %v3553
      %v3555 = vpop.f32.mrb[0].mxu0
      %3556 = vmatprep.mubr.bf16.mxu0 %v582
      %3557 = vmatmul.mubr.bf16.gmra.mrb[0].mxu0 %v581
      %v3558 = vpop.f32.mrb[0].mxu0
      %v3559 = vadd.f32 0.0, %v3558
      %v3560 = vpop.f32.mrb[0].mxu0
      %v3561 = vpop.f32.mrb[0].mxu0
      %v3562 = vadd.f32 0.0, %v3561
      %v3563 = vpop.f32.mrb[0].mxu0
      %3564 = vmatprep.mubr.bf16.mxu0 %v584
      %3565 = vmatmul.mubr.bf16.gmra.mrb[0].mxu0 %v583
      %v3566 = vpop.f32.mrb[0].mxu0
      %v3567 = vadd.f32 0.0, %v3566
      %v3568 = vpop.f32.mrb[0].mxu0
      %v3569 = vpop.f32.mrb[0].mxu0
      %v3570 = vadd.f32 0.0, %v3569
      %v3571 = vpop.f32.mrb[0].mxu0
      %3572 = vmatprep.mubr.bf16.mxu0 %v586
      %3573 = vmatmul.mubr.bf16.gmra.mrb[0].mxu0 %v585
      %v3574 = vpop.f32.mrb[0].mxu0
      %v3575 = vadd.f32 0.0, %v3574
      %v3576 = vpop.f32.mrb[0].mxu0
      %v3577 = vpop.f32.mrb[0].mxu0
      %v3578 = vadd.f32 0.0, %v3577
      %v3579 = vpop.f32.mrb[0].mxu0
      %3580 = vmatprep.mubr.bf16.mxu0 %v588
      %3581 = vmatmul.mubr.bf16.gmra.mrb[0].mxu0 %v587
      %v3582 = vpop.f32.mrb[0].mxu0
      %v3583 = vadd.f32 0.0, %v3582
      %v3584 = vpop.f32.mrb[0].mxu0
      %v3585 = vpop.f32.mrb[0].mxu0
      %v3586 = vadd.f32 0.0, %v3585
      %v3587 = vpop.f32.mrb[0].mxu0
      %3588 = vmatprep.mubr.bf16.mxu0 %v590
      %3589 = vmatmul.mubr.bf16.gmra.mrb[0].mxu0 %v589
      %v3590 = vpop.f32.mrb[0].mxu0
      %v3591 = vadd.f32 0.0, %v3590
      %v3592 = vpop.f32.mrb[0].mxu0
      %v3593 = vpop.f32.mrb[0].mxu0
      %v3594 = vadd.f32 0.0, %v3593
      %v3595 = vpop.f32.mrb[0].mxu0
      %3596 = vmatprep.mubr.bf16.mxu0 %v592
      %3597 = vmatmul.mubr.bf16.gmra.mrb[0].mxu0 %v591
      %v3598 = vpop.f32.mrb[0].mxu0
      %v3599 = vadd.f32 0.0, %v3598
      %v3600 = vpop.f32.mrb[0].mxu0
      %v3601 = vpop.f32.mrb[0].mxu0
      %v3602 = vadd.f32 0.0, %v3601
      %v3603 = vpop.f32.mrb[0].mxu0
      %3604 = vmatprep.mubr.bf16.mxu0 %v594
      %3605 = vmatmul.mubr.bf16.gmra.mrb[0].mxu0 %v593
      %v3606 = vpop.f32.mrb[0].mxu0
      %v3607 = vadd.f32 0.0, %v3606
      %v3608 = vpop.f32.mrb[0].mxu0
      %v3609 = vpop.f32.mrb[0].mxu0
      %v3610 = vadd.f32 0.0, %v3609
      %v3611 = vpop.f32.mrb[0].mxu0
      %3612 = vmatprep.mubr.bf16.mxu0 %v596
      %3613 = vmatmul.mubr.bf16.gmra.mrb[0].mxu0 %v595
      %v3614 = vpop.f32.mrb[0].mxu0
      %v3615 = vadd.f32 0.0, %v3614
      %v3616 = vpop.f32.mrb[0].mxu0
      %v3617 = vpop.f32.mrb[0].mxu0
      %v3618 = vadd.f32 0.0, %v3617
      %v3619 = vpop.f32.mrb[0].mxu0
      %3620 = vmatprep.mubr.bf16.mxu0 %v598
      %3621 = vmatmul.mubr.bf16.gmra.mrb[0].mxu0 %v597
      %v3622 = vpop.f32.mrb[0].mxu0
      %v3623 = vadd.f32 0.0, %v3622
      %v3624 = vpop.f32.mrb[0].mxu0
      %v3625 = vpop.f32.mrb[0].mxu0
      %v3626 = vadd.f32 0.0, %v3625
      %v3627 = vpop.f32.mrb[0].mxu0
      %3628 = vmatprep.mubr.bf16.mxu0 %v600
      %3629 = vmatmul.mubr.bf16.gmra.mrb[0].mxu0 %v599
      %v3630 = vpop.f32.mrb[0].mxu0
      %v3631 = vadd.f32 0.0, %v3630
      %v3632 = vpop.f32.mrb[0].mxu0
      %v3633 = vpop.f32.mrb[0].mxu0
      %v3634 = vadd.f32 0.0, %v3633
      %v3635 = vpop.f32.mrb[0].mxu0
      %3636 = vmatprep.mubr.bf16.mxu0 %v602
      %3637 = vmatmul.mubr.bf16.gmra.mrb[0].mxu0 %v601
      %v3638 = vpop.f32.mrb[0].mxu0
      %v3639 = vadd.f32 0.0, %v3638
      %v3640 = vpop.f32.mrb[0].mxu0
      %v3641 = vpop.f32.mrb[0].mxu0
      %v3642 = vadd.f32 0.0, %v3641
      %v3643 = vpop.f32.mrb[0].mxu0
      %3644 = vmatprep.mubr.bf16.mxu0 %v604
      %3645 = vmatmul.mubr.bf16.gmra.mrb[0].mxu0 %v603
      %v3646 = vpop.f32.mrb[0].mxu0
      %v3647 = vadd.f32 0.0, %v3646
      %v3648 = vpop.f32.mrb[0].mxu0
      %v3649 = vpop.f32.mrb[0].mxu0
      %v3650 = vadd.f32 0.0, %v3649
      %v3651 = vpop.f32.mrb[0].mxu0
      %3652 = vmatprep.mubr.bf16.mxu0 %v606
      %3653 = vmatmul.mubr.bf16.gmra.mrb[0].mxu0 %v605
      %v3654 = vpop.f32.mrb[0].mxu0
      %v3655 = vadd.f32 0.0, %v3654
      %v3656 = vpop.f32.mrb[0].mxu0
      %v3657 = vpop.f32.mrb[0].mxu0
      %v3658 = vadd.f32 0.0, %v3657
      %v3659 = vpop.f32.mrb[0].mxu0
      %3660 = vmatprep.mubr.bf16.mxu0 %v608
      %3661 = vmatmul.mubr.bf16.gmra.mrb[0].mxu0 %v607
      %v3662 = vpop.f32.mrb[0].mxu0
      %v3663 = vadd.f32 0.0, %v3662
      %v3664 = vpop.f32.mrb[0].mxu0
      %v3665 = vpop.f32.mrb[0].mxu0
      %v3666 = vadd.f32 0.0, %v3665
      %v3667 = vpop.f32.mrb[0].mxu0
      %3668 = vmatprep.mubr.bf16.mxu0 %v610
      %3669 = vmatmul.mubr.bf16.gmra.mrb[0].mxu0 %v609
      %v3670 = vpop.f32.mrb[0].mxu0
      %v3671 = vadd.f32 0.0, %v3670
      %v3672 = vpop.f32.mrb[0].mxu0
      %v3673 = vpop.f32.mrb[0].mxu0
      %v3674 = vadd.f32 0.0, %v3673
      %v3675 = vpop.f32.mrb[0].mxu0
      %3676 = vmatprep.mubr.bf16.mxu0 %v612
      %3677 = vmatmul.mubr.bf16.gmra.mrb[0].mxu0 %v611
      %v3678 = vpop.f32.mrb[0].mxu0
      %v3679 = vadd.f32 0.0, %v3678
      %v3680 = vpop.f32.mrb[0].mxu0
      %v3681 = vpop.f32.mrb[0].mxu0
      %v3682 = vadd.f32 0.0, %v3681
      %v3683 = vpop.f32.mrb[0].mxu0
      %3684 = vmatprep.mubr.bf16.mxu0 %v614
      %3685 = vmatmul.mubr.bf16.gmra.mrb[0].mxu0 %v613
      %v3686 = vpop.f32.mrb[0].mxu0
      %v3687 = vadd.f32 0.0, %v3686
      %v3688 = vpop.f32.mrb[0].mxu0
      %v3689 = vpop.f32.mrb[0].mxu0
      %v3690 = vadd.f32 0.0, %v3689
      %v3691 = vpop.f32.mrb[0].mxu0
      %3692 = vmatprep.mubr.bf16.mxu0 %v616
      %3693 = vmatmul.mubr.bf16.gmra.mrb[0].mxu0 %v615
      %v3694 = vpop.f32.mrb[0].mxu0
      %v3695 = vadd.f32 0.0, %v3694
      %v3696 = vpop.f32.mrb[0].mxu0
      %v3697 = vpop.f32.mrb[0].mxu0
      %v3698 = vadd.f32 0.0, %v3697
      %v3699 = vpop.f32.mrb[0].mxu0
      %3700 = vmatprep.mubr.bf16.mxu0 %v618
      %3701 = vmatmul.mubr.bf16.gmra.mrb[0].mxu0 %v617
      %v3702 = vpop.f32.mrb[0].mxu0
      %v3703 = vadd.f32 0.0, %v3702
      %v3704 = vpop.f32.mrb[0].mxu0
      %v3705 = vpop.f32.mrb[0].mxu0
      %v3706 = vadd.f32 0.0, %v3705
      %v3707 = vpop.f32.mrb[0].mxu0
      %3708 = vmatprep.mubr.bf16.mxu0 %v620
      %3709 = vmatmul.mubr.bf16.gmra.mrb[0].mxu0 %v619
      %v3710 = vpop.f32.mrb[0].mxu0
      %v3711 = vadd.f32 0.0, %v3710
      %v3712 = vpop.f32.mrb[0].mxu0
      %v3713 = vpop.f32.mrb[0].mxu0
      %v3714 = vadd.f32 0.0, %v3713
      %v3715 = vpop.f32.mrb[0].mxu0
      %3716 = vmatprep.mubr.bf16.mxu0 %v622
      %3717 = vmatmul.mubr.bf16.gmra.mrb[0].mxu0 %v621
      %v3718 = vpop.f32.mrb[0].mxu0
      %v3719 = vadd.f32 0.0, %v3718
      %v3720 = vpop.f32.mrb[0].mxu0
      %v3721 = vpop.f32.mrb[0].mxu0
      %v3722 = vpop.f32.mrb[0].mxu0
      %3723 = vmatprep.mubr.bf16.mxu0 %v624
      %3724 = vmatmul.mubr.bf16.gmra.mrb[0].mxu0 %v623
      %v3725 = vpop.f32.mrb[0].mxu0
      %v3726 = vpop.f32.mrb[0].mxu0
      %v3727 = vpop.f32.mrb[0].mxu0
      %v3728 = vpop.f32.mrb[0].mxu0
      %3729 = vmatprep.mubr.bf16.mxu0 %v626
      %3730 = vmatmul.mubr.bf16.gmra.mrb[0].mxu0 %v625
      %v3731 = vpop.f32.mrb[0].mxu0
      %v3732 = vpop.f32.mrb[0].mxu0
      %v3733 = vpop.f32.mrb[0].mxu0
      %v3734 = vpop.f32.mrb[0].mxu0
      %3735 = vdwg.mxu0
      %v3736 = vadd.f32 %v3198, %v3211
      %v3737 = vadd.f32 %v3201, %v3217
      %v3738 = vadd.f32 %v3206, %v3221
      %v3739 = vadd.f32 %v3209, %v3227
      %v3740 = vadd.f32 %v3215, %v3231
      %v3741 = vadd.f32 %v3219, %v3237
      %v3742 = vadd.f32 %v3225, %v3241
      %v3743 = vadd.f32 %v3229, %v3247
      %v3744 = vadd.f32 %v3235, %v3251
      %v3745 = vadd.f32 %v3239, %v3257
      %v3746 = vadd.f32 %v3245, %v3261
      %v3747 = vadd.f32 %v3249, %v3267
      %v3748 = vadd.f32 %v3255, %v3271
      %v3749 = vadd.f32 %v3259, %v3277
      %v3750 = vadd.f32 %v3265, %v3281
      %v3751 = vadd.f32 %v3269, %v3287
      %v3752 = vadd.f32 %v3275, %v3291
      %v3753 = vadd.f32 %v3279, %v3297
      %v3754 = vadd.f32 %v3285, %v3301
      %v3755 = vadd.f32 %v3289, %v3307
      %v3756 = vadd.f32 %v3295, %v3311
      %v3757 = vadd.f32 %v3299, %v3317
      %v3758 = vadd.f32 %v3305, %v3321
      %v3759 = vadd.f32 %v3309, %v3327
      %v3760 = vadd.f32 %v3315, %v3331
      %v3761 = vadd.f32 %v3319, %v3337
      %v3762 = vadd.f32 %v3325, %v3341
      %v3763 = vadd.f32 %v3329, %v3347
      %v3764 = vadd.f32 %v3335, %v3351
      %v3765 = vadd.f32 %v3339, %v3357
      %v3766 = vadd.f32 %v3345, %v3361
      %v3767 = vadd.f32 %v3349, %v3367
      %v3768 = vadd.f32 %v3355, %v3371
      %v3769 = vadd.f32 %v3359, %v3377
      %v3770 = vadd.f32 %v3365, %v3381
      %v3771 = vadd.f32 %v3369, %v3387
      %v3772 = vadd.f32 %v3375, %v3391
      %v3773 = vadd.f32 %v3379, %v3397
      %v3774 = vadd.f32 %v3385, %v3401
      %v3775 = vadd.f32 %v3389, %v3407
      %v3776 = vadd.f32 %v3395, %v3411
      %v3777 = vadd.f32 %v3399, %v3417
      %v3778 = vadd.f32 %v3405, %v3421
      %v3779 = vadd.f32 %v3409, %v3427
      %v3780 = vadd.f32 %v3415, %v3431
      %v3781 = vadd.f32 %v3419, %v3437
      %v3782 = vadd.f32 %v3425, %v3440
      %v3783 = vadd.f32 %v3429, %v3445
      %v3784 = vadd.f32 %v3435, %v3448
      %v3785 = vadd.f32 %v3736, %v3527
      %v3786 = vadd.f32 %v3737, %v3530
      %v3787 = vadd.f32 %v3738, %v3535
      %v3788 = vadd.f32 %v3739, %v3538
      %v3789 = vadd.f32 %v3740, %v3543
      %v3790 = vadd.f32 %v3741, %v3546
      %v3791 = vadd.f32 %v3742, %v3551
      %v3792 = vadd.f32 %v3743, %v3554
      %v3793 = vadd.f32 %v3744, %v3559
      %v3794 = vadd.f32 %v3745, %v3562
      %v3795 = vadd.f32 %v3746, %v3567
      %v3796 = vadd.f32 %v3747, %v3570
      %v3797 = vadd.f32 %v3748, %v3575
      %v3798 = vadd.f32 %v3749, %v3578
      %v3799 = vadd.f32 %v3750, %v3583
      %v3800 = vadd.f32 %v3751, %v3586
      %v3801 = vadd.f32 %v3752, %v3591
      %v3802 = vadd.f32 %v3753, %v3594
      %v3803 = vadd.f32 %v3754, %v3599
      %v3804 = vadd.f32 %v3755, %v3602
      %v3805 = vadd.f32 %v3756, %v3607
      %v3806 = vadd.f32 %v3757, %v3610
      %v3807 = vadd.f32 %v3758, %v3615
      %v3808 = vadd.f32 %v3759, %v3618
      %v3809 = vadd.f32 %v3760, %v3623
      %v3810 = vadd.f32 %v3761, %v3626
      %v3811 = vadd.f32 %v3762, %v3631
      %v3812 = vadd.f32 %v3763, %v3634
      %v3813 = vadd.f32 %v3764, %v3639
      %v3814 = vadd.f32 %v3765, %v3642
      %v3815 = vadd.f32 %v3766, %v3647
      %v3816 = vadd.f32 %v3767, %v3650
      %v3817 = vadd.f32 %v3768, %v3655
      %v3818 = vadd.f32 %v3769, %v3658
      %v3819 = vadd.f32 %v3770, %v3663
      %v3820 = vadd.f32 %v3771, %v3666
      %v3821 = vadd.f32 %v3772, %v3671
      %v3822 = vadd.f32 %v3773, %v3674
      %v3823 = vadd.f32 %v3774, %v3679
      %v3824 = vadd.f32 %v3775, %v3682
      %v3825 = vadd.f32 %v3776, %v3687
      %v3826 = vadd.f32 %v3777, %v3690
      %v3827 = vadd.f32 %v3778, %v3695
      %v3828 = vadd.f32 %v3779, %v3698
      %v3829 = vadd.f32 %v3780, %v3703
      %v3830 = vadd.f32 %v3781, %v3706
      %v3831 = vadd.f32 %v3782, %v3711
      %v3832 = vadd.f32 %v3783, %v3714
      %v3833 = vadd.f32 %v3784, %v3719
      %vm3883 = vcmask 1045504
      %v3884 = vrot.slane %v3785, 2
      %v3885 = vrot.slane %v3786, 2
      %v3886 = vsel %vm3883, %v3884, %v3885
      %v3887 = vrot.slane %v3787, 2
      %v3888 = vsel %vm3883, %v3885, %v3887
      %v3889 = vrot.slane %v3788, 2
      %v3890 = vsel %vm3883, %v3887, %v3889
      %v3891 = vrot.slane %v3789, 2
      %v3892 = vsel %vm3883, %v3889, %v3891
      %v3893 = vrot.slane %v3790, 2
      %v3894 = vsel %vm3883, %v3891, %v3893
      %v3895 = vrot.slane %v3791, 2
      %v3896 = vsel %vm3883, %v3893, %v3895
      %v3897 = vrot.slane %v3792, 2
      %v3898 = vsel %vm3883, %v3895, %v3897
      %v3899 = vrot.slane %v3793, 2
      %v3900 = vsel %vm3883, %v3897, %v3899
      %v3901 = vrot.slane %v3794, 2
      %v3902 = vsel %vm3883, %v3899, %v3901
      %v3903 = vrot.slane %v3795, 2
      %v3904 = vsel %vm3883, %v3901, %v3903
      %v3905 = vrot.slane %v3796, 2
      %v3906 = vsel %vm3883, %v3903, %v3905
      %v3907 = vrot.slane %v3797, 2
      %v3908 = vsel %vm3883, %v3905, %v3907
      %v3909 = vrot.slane %v3798, 2
      %v3910 = vsel %vm3883, %v3907, %v3909
      %v3911 = vrot.slane %v3799, 2
      %v3912 = vsel %vm3883, %v3909, %v3911
      %v3913 = vrot.slane %v3800, 2
      %v3914 = vsel %vm3883, %v3911, %v3913
      %v3915 = vrot.slane %v3801, 2
      %v3916 = vsel %vm3883, %v3913, %v3915
      %v3917 = vrot.slane %v3802, 2
      %v3918 = vsel %vm3883, %v3915, %v3917
      %v3919 = vrot.slane %v3803, 2
      %v3920 = vsel %vm3883, %v3917, %v3919
      %v3921 = vrot.slane %v3804, 2
      %v3922 = vsel %vm3883, %v3919, %v3921
      %v3923 = vrot.slane %v3805, 2
      %v3924 = vsel %vm3883, %v3921, %v3923
      %v3925 = vrot.slane %v3806, 2
      %v3926 = vsel %vm3883, %v3923, %v3925
      %v3927 = vrot.slane %v3807, 2
      %v3928 = vsel %vm3883, %v3925, %v3927
      %v3929 = vrot.slane %v3808, 2
      %v3930 = vsel %vm3883, %v3927, %v3929
      %v3931 = vrot.slane %v3809, 2
      %v3932 = vsel %vm3883, %v3929, %v3931
      %v3933 = vrot.slane %v3810, 2
      %v3934 = vsel %vm3883, %v3931, %v3933
      %v3935 = vrot.slane %v3811, 2
      %v3936 = vsel %vm3883, %v3933, %v3935
      %v3937 = vrot.slane %v3812, 2
      %v3938 = vsel %vm3883, %v3935, %v3937
      %v3939 = vrot.slane %v3813, 2
      %v3940 = vsel %vm3883, %v3937, %v3939
      %v3941 = vrot.slane %v3814, 2
      %v3942 = vsel %vm3883, %v3939, %v3941
      %v3943 = vrot.slane %v3815, 2
      %v3944 = vsel %vm3883, %v3941, %v3943
      %v3945 = vrot.slane %v3816, 2
      %v3946 = vsel %vm3883, %v3943, %v3945
      %v3947 = vrot.slane %v3817, 2
      %v3948 = vsel %vm3883, %v3945, %v3947
      %v3949 = vrot.slane %v3818, 2
      %v3950 = vsel %vm3883, %v3947, %v3949
      %v3951 = vrot.slane %v3819, 2
      %v3952 = vsel %vm3883, %v3949, %v3951
      %v3953 = vrot.slane %v3820, 2
      %v3954 = vsel %vm3883, %v3951, %v3953
      %v3955 = vrot.slane %v3821, 2
      %v3956 = vsel %vm3883, %v3953, %v3955
      %v3957 = vrot.slane %v3822, 2
      %v3958 = vsel %vm3883, %v3955, %v3957
      %v3959 = vrot.slane %v3823, 2
      %v3960 = vsel %vm3883, %v3957, %v3959
      %v3961 = vrot.slane %v3824, 2
      %v3962 = vsel %vm3883, %v3959, %v3961
      %v3963 = vrot.slane %v3825, 2
      %v3964 = vsel %vm3883, %v3961, %v3963
      %v3965 = vrot.slane %v3826, 2
      %v3966 = vsel %vm3883, %v3963, %v3965
      %v3967 = vrot.slane %v3827, 2
      %v3968 = vsel %vm3883, %v3965, %v3967
      %v3969 = vrot.slane %v3828, 2
      %v3970 = vsel %vm3883, %v3967, %v3969
      %v3971 = vrot.slane %v3829, 2
      %v3972 = vsel %vm3883, %v3969, %v3971
      %v3973 = vrot.slane %v3830, 2
      %v3974 = vsel %vm3883, %v3971, %v3973
      %v3975 = vrot.slane %v3831, 2
      %v3976 = vsel %vm3883, %v3973, %v3975
      %v3977 = vrot.slane %v3832, 2
      %v3978 = vsel %vm3883, %v3975, %v3977
      %v3979 = vrot.slane %v3833, 2
      %v3980 = vsel %vm3883, %v3977, %v3979
      %v4029 = vadd.f32 %v2795, %v3886
      %v4030 = vadd.f32 %v2796, %v3888
      %v4031 = vadd.f32 %v2797, %v3890
      %v4032 = vadd.f32 %v2798, %v3892
      %v4033 = vadd.f32 %v2799, %v3894
      %v4034 = vadd.f32 %v2800, %v3896
      %v4035 = vadd.f32 %v2801, %v3898
      %v4036 = vadd.f32 %v2802, %v3900
      %v4037 = vadd.f32 %v2803, %v3902
      %v4038 = vadd.f32 %v2804, %v3904
      %v4039 = vadd.f32 %v2805, %v3906
      %v4040 = vadd.f32 %v2806, %v3908
      %v4041 = vadd.f32 %v2807, %v3910
      %v4042 = vadd.f32 %v2808, %v3912
      %v4043 = vadd.f32 %v2809, %v3914
      %v4044 = vadd.f32 %v2810, %v3916
      %v4045 = vadd.f32 %v2811, %v3918
      %v4046 = vadd.f32 %v2812, %v3920
      %v4047 = vadd.f32 %v2813, %v3922
      %v4048 = vadd.f32 %v2814, %v3924
      %v4049 = vadd.f32 %v2815, %v3926
      %v4050 = vadd.f32 %v2816, %v3928
      %v4051 = vadd.f32 %v2817, %v3930
      %v4052 = vadd.f32 %v2818, %v3932
      %v4053 = vadd.f32 %v2819, %v3934
      %v4054 = vadd.f32 %v2820, %v3936
      %v4055 = vadd.f32 %v2821, %v3938
      %v4056 = vadd.f32 %v2822, %v3940
      %v4057 = vadd.f32 %v2823, %v3942
      %v4058 = vadd.f32 %v2824, %v3944
      %v4059 = vadd.f32 %v2825, %v3946
      %v4060 = vadd.f32 %v2826, %v3948
      %v4061 = vadd.f32 %v2827, %v3950
      %v4062 = vadd.f32 %v2828, %v3952
      %v4063 = vadd.f32 %v2829, %v3954
      %v4064 = vadd.f32 %v2830, %v3956
      %v4065 = vadd.f32 %v2831, %v3958
      %v4066 = vadd.f32 %v2832, %v3960
      %v4067 = vadd.f32 %v2833, %v3962
      %v4068 = vadd.f32 %v2834, %v3964
      %v4069 = vadd.f32 %v2835, %v3966
      %v4070 = vadd.f32 %v2836, %v3968
      %v4071 = vadd.f32 %v2837, %v3970
      %v4072 = vadd.f32 %v2838, %v3972
      %v4073 = vadd.f32 %v2839, %v3974
      %v4074 = vadd.f32 %v2840, %v3976
      %v4075 = vadd.f32 %v2841, %v3978
      %v4076 = vadd.f32 %v2842, %v3980
      %v4077 = vld [vmem:[%s2] sm:$0x1]
      %v4079 = vlaneseq
      %v4080 = vshrl.u32 %v4079, 7
      %v4081 = vsub.s32 0, %v4080
      %v4082 = vrot.slane %v4077, %v4081
      %v4084 = vadd.f32 %v4029, %v4082
      %v4085 = vadd.f32 %v4030, %v4082
      %v4086 = vadd.f32 %v4031, %v4082
      %v4087 = vadd.f32 %v4032, %v4082
      %v4088 = vadd.f32 %v4033, %v4082
      %v4089 = vadd.f32 %v4034, %v4082
      %v4090 = vadd.f32 %v4035, %v4082
      %v4091 = vadd.f32 %v4036, %v4082
      %v4092 = vadd.f32 %v4037, %v4082
      %v4093 = vadd.f32 %v4038, %v4082
      %v4094 = vadd.f32 %v4039, %v4082
      %v4095 = vadd.f32 %v4040, %v4082
      %v4096 = vadd.f32 %v4041, %v4082
      %v4097 = vadd.f32 %v4042, %v4082
      %v4098 = vadd.f32 %v4043, %v4082
      %v4099 = vadd.f32 %v4044, %v4082
      %v4100 = vadd.f32 %v4045, %v4082
      %v4101 = vadd.f32 %v4046, %v4082
      %v4102 = vadd.f32 %v4047, %v4082
      %v4103 = vadd.f32 %v4048, %v4082
      %v4104 = vadd.f32 %v4049, %v4082
      %v4105 = vadd.f32 %v4050, %v4082
      %v4106 = vadd.f32 %v4051, %v4082
      %v4107 = vadd.f32 %v4052, %v4082
      %v4108 = vadd.f32 %v4053, %v4082
      %v4109 = vadd.f32 %v4054, %v4082
      %v4110 = vadd.f32 %v4055, %v4082
      %v4111 = vadd.f32 %v4056, %v4082
      %v4112 = vadd.f32 %v4057, %v4082
      %v4113 = vadd.f32 %v4058, %v4082
      %v4114 = vadd.f32 %v4059, %v4082
      %v4115 = vadd.f32 %v4060, %v4082
      %v4116 = vadd.f32 %v4061, %v4082
      %v4117 = vadd.f32 %v4062, %v4082
      %v4118 = vadd.f32 %v4063, %v4082
      %v4119 = vadd.f32 %v4064, %v4082
      %v4120 = vadd.f32 %v4065, %v4082
      %v4121 = vadd.f32 %v4066, %v4082
      %v4122 = vadd.f32 %v4067, %v4082
      %v4123 = vadd.f32 %v4068, %v4082
      %v4124 = vadd.f32 %v4069, %v4082
      %v4125 = vadd.f32 %v4070, %v4082
      %v4126 = vadd.f32 %v4071, %v4082
      %v4127 = vadd.f32 %v4072, %v4082
      %v4128 = vadd.f32 %v4073, %v4082
      %v4129 = vadd.f32 %v4074, %v4082
      %v4130 = vadd.f32 %v4075, %v4082
      %v4131 = vadd.f32 %v4076, %v4082
      %vm4132 = vcmp.gt.f32.partialorder %v4084, 0.0
      %vm4133 = vcmp.gt.f32.partialorder %v4085, 0.0
      %vm4134 = vcmp.gt.f32.partialorder %v4086, 0.0
      %vm4135 = vcmp.gt.f32.partialorder %v4087, 0.0
      %vm4136 = vcmp.gt.f32.partialorder %v4088, 0.0
      %vm4137 = vcmp.gt.f32.partialorder %v4089, 0.0
      %vm4138 = vcmp.gt.f32.partialorder %v4090, 0.0
      %vm4139 = vcmp.gt.f32.partialorder %v4091, 0.0
      %vm4140 = vcmp.gt.f32.partialorder %v4092, 0.0
      %vm4141 = vcmp.gt.f32.partialorder %v4093, 0.0
      %vm4142 = vcmp.gt.f32.partialorder %v4094, 0.0
      %vm4143 = vcmp.gt.f32.partialorder %v4095, 0.0
      %vm4144 = vcmp.gt.f32.partialorder %v4096, 0.0
      %vm4145 = vcmp.gt.f32.partialorder %v4097, 0.0
      %vm4146 = vcmp.gt.f32.partialorder %v4098, 0.0
      %vm4147 = vcmp.gt.f32.partialorder %v4099, 0.0
      %vm4148 = vcmp.gt.f32.partialorder %v4100, 0.0
      %vm4149 = vcmp.gt.f32.partialorder %v4101, 0.0
      %vm4150 = vcmp.gt.f32.partialorder %v4102, 0.0
      %vm4151 = vcmp.gt.f32.partialorder %v4103, 0.0
      %vm4152 = vcmp.gt.f32.partialorder %v4104, 0.0
      %vm4153 = vcmp.gt.f32.partialorder %v4105, 0.0
      %vm4154 = vcmp.gt.f32.partialorder %v4106, 0.0
      %vm4155 = vcmp.gt.f32.partialorder %v4107, 0.0
      %vm4156 = vcmp.gt.f32.partialorder %v4108, 0.0
      %vm4157 = vcmp.gt.f32.partialorder %v4109, 0.0
      %vm4158 = vcmp.gt.f32.partialorder %v4110, 0.0
      %vm4159 = vcmp.gt.f32.partialorder %v4111, 0.0
      %vm4160 = vcmp.gt.f32.partialorder %v4112, 0.0
      %vm4161 = vcmp.gt.f32.partialorder %v4113, 0.0
      %vm4162 = vcmp.gt.f32.partialorder %v4114, 0.0
      %vm4163 = vcmp.gt.f32.partialorder %v4115, 0.0
      %vm4164 = vcmp.gt.f32.partialorder %v4116, 0.0
      %vm4165 = vcmp.gt.f32.partialorder %v4117, 0.0
      %vm4166 = vcmp.gt.f32.partialorder %v4118, 0.0
      %vm4167 = vcmp.gt.f32.partialorder %v4119, 0.0
      %vm4168 = vcmp.gt.f32.partialorder %v4120, 0.0
      %vm4169 = vcmp.gt.f32.partialorder %v4121, 0.0
      %vm4170 = vcmp.gt.f32.partialorder %v4122, 0.0
      %vm4171 = vcmp.gt.f32.partialorder %v4123, 0.0
      %vm4172 = vcmp.gt.f32.partialorder %v4124, 0.0
      %vm4173 = vcmp.gt.f32.partialorder %v4125, 0.0
      %vm4174 = vcmp.gt.f32.partialorder %v4126, 0.0
      %vm4175 = vcmp.gt.f32.partialorder %v4127, 0.0
      %vm4176 = vcmp.gt.f32.partialorder %v4128, 0.0
      %vm4177 = vcmp.gt.f32.partialorder %v4129, 0.0
      %vm4178 = vcmp.gt.f32.partialorder %v4130, 0.0
      %vm4179 = vcmp.gt.f32.partialorder %v4131, 0.0
      %v4180 = vmul.f32 %v4084, 0.01
      %v4181 = vmul.f32 %v4085, 0.01
      %v4182 = vmul.f32 %v4086, 0.01
      %v4183 = vmul.f32 %v4087, 0.01
      %v4184 = vmul.f32 %v4088, 0.01
      %v4185 = vmul.f32 %v4089, 0.01
      %v4186 = vmul.f32 %v4090, 0.01
      %v4187 = vmul.f32 %v4091, 0.01
      %v4188 = vmul.f32 %v4092, 0.01
      %v4189 = vmul.f32 %v4093, 0.01
      %v4190 = vmul.f32 %v4094, 0.01
      %v4191 = vmul.f32 %v4095, 0.01
      %v4192 = vmul.f32 %v4096, 0.01
      %v4193 = vmul.f32 %v4097, 0.01
      %v4194 = vmul.f32 %v4098, 0.01
      %v4195 = vmul.f32 %v4099, 0.01
      %v4196 = vmul.f32 %v4100, 0.01
      %v4197 = vmul.f32 %v4101, 0.01
      %v4198 = vmul.f32 %v4102, 0.01
      %v4199 = vmul.f32 %v4103, 0.01
      %v4200 = vmul.f32 %v4104, 0.01
      %v4201 = vmul.f32 %v4105, 0.01
      %v4202 = vmul.f32 %v4106, 0.01
      %v4203 = vmul.f32 %v4107, 0.01
      %v4204 = vmul.f32 %v4108, 0.01
      %v4205 = vmul.f32 %v4109, 0.01
      %v4206 = vmul.f32 %v4110, 0.01
      %v4207 = vmul.f32 %v4111, 0.01
      %v4208 = vmul.f32 %v4112, 0.01
      %v4209 = vmul.f32 %v4113, 0.01
      %v4210 = vmul.f32 %v4114, 0.01
      %v4211 = vmul.f32 %v4115, 0.01
      %v4212 = vmul.f32 %v4116, 0.01
      %v4213 = vmul.f32 %v4117, 0.01
      %v4214 = vmul.f32 %v4118, 0.01
      %v4215 = vmul.f32 %v4119, 0.01
      %v4216 = vmul.f32 %v4120, 0.01
      %v4217 = vmul.f32 %v4121, 0.01
      %v4218 = vmul.f32 %v4122, 0.01
      %v4219 = vmul.f32 %v4123, 0.01
      %v4220 = vmul.f32 %v4124, 0.01
      %v4221 = vmul.f32 %v4125, 0.01
      %v4222 = vmul.f32 %v4126, 0.01
      %v4223 = vmul.f32 %v4127, 0.01
      %v4224 = vmul.f32 %v4128, 0.01
      %v4225 = vmul.f32 %v4129, 0.01
      %v4226 = vmul.f32 %v4130, 0.01
      %v4227 = vmul.f32 %v4131, 0.01
      %v4228 = vsel %vm4132, %v4084, %v4180
      %v4229 = vsel %vm4133, %v4085, %v4181
      %v4230 = vsel %vm4134, %v4086, %v4182
      %v4231 = vsel %vm4135, %v4087, %v4183
      %v4232 = vsel %vm4136, %v4088, %v4184
      %v4233 = vsel %vm4137, %v4089, %v4185
      %v4234 = vsel %vm4138, %v4090, %v4186
      %v4235 = vsel %vm4139, %v4091, %v4187
      %v4236 = vsel %vm4140, %v4092, %v4188
      %v4237 = vsel %vm4141, %v4093, %v4189
      %v4238 = vsel %vm4142, %v4094, %v4190
      %v4239 = vsel %vm4143, %v4095, %v4191
      %v4240 = vsel %vm4144, %v4096, %v4192
      %v4241 = vsel %vm4145, %v4097, %v4193
      %v4242 = vsel %vm4146, %v4098, %v4194
      %v4243 = vsel %vm4147, %v4099, %v4195
      %v4244 = vsel %vm4148, %v4100, %v4196
      %v4245 = vsel %vm4149, %v4101, %v4197
      %v4246 = vsel %vm4150, %v4102, %v4198
      %v4247 = vsel %vm4151, %v4103, %v4199
      %v4248 = vsel %vm4152, %v4104, %v4200
      %v4249 = vsel %vm4153, %v4105, %v4201
      %v4250 = vsel %vm4154, %v4106, %v4202
      %v4251 = vsel %vm4155, %v4107, %v4203
      %v4252 = vsel %vm4156, %v4108, %v4204
      %v4253 = vsel %vm4157, %v4109, %v4205
      %v4254 = vsel %vm4158, %v4110, %v4206
      %v4255 = vsel %vm4159, %v4111, %v4207
      %v4256 = vsel %vm4160, %v4112, %v4208
      %v4257 = vsel %vm4161, %v4113, %v4209
      %v4258 = vsel %vm4162, %v4114, %v4210
      %v4259 = vsel %vm4163, %v4115, %v4211
      %v4260 = vsel %vm4164, %v4116, %v4212
      %v4261 = vsel %vm4165, %v4117, %v4213
      %v4262 = vsel %vm4166, %v4118, %v4214
      %v4263 = vsel %vm4167, %v4119, %v4215
      %v4264 = vsel %vm4168, %v4120, %v4216
      %v4265 = vsel %vm4169, %v4121, %v4217
      %v4266 = vsel %vm4170, %v4122, %v4218
      %v4267 = vsel %vm4171, %v4123, %v4219
      %v4268 = vsel %vm4172, %v4124, %v4220
      %v4269 = vsel %vm4173, %v4125, %v4221
      %v4270 = vsel %vm4174, %v4126, %v4222
      %v4271 = vsel %vm4175, %v4127, %v4223
      %v4272 = vsel %vm4176, %v4128, %v4224
      %v4273 = vsel %vm4177, %v4129, %v4225
      %v4274 = vsel %vm4178, %v4130, %v4226
      %v4275 = vsel %vm4179, %v4131, %v4227
      %v4276 = vpack.c.bf16 %v4229, %v4228
      %v4277 = vpack.c.bf16 %v4231, %v4230
      %v4278 = vpack.c.bf16 %v4233, %v4232
      %v4279 = vpack.c.bf16 %v4235, %v4234
      %v4280 = vpack.c.bf16 %v4237, %v4236
      %v4281 = vpack.c.bf16 %v4239, %v4238
      %v4282 = vpack.c.bf16 %v4241, %v4240
      %v4283 = vpack.c.bf16 %v4243, %v4242
      %v4284 = vpack.c.bf16 %v4245, %v4244
      %v4285 = vpack.c.bf16 %v4247, %v4246
      %v4286 = vpack.c.bf16 %v4249, %v4248
      %v4287 = vpack.c.bf16 %v4251, %v4250
      %v4288 = vpack.c.bf16 %v4253, %v4252
      %v4289 = vpack.c.bf16 %v4255, %v4254
      %v4290 = vpack.c.bf16 %v4257, %v4256
      %v4291 = vpack.c.bf16 %v4259, %v4258
      %v4292 = vpack.c.bf16 %v4261, %v4260
      %v4293 = vpack.c.bf16 %v4263, %v4262
      %v4294 = vpack.c.bf16 %v4265, %v4264
      %v4295 = vpack.c.bf16 %v4267, %v4266
      %v4296 = vpack.c.bf16 %v4269, %v4268
      %v4297 = vpack.c.bf16 %v4271, %v4270
      %v4298 = vpack.c.bf16 %v4273, %v4272
      %v4299 = vpack.c.bf16 %v4275, %v4274
      %v4300 = vld [vmem:[%s3] sm:$0xf]
      %v4301 = vld [vmem:[%s3 + $0x4] sm:$0xf]
      %v4302 = vld [vmem:[%s3 + $0x8] sm:$0xf]
      %v4303 = vld [vmem:[%s3 + $0xc] sm:$0xf]
      %v4304 = vld [vmem:[%s3 + $0x10] sm:$0xf]
      %v4305 = vld [vmem:[%s3 + $0x14] sm:$0xf]
      %v4306 = vld [vmem:[%s3 + $0x18] sm:$0xf]
      %v4307 = vld [vmem:[%s3 + $0x1c] sm:$0xf]
      %v4308 = vld [vmem:[%s3 + $0x20] sm:$0xf]
      %v4309 = vld [vmem:[%s3 + $0x24] sm:$0xf]
      %v4310 = vld [vmem:[%s3 + $0x28] sm:$0xf]
      %v4311 = vld [vmem:[%s3 + $0x2c] sm:$0xf]
      %v4312 = vld [vmem:[%s3 + $0x30] sm:$0xf]
      %v4313 = vld [vmem:[%s3 + $0x34] sm:$0xf]
      %v4314 = vld [vmem:[%s3 + $0x38] sm:$0xf]
      %v4315 = vld [vmem:[%s3 + $0x3c] sm:$0xf]
      %v4316 = vld [vmem:[%s4] sm:$0x1]
      %v4318 = vlaneseq
      %v4319 = vshrl.u32 %v4318, 7
      %v4320 = vsub.s32 0, %v4319
      %v4321 = vrot.slane %v4316, %v4320
      %v4339 = vunpack.c.l.b16 %v4300
      %v4340 = vunpack.c.l.b16 %v4301
      %v4341 = vunpack.c.l.b16 %v4302
      %v4342 = vunpack.c.l.b16 %v4303
      %v4343 = vunpack.c.l.b16 %v4304
      %v4344 = vunpack.c.l.b16 %v4305
      %v4345 = vunpack.c.l.b16 %v4306
      %v4346 = vunpack.c.l.b16 %v4307
      %v4347 = vunpack.c.l.b16 %v4308
      %v4348 = vunpack.c.l.b16 %v4309
      %v4349 = vunpack.c.l.b16 %v4310
      %v4350 = vunpack.c.l.b16 %v4311
      %v4351 = vunpack.c.l.b16 %v4312
      %v4352 = vunpack.c.l.b16 %v4313
      %v4353 = vunpack.c.l.b16 %v4314
      %v4354 = vunpack.c.l.b16 %v4315
      %v4355 = vpack.c.b16 %v4340, %v4339
      %v4356 = vpack.c.b16 %v4342, %v4341
      %v4357 = vpack.c.b16 %v4344, %v4343
      %v4358 = vpack.c.b16 %v4346, %v4345
      %v4359 = vpack.c.b16 %v4348, %v4347
      %v4360 = vpack.c.b16 %v4350, %v4349
      %v4361 = vpack.c.b16 %v4352, %v4351
      %v4362 = vpack.c.b16 %v4354, %v4353
      %4371 = vmatprep.subr.bf16.mxu0 0
      %4372 = vmatpush1.bf16.msra.mxu0 %v4355
      %4373 = vmatprep.subr.bf16.mxu0 0
      %4374 = vmatpush1.bf16.msra.mxu0 %v4356
      %4375 = vmatprep.subr.bf16.mxu0 0
      %4376 = vmatpush1.bf16.msra.mxu0 %v4357
      %4377 = vmatprep.subr.bf16.mxu0 0
      %4378 = vmatpush1.bf16.msra.mxu0 %v4358
      %4379 = vmatprep.subr.bf16.mxu0 0
      %4380 = vmatpush1.bf16.msra.mxu0 %v4359
      %4381 = vmatprep.subr.bf16.mxu0 0
      %4382 = vmatpush1.bf16.msra.mxu0 %v4360
      %4383 = vmatprep.subr.bf16.mxu0 0
      %4384 = vmatpush1.bf16.msra.mxu0 %v4361
      %4385 = vmatprep.subr.bf16.mxu0 0
      %4386 = vmatpush1.bf16.msra.mxu0 %v4362
      %4387 = vmatprep.subr.bf16.mxu0 0
      %4388 = vmatpush1.bf16.msra.mxu0 0
      %4389 = vmatprep.subr.bf16.mxu0 0
      %4390 = vmatpush1.bf16.msra.mxu0 0
      %4391 = vmatprep.subr.bf16.mxu0 0
      %4392 = vmatpush1.bf16.msra.mxu0 0
      %4393 = vmatprep.subr.bf16.mxu0 0
      %4394 = vmatpush1.bf16.msra.mxu0 0
      %4395 = vmatprep.subr.bf16.mxu0 0
      %4396 = vmatpush1.bf16.msra.mxu0 0
      %4397 = vmatprep.subr.bf16.mxu0 0
      %4398 = vmatpush1.bf16.msra.mxu0 0
      %4399 = vmatprep.subr.bf16.mxu0 0
      %4400 = vmatpush1.bf16.msra.mxu0 0
      %4401 = vmatprep.subr.bf16.mxu0 0
      %4402 = vmatpush1.bf16.msra.mxu0 0
      %4403 = vmatprep.mubr.bf16.mxu0 0
      %4404 = vmatmul.mubr.bf16.gmra.mrb[0].mxu0 %v4276
      %v4405 = vpop.f32.mrb[0].mxu0
      %v4406 = vadd.f32 %v4321, %v4405
      %v4407 = vpop.f32.mrb[0].mxu0
      %v4408 = vpop.f32.mrb[0].mxu0
      %v4409 = vadd.f32 %v4321, %v4408
      %v4410 = vpop.f32.mrb[0].mxu0
      %4411 = vmatprep.mubr.bf16.mxu0 0
      %4412 = vmatmul.mubr.bf16.gmra.mrb[0].mxu0 %v4277
      %v4413 = vpop.f32.mrb[0].mxu0
      %v4414 = vadd.f32 %v4321, %v4413
      %v4415 = vpop.f32.mrb[0].mxu0
      %v4416 = vpop.f32.mrb[0].mxu0
      %v4417 = vadd.f32 %v4321, %v4416
      %v4418 = vpop.f32.mrb[0].mxu0
      %4419 = vmatprep.mubr.bf16.mxu0 0
      %4420 = vmatmul.mubr.bf16.gmra.mrb[0].mxu0 %v4278
      %v4421 = vpop.f32.mrb[0].mxu0
      %v4422 = vadd.f32 %v4321, %v4421
      %v4423 = vpop.f32.mrb[0].mxu0
      %v4424 = vpop.f32.mrb[0].mxu0
      %v4425 = vadd.f32 %v4321, %v4424
      %v4426 = vpop.f32.mrb[0].mxu0
      %4427 = vmatprep.mubr.bf16.mxu0 0
      %4428 = vmatmul.mubr.bf16.gmra.mrb[0].mxu0 %v4279
      %v4429 = vpop.f32.mrb[0].mxu0
      %v4430 = vadd.f32 %v4321, %v4429
      %v4431 = vpop.f32.mrb[0].mxu0
      %v4432 = vpop.f32.mrb[0].mxu0
      %v4433 = vadd.f32 %v4321, %v4432
      %v4434 = vpop.f32.mrb[0].mxu0
      %4435 = vmatprep.mubr.bf16.mxu0 0
      %4436 = vmatmul.mubr.bf16.gmra.mrb[0].mxu0 %v4280
      %v4437 = vpop.f32.mrb[0].mxu0
      %v4438 = vadd.f32 %v4321, %v4437
      %v4439 = vpop.f32.mrb[0].mxu0
      %v4440 = vpop.f32.mrb[0].mxu0
      %v4441 = vadd.f32 %v4321, %v4440
      %v4442 = vpop.f32.mrb[0].mxu0
      %4443 = vmatprep.mubr.bf16.mxu0 0
      %4444 = vmatmul.mubr.bf16.gmra.mrb[0].mxu0 %v4281
      %v4445 = vpop.f32.mrb[0].mxu0
      %v4446 = vadd.f32 %v4321, %v4445
      %v4447 = vpop.f32.mrb[0].mxu0
      %v4448 = vpop.f32.mrb[0].mxu0
      %v4449 = vadd.f32 %v4321, %v4448
      %v4450 = vpop.f32.mrb[0].mxu0
      %4451 = vmatprep.mubr.bf16.mxu0 0
      %4452 = vmatmul.mubr.bf16.gmra.mrb[0].mxu0 %v4282
      %v4453 = vpop.f32.mrb[0].mxu0
      %v4454 = vadd.f32 %v4321, %v4453
      %v4455 = vpop.f32.mrb[0].mxu0
      %v4456 = vpop.f32.mrb[0].mxu0
      %v4457 = vadd.f32 %v4321, %v4456
      %v4458 = vpop.f32.mrb[0].mxu0
      %4459 = vmatprep.mubr.bf16.mxu0 0
      %4460 = vmatmul.mubr.bf16.gmra.mrb[0].mxu0 %v4283
      %v4461 = vpop.f32.mrb[0].mxu0
      %v4462 = vadd.f32 %v4321, %v4461
      %v4463 = vpop.f32.mrb[0].mxu0
      %v4464 = vpop.f32.mrb[0].mxu0
      %v4465 = vadd.f32 %v4321, %v4464
      %v4466 = vpop.f32.mrb[0].mxu0
      %4467 = vmatprep.mubr.bf16.mxu0 0
      %4468 = vmatmul.mubr.bf16.gmra.mrb[0].mxu0 %v4284
      %v4469 = vpop.f32.mrb[0].mxu0
      %v4470 = vadd.f32 %v4321, %v4469
      %v4471 = vpop.f32.mrb[0].mxu0
      %v4472 = vpop.f32.mrb[0].mxu0
      %v4473 = vadd.f32 %v4321, %v4472
      %v4474 = vpop.f32.mrb[0].mxu0
      %4475 = vmatprep.mubr.bf16.mxu0 0
      %4476 = vmatmul.mubr.bf16.gmra.mrb[0].mxu0 %v4285
      %v4477 = vpop.f32.mrb[0].mxu0
      %v4478 = vadd.f32 %v4321, %v4477
      %v4479 = vpop.f32.mrb[0].mxu0
      %v4480 = vpop.f32.mrb[0].mxu0
      %v4481 = vadd.f32 %v4321, %v4480
      %v4482 = vpop.f32.mrb[0].mxu0
      %4483 = vmatprep.mubr.bf16.mxu0 0
      %4484 = vmatmul.mubr.bf16.gmra.mrb[0].mxu0 %v4286
      %v4485 = vpop.f32.mrb[0].mxu0
      %v4486 = vadd.f32 %v4321, %v4485
      %v4487 = vpop.f32.mrb[0].mxu0
      %v4488 = vpop.f32.mrb[0].mxu0
      %v4489 = vadd.f32 %v4321, %v4488
      %v4490 = vpop.f32.mrb[0].mxu0
      %4491 = vmatprep.mubr.bf16.mxu0 0
      %4492 = vmatmul.mubr.bf16.gmra.mrb[0].mxu0 %v4287
      %v4493 = vpop.f32.mrb[0].mxu0
      %v4494 = vadd.f32 %v4321, %v4493
      %v4495 = vpop.f32.mrb[0].mxu0
      %v4496 = vpop.f32.mrb[0].mxu0
      %v4497 = vadd.f32 %v4321, %v4496
      %v4498 = vpop.f32.mrb[0].mxu0
      %4499 = vmatprep.mubr.bf16.mxu0 0
      %4500 = vmatmul.mubr.bf16.gmra.mrb[0].mxu0 %v4288
      %v4501 = vpop.f32.mrb[0].mxu0
      %v4502 = vadd.f32 %v4321, %v4501
      %v4503 = vpop.f32.mrb[0].mxu0
      %v4504 = vpop.f32.mrb[0].mxu0
      %v4505 = vadd.f32 %v4321, %v4504
      %v4506 = vpop.f32.mrb[0].mxu0
      %4507 = vmatprep.mubr.bf16.mxu0 0
      %4508 = vmatmul.mubr.bf16.gmra.mrb[0].mxu0 %v4289
      %v4509 = vpop.f32.mrb[0].mxu0
      %v4510 = vadd.f32 %v4321, %v4509
      %v4511 = vpop.f32.mrb[0].mxu0
      %v4512 = vpop.f32.mrb[0].mxu0
      %v4513 = vadd.f32 %v4321, %v4512
      %v4514 = vpop.f32.mrb[0].mxu0
      %4515 = vmatprep.mubr.bf16.mxu0 0
      %4516 = vmatmul.mubr.bf16.gmra.mrb[0].mxu0 %v4290
      %v4517 = vpop.f32.mrb[0].mxu0
      %v4518 = vadd.f32 %v4321, %v4517
      %v4519 = vpop.f32.mrb[0].mxu0
      %v4520 = vpop.f32.mrb[0].mxu0
      %v4521 = vadd.f32 %v4321, %v4520
      %v4522 = vpop.f32.mrb[0].mxu0
      %4523 = vmatprep.mubr.bf16.mxu0 0
      %4524 = vmatmul.mubr.bf16.gmra.mrb[0].mxu0 %v4291
      %v4525 = vpop.f32.mrb[0].mxu0
      %v4526 = vadd.f32 %v4321, %v4525
      %v4527 = vpop.f32.mrb[0].mxu0
      %v4528 = vpop.f32.mrb[0].mxu0
      %v4529 = vadd.f32 %v4321, %v4528
      %v4530 = vpop.f32.mrb[0].mxu0
      %4531 = vmatprep.mubr.bf16.mxu0 0
      %4532 = vmatmul.mubr.bf16.gmra.mrb[0].mxu0 %v4292
      %v4533 = vpop.f32.mrb[0].mxu0
      %v4534 = vadd.f32 %v4321, %v4533
      %v4535 = vpop.f32.mrb[0].mxu0
      %v4536 = vpop.f32.mrb[0].mxu0
      %v4537 = vadd.f32 %v4321, %v4536
      %v4538 = vpop.f32.mrb[0].mxu0
      %4539 = vmatprep.mubr.bf16.mxu0 0
      %4540 = vmatmul.mubr.bf16.gmra.mrb[0].mxu0 %v4293
      %v4541 = vpop.f32.mrb[0].mxu0
      %v4542 = vadd.f32 %v4321, %v4541
      %v4543 = vpop.f32.mrb[0].mxu0
      %v4544 = vpop.f32.mrb[0].mxu0
      %v4545 = vadd.f32 %v4321, %v4544
      %v4546 = vpop.f32.mrb[0].mxu0
      %4547 = vmatprep.mubr.bf16.mxu0 0
      %4548 = vmatmul.mubr.bf16.gmra.mrb[0].mxu0 %v4294
      %v4549 = vpop.f32.mrb[0].mxu0
      %v4550 = vadd.f32 %v4321, %v4549
      %v4551 = vpop.f32.mrb[0].mxu0
      %v4552 = vpop.f32.mrb[0].mxu0
      %v4553 = vadd.f32 %v4321, %v4552
      %v4554 = vpop.f32.mrb[0].mxu0
      %4555 = vmatprep.mubr.bf16.mxu0 0
      %4556 = vmatmul.mubr.bf16.gmra.mrb[0].mxu0 %v4295
      %v4557 = vpop.f32.mrb[0].mxu0
      %v4558 = vadd.f32 %v4321, %v4557
      %v4559 = vpop.f32.mrb[0].mxu0
      %v4560 = vpop.f32.mrb[0].mxu0
      %v4561 = vadd.f32 %v4321, %v4560
      %v4562 = vpop.f32.mrb[0].mxu0
      %4563 = vmatprep.mubr.bf16.mxu0 0
      %4564 = vmatmul.mubr.bf16.gmra.mrb[0].mxu0 %v4296
      %v4565 = vpop.f32.mrb[0].mxu0
      %v4566 = vadd.f32 %v4321, %v4565
      %v4567 = vpop.f32.mrb[0].mxu0
      %v4568 = vpop.f32.mrb[0].mxu0
      %v4569 = vadd.f32 %v4321, %v4568
      %v4570 = vpop.f32.mrb[0].mxu0
      %4571 = vmatprep.mubr.bf16.mxu0 0
      %4572 = vmatmul.mubr.bf16.gmra.mrb[0].mxu0 %v4297
      %v4573 = vpop.f32.mrb[0].mxu0
      %v4574 = vadd.f32 %v4321, %v4573
      %v4575 = vpop.f32.mrb[0].mxu0
      %v4576 = vpop.f32.mrb[0].mxu0
      %v4577 = vadd.f32 %v4321, %v4576
      %v4578 = vpop.f32.mrb[0].mxu0
      %4579 = vmatprep.mubr.bf16.mxu0 0
      %4580 = vmatmul.mubr.bf16.gmra.mrb[0].mxu0 %v4298
      %v4581 = vpop.f32.mrb[0].mxu0
      %v4582 = vadd.f32 %v4321, %v4581
      %v4583 = vpop.f32.mrb[0].mxu0
      %v4584 = vpop.f32.mrb[0].mxu0
      %v4585 = vadd.f32 %v4321, %v4584
      %v4586 = vpop.f32.mrb[0].mxu0
      %4587 = vmatprep.mubr.bf16.mxu0 0
      %4588 = vmatmul.mubr.bf16.gmra.mrb[0].mxu0 %v4299
      %v4589 = vpop.f32.mrb[0].mxu0
      %v4590 = vadd.f32 %v4321, %v4589
      %v4591 = vpop.f32.mrb[0].mxu0
      %v4592 = vpop.f32.mrb[0].mxu0
      %v4593 = vadd.f32 %v4321, %v4592
      %v4594 = vpop.f32.mrb[0].mxu0
      %4595 = vdwg.mxu0
      %vm4596 = vcmask 523264
      %v4597 = vsel %vm4596, %v4406, -inf
      %4598 = vmax.xlane.f32.xlu0 %v4597
      %v4599 = vpop.xlane.xlu0 %4598
      %v4600 = vsel %vm4596, %v4409, -inf
      %4601 = vmax.xlane.f32.xlu0 %v4600
      %v4602 = vpop.xlane.xlu0 %4601
      %v4603 = vsel %vm4596, %v4414, -inf
      %4604 = vmax.xlane.f32.xlu0 %v4603
      %v4605 = vpop.xlane.xlu0 %4604
      %v4606 = vsel %vm4596, %v4417, -inf
      %4607 = vmax.xlane.f32.xlu0 %v4606
      %v4608 = vpop.xlane.xlu0 %4607
      %v4609 = vsel %vm4596, %v4422, -inf
      %4610 = vmax.xlane.f32.xlu0 %v4609
      %v4611 = vpop.xlane.xlu0 %4610
      %v4612 = vsel %vm4596, %v4425, -inf
      %4613 = vmax.xlane.f32.xlu0 %v4612
      %v4614 = vpop.xlane.xlu0 %4613
      %v4615 = vsel %vm4596, %v4430, -inf
      %4616 = vmax.xlane.f32.xlu0 %v4615
      %v4617 = vpop.xlane.xlu0 %4616
      %v4618 = vsel %vm4596, %v4433, -inf
      %4619 = vmax.xlane.f32.xlu0 %v4618
      %v4620 = vpop.xlane.xlu0 %4619
      %v4621 = vsel %vm4596, %v4438, -inf
      %4622 = vmax.xlane.f32.xlu0 %v4621
      %v4623 = vpop.xlane.xlu0 %4622
      %v4624 = vsel %vm4596, %v4441, -inf
      %4625 = vmax.xlane.f32.xlu0 %v4624
      %v4626 = vpop.xlane.xlu0 %4625
      %v4627 = vsel %vm4596, %v4446, -inf
      %4628 = vmax.xlane.f32.xlu0 %v4627
      %v4629 = vpop.xlane.xlu0 %4628
      %v4630 = vsel %vm4596, %v4449, -inf
      %4631 = vmax.xlane.f32.xlu0 %v4630
      %v4632 = vpop.xlane.xlu0 %4631
      %v4633 = vsel %vm4596, %v4454, -inf
      %4634 = vmax.xlane.f32.xlu0 %v4633
      %v4635 = vpop.xlane.xlu0 %4634
      %v4636 = vsel %vm4596, %v4457, -inf
      %4637 = vmax.xlane.f32.xlu0 %v4636
      %v4638 = vpop.xlane.xlu0 %4637
      %v4639 = vsel %vm4596, %v4462, -inf
      %4640 = vmax.xlane.f32.xlu0 %v4639
      %v4641 = vpop.xlane.xlu0 %4640
      %v4642 = vsel %vm4596, %v4465, -inf
      %4643 = vmax.xlane.f32.xlu0 %v4642
      %v4644 = vpop.xlane.xlu0 %4643
      %v4645 = vsel %vm4596, %v4470, -inf
      %4646 = vmax.xlane.f32.xlu0 %v4645
      %v4647 = vpop.xlane.xlu0 %4646
      %v4648 = vsel %vm4596, %v4473, -inf
      %4649 = vmax.xlane.f32.xlu0 %v4648
      %v4650 = vpop.xlane.xlu0 %4649
      %v4651 = vsel %vm4596, %v4478, -inf
      %4652 = vmax.xlane.f32.xlu0 %v4651
      %v4653 = vpop.xlane.xlu0 %4652
      %v4654 = vsel %vm4596, %v4481, -inf
      %4655 = vmax.xlane.f32.xlu0 %v4654
      %v4656 = vpop.xlane.xlu0 %4655
      %v4657 = vsel %vm4596, %v4486, -inf
      %4658 = vmax.xlane.f32.xlu0 %v4657
      %v4659 = vpop.xlane.xlu0 %4658
      %v4660 = vsel %vm4596, %v4489, -inf
      %4661 = vmax.xlane.f32.xlu0 %v4660
      %v4662 = vpop.xlane.xlu0 %4661
      %v4663 = vsel %vm4596, %v4494, -inf
      %4664 = vmax.xlane.f32.xlu0 %v4663
      %v4665 = vpop.xlane.xlu0 %4664
      %v4666 = vsel %vm4596, %v4497, -inf
      %4667 = vmax.xlane.f32.xlu0 %v4666
      %v4668 = vpop.xlane.xlu0 %4667
      %v4669 = vsel %vm4596, %v4502, -inf
      %4670 = vmax.xlane.f32.xlu0 %v4669
      %v4671 = vpop.xlane.xlu0 %4670
      %v4672 = vsel %vm4596, %v4505, -inf
      %4673 = vmax.xlane.f32.xlu0 %v4672
      %v4674 = vpop.xlane.xlu0 %4673
      %v4675 = vsel %vm4596, %v4510, -inf
      %4676 = vmax.xlane.f32.xlu0 %v4675
      %v4677 = vpop.xlane.xlu0 %4676
      %v4678 = vsel %vm4596, %v4513, -inf
      %4679 = vmax.xlane.f32.xlu0 %v4678
      %v4680 = vpop.xlane.xlu0 %4679
      %v4681 = vsel %vm4596, %v4518, -inf
      %4682 = vmax.xlane.f32.xlu0 %v4681
      %v4683 = vpop.xlane.xlu0 %4682
      %v4684 = vsel %vm4596, %v4521, -inf
      %4685 = vmax.xlane.f32.xlu0 %v4684
      %v4686 = vpop.xlane.xlu0 %4685
      %v4687 = vsel %vm4596, %v4526, -inf
      %4688 = vmax.xlane.f32.xlu0 %v4687
      %v4689 = vpop.xlane.xlu0 %4688
      %v4690 = vsel %vm4596, %v4529, -inf
      %4691 = vmax.xlane.f32.xlu0 %v4690
      %v4692 = vpop.xlane.xlu0 %4691
      %v4693 = vsel %vm4596, %v4534, -inf
      %4694 = vmax.xlane.f32.xlu0 %v4693
      %v4695 = vpop.xlane.xlu0 %4694
      %v4696 = vsel %vm4596, %v4537, -inf
      %4697 = vmax.xlane.f32.xlu0 %v4696
      %v4698 = vpop.xlane.xlu0 %4697
      %v4699 = vsel %vm4596, %v4542, -inf
      %4700 = vmax.xlane.f32.xlu0 %v4699
      %v4701 = vpop.xlane.xlu0 %4700
      %v4702 = vsel %vm4596, %v4545, -inf
      %4703 = vmax.xlane.f32.xlu0 %v4702
      %v4704 = vpop.xlane.xlu0 %4703
      %v4705 = vsel %vm4596, %v4550, -inf
      %4706 = vmax.xlane.f32.xlu0 %v4705
      %v4707 = vpop.xlane.xlu0 %4706
      %v4708 = vsel %vm4596, %v4553, -inf
      %4709 = vmax.xlane.f32.xlu0 %v4708
      %v4710 = vpop.xlane.xlu0 %4709
      %v4711 = vsel %vm4596, %v4558, -inf
      %4712 = vmax.xlane.f32.xlu0 %v4711
      %v4713 = vpop.xlane.xlu0 %4712
      %v4714 = vsel %vm4596, %v4561, -inf
      %4715 = vmax.xlane.f32.xlu0 %v4714
      %v4716 = vpop.xlane.xlu0 %4715
      %v4717 = vsel %vm4596, %v4566, -inf
      %4718 = vmax.xlane.f32.xlu0 %v4717
      %v4719 = vpop.xlane.xlu0 %4718
      %v4720 = vsel %vm4596, %v4569, -inf
      %4721 = vmax.xlane.f32.xlu0 %v4720
      %v4722 = vpop.xlane.xlu0 %4721
      %v4723 = vsel %vm4596, %v4574, -inf
      %4724 = vmax.xlane.f32.xlu0 %v4723
      %v4725 = vpop.xlane.xlu0 %4724
      %v4726 = vsel %vm4596, %v4577, -inf
      %4727 = vmax.xlane.f32.xlu0 %v4726
      %v4728 = vpop.xlane.xlu0 %4727
      %v4729 = vsel %vm4596, %v4582, -inf
      %4730 = vmax.xlane.f32.xlu0 %v4729
      %v4731 = vpop.xlane.xlu0 %4730
      %v4732 = vsel %vm4596, %v4585, -inf
      %4733 = vmax.xlane.f32.xlu0 %v4732
      %v4734 = vpop.xlane.xlu0 %4733
      %v4735 = vsel %vm4596, %v4590, -inf
      %4736 = vmax.xlane.f32.xlu0 %v4735
      %v4737 = vpop.xlane.xlu0 %4736
      %v4738 = vsel %vm4596, %v4593, -inf
      %4739 = vmax.xlane.f32.xlu0 %v4738
      %v4740 = vpop.xlane.xlu0 %4739
      %vm4741 = vcmask 1048064
      %v4742 = vsel %vm4741, %v4406, -inf
      %4743 = vmax.xlane.f32.xlu0 %v4742
      %v4744 = vpop.xlane.xlu0 %4743
      %v4745 = vsel %vm4741, %v4409, -inf
      %4746 = vmax.xlane.f32.xlu0 %v4745
      %v4747 = vpop.xlane.xlu0 %4746
      %v4748 = vsel %vm4741, %v4414, -inf
      %4749 = vmax.xlane.f32.xlu0 %v4748
      %v4750 = vpop.xlane.xlu0 %4749
      %v4751 = vsel %vm4741, %v4417, -inf
      %4752 = vmax.xlane.f32.xlu0 %v4751
      %v4753 = vpop.xlane.xlu0 %4752
      %v4754 = vsel %vm4741, %v4422, -inf
      %4755 = vmax.xlane.f32.xlu0 %v4754
      %v4756 = vpop.xlane.xlu0 %4755
      %v4757 = vsel %vm4741, %v4425, -inf
      %4758 = vmax.xlane.f32.xlu0 %v4757
      %v4759 = vpop.xlane.xlu0 %4758
      %v4760 = vsel %vm4741, %v4430, -inf
      %4761 = vmax.xlane.f32.xlu0 %v4760
      %v4762 = vpop.xlane.xlu0 %4761
      %v4763 = vsel %vm4741, %v4433, -inf
      %4764 = vmax.xlane.f32.xlu0 %v4763
      %v4765 = vpop.xlane.xlu0 %4764
      %v4766 = vsel %vm4741, %v4438, -inf
      %4767 = vmax.xlane.f32.xlu0 %v4766
      %v4768 = vpop.xlane.xlu0 %4767
      %v4769 = vsel %vm4741, %v4441, -inf
      %4770 = vmax.xlane.f32.xlu0 %v4769
      %v4771 = vpop.xlane.xlu0 %4770
      %v4772 = vsel %vm4741, %v4446, -inf
      %4773 = vmax.xlane.f32.xlu0 %v4772
      %v4774 = vpop.xlane.xlu0 %4773
      %v4775 = vsel %vm4741, %v4449, -inf
      %4776 = vmax.xlane.f32.xlu0 %v4775
      %v4777 = vpop.xlane.xlu0 %4776
      %v4778 = vsel %vm4741, %v4454, -inf
      %4779 = vmax.xlane.f32.xlu0 %v4778
      %v4780 = vpop.xlane.xlu0 %4779
      %v4781 = vsel %vm4741, %v4457, -inf
      %4782 = vmax.xlane.f32.xlu0 %v4781
      %v4783 = vpop.xlane.xlu0 %4782
      %v4784 = vsel %vm4741, %v4462, -inf
      %4785 = vmax.xlane.f32.xlu0 %v4784
      %v4786 = vpop.xlane.xlu0 %4785
      %v4787 = vsel %vm4741, %v4465, -inf
      %4788 = vmax.xlane.f32.xlu0 %v4787
      %v4789 = vpop.xlane.xlu0 %4788
      %v4790 = vsel %vm4741, %v4470, -inf
      %4791 = vmax.xlane.f32.xlu0 %v4790
      %v4792 = vpop.xlane.xlu0 %4791
      %v4793 = vsel %vm4741, %v4473, -inf
      %4794 = vmax.xlane.f32.xlu0 %v4793
      %v4795 = vpop.xlane.xlu0 %4794
      %v4796 = vsel %vm4741, %v4478, -inf
      %4797 = vmax.xlane.f32.xlu0 %v4796
      %v4798 = vpop.xlane.xlu0 %4797
      %v4799 = vsel %vm4741, %v4481, -inf
      %4800 = vmax.xlane.f32.xlu0 %v4799
      %v4801 = vpop.xlane.xlu0 %4800
      %v4802 = vsel %vm4741, %v4486, -inf
      %4803 = vmax.xlane.f32.xlu0 %v4802
      %v4804 = vpop.xlane.xlu0 %4803
      %v4805 = vsel %vm4741, %v4489, -inf
      %4806 = vmax.xlane.f32.xlu0 %v4805
      %v4807 = vpop.xlane.xlu0 %4806
      %v4808 = vsel %vm4741, %v4494, -inf
      %4809 = vmax.xlane.f32.xlu0 %v4808
      %v4810 = vpop.xlane.xlu0 %4809
      %v4811 = vsel %vm4741, %v4497, -inf
      %4812 = vmax.xlane.f32.xlu0 %v4811
      %v4813 = vpop.xlane.xlu0 %4812
      %v4814 = vsel %vm4741, %v4502, -inf
      %4815 = vmax.xlane.f32.xlu0 %v4814
      %v4816 = vpop.xlane.xlu0 %4815
      %v4817 = vsel %vm4741, %v4505, -inf
      %4818 = vmax.xlane.f32.xlu0 %v4817
      %v4819 = vpop.xlane.xlu0 %4818
      %v4820 = vsel %vm4741, %v4510, -inf
      %4821 = vmax.xlane.f32.xlu0 %v4820
      %v4822 = vpop.xlane.xlu0 %4821
      %v4823 = vsel %vm4741, %v4513, -inf
      %4824 = vmax.xlane.f32.xlu0 %v4823
      %v4825 = vpop.xlane.xlu0 %4824
      %v4826 = vsel %vm4741, %v4518, -inf
      %4827 = vmax.xlane.f32.xlu0 %v4826
      %v4828 = vpop.xlane.xlu0 %4827
      %v4829 = vsel %vm4741, %v4521, -inf
      %4830 = vmax.xlane.f32.xlu0 %v4829
      %v4831 = vpop.xlane.xlu0 %4830
      %v4832 = vsel %vm4741, %v4526, -inf
      %4833 = vmax.xlane.f32.xlu0 %v4832
      %v4834 = vpop.xlane.xlu0 %4833
      %v4835 = vsel %vm4741, %v4529, -inf
      %4836 = vmax.xlane.f32.xlu0 %v4835
      %v4837 = vpop.xlane.xlu0 %4836
      %v4838 = vsel %vm4741, %v4534, -inf
      %4839 = vmax.xlane.f32.xlu0 %v4838
      %v4840 = vpop.xlane.xlu0 %4839
      %v4841 = vsel %vm4741, %v4537, -inf
      %4842 = vmax.xlane.f32.xlu0 %v4841
      %v4843 = vpop.xlane.xlu0 %4842
      %v4844 = vsel %vm4741, %v4542, -inf
      %4845 = vmax.xlane.f32.xlu0 %v4844
      %v4846 = vpop.xlane.xlu0 %4845
      %v4847 = vsel %vm4741, %v4545, -inf
      %4848 = vmax.xlane.f32.xlu0 %v4847
      %v4849 = vpop.xlane.xlu0 %4848
      %v4850 = vsel %vm4741, %v4550, -inf
      %4851 = vmax.xlane.f32.xlu0 %v4850
      %v4852 = vpop.xlane.xlu0 %4851
      %v4853 = vsel %vm4741, %v4553, -inf
      %4854 = vmax.xlane.f32.xlu0 %v4853
      %v4855 = vpop.xlane.xlu0 %4854
      %v4856 = vsel %vm4741, %v4558, -inf
      %4857 = vmax.xlane.f32.xlu0 %v4856
      %v4858 = vpop.xlane.xlu0 %4857
      %v4859 = vsel %vm4741, %v4561, -inf
      %4860 = vmax.xlane.f32.xlu0 %v4859
      %v4861 = vpop.xlane.xlu0 %4860
      %v4862 = vsel %vm4741, %v4566, -inf
      %4863 = vmax.xlane.f32.xlu0 %v4862
      %v4864 = vpop.xlane.xlu0 %4863
      %v4865 = vsel %vm4741, %v4569, -inf
      %4866 = vmax.xlane.f32.xlu0 %v4865
      %v4867 = vpop.xlane.xlu0 %4866
      %v4868 = vsel %vm4741, %v4574, -inf
      %4869 = vmax.xlane.f32.xlu0 %v4868
      %v4870 = vpop.xlane.xlu0 %4869
      %v4871 = vsel %vm4741, %v4577, -inf
      %4872 = vmax.xlane.f32.xlu0 %v4871
      %v4873 = vpop.xlane.xlu0 %4872
      %v4874 = vsel %vm4741, %v4582, -inf
      %4875 = vmax.xlane.f32.xlu0 %v4874
      %v4876 = vpop.xlane.xlu0 %4875
      %v4877 = vsel %vm4741, %v4585, -inf
      %4878 = vmax.xlane.f32.xlu0 %v4877
      %v4879 = vpop.xlane.xlu0 %4878
      %v4880 = vsel %vm4741, %v4590, -inf
      %4881 = vmax.xlane.f32.xlu0 %v4880
      %v4882 = vpop.xlane.xlu0 %4881
      %v4883 = vsel %vm4741, %v4593, -inf
      %4884 = vmax.xlane.f32.xlu0 %v4883
      %v4885 = vpop.xlane.xlu0 %4884
      %v4886 = vlaneseq
      %v4887 = vand.u32 %v4886, 127
      %vm4888 = vcmp.lt.s32.totalorder %v4887, 64
      %v4889 = vsel %vm4888, %v4599, %v4744
      %v4890 = vsel %vm4888, %v4602, %v4747
      %v4891 = vsel %vm4888, %v4605, %v4750
      %v4892 = vsel %vm4888, %v4608, %v4753
      %v4893 = vsel %vm4888, %v4611, %v4756
      %v4894 = vsel %vm4888, %v4614, %v4759
      %v4895 = vsel %vm4888, %v4617, %v4762
      %v4896 = vsel %vm4888, %v4620, %v4765
      %v4897 = vsel %vm4888, %v4623, %v4768
      %v4898 = vsel %vm4888, %v4626, %v4771
      %v4899 = vsel %vm4888, %v4629, %v4774
      %v4900 = vsel %vm4888, %v4632, %v4777
      %v4901 = vsel %vm4888, %v4635, %v4780
      %v4902 = vsel %vm4888, %v4638, %v4783
      %v4903 = vsel %vm4888, %v4641, %v4786
      %v4904 = vsel %vm4888, %v4644, %v4789
      %v4905 = vsel %vm4888, %v4647, %v4792
      %v4906 = vsel %vm4888, %v4650, %v4795
      %v4907 = vsel %vm4888, %v4653, %v4798
      %v4908 = vsel %vm4888, %v4656, %v4801
      %v4909 = vsel %vm4888, %v4659, %v4804
      %v4910 = vsel %vm4888, %v4662, %v4807
      %v4911 = vsel %vm4888, %v4665, %v4810
      %v4912 = vsel %vm4888, %v4668, %v4813
      %v4913 = vsel %vm4888, %v4671, %v4816
      %v4914 = vsel %vm4888, %v4674, %v4819
      %v4915 = vsel %vm4888, %v4677, %v4822
      %v4916 = vsel %vm4888, %v4680, %v4825
      %v4917 = vsel %vm4888, %v4683, %v4828
      %v4918 = vsel %vm4888, %v4686, %v4831
      %v4919 = vsel %vm4888, %v4689, %v4834
      %v4920 = vsel %vm4888, %v4692, %v4837
      %v4921 = vsel %vm4888, %v4695, %v4840
      %v4922 = vsel %vm4888, %v4698, %v4843
      %v4923 = vsel %vm4888, %v4701, %v4846
      %v4924 = vsel %vm4888, %v4704, %v4849
      %v4925 = vsel %vm4888, %v4707, %v4852
      %v4926 = vsel %vm4888, %v4710, %v4855
      %v4927 = vsel %vm4888, %v4713, %v4858
      %v4928 = vsel %vm4888, %v4716, %v4861
      %v4929 = vsel %vm4888, %v4719, %v4864
      %v4930 = vsel %vm4888, %v4722, %v4867
      %v4931 = vsel %vm4888, %v4725, %v4870
      %v4932 = vsel %vm4888, %v4728, %v4873
      %v4933 = vsel %vm4888, %v4731, %v4876
      %v4934 = vsel %vm4888, %v4734, %v4879
      %v4935 = vsel %vm4888, %v4737, %v4882
      %v4936 = vsel %vm4888, %v4740, %v4885
      %v4937 = vsub.f32 %v4406, %v4889
      %v4938 = vsub.f32 %v4409, %v4890
      %v4939 = vsub.f32 %v4414, %v4891
      %v4940 = vsub.f32 %v4417, %v4892
      %v4941 = vsub.f32 %v4422, %v4893
      %v4942 = vsub.f32 %v4425, %v4894
      %v4943 = vsub.f32 %v4430, %v4895
      %v4944 = vsub.f32 %v4433, %v4896
      %v4945 = vsub.f32 %v4438, %v4897
      %v4946 = vsub.f32 %v4441, %v4898
      %v4947 = vsub.f32 %v4446, %v4899
      %v4948 = vsub.f32 %v4449, %v4900
      %v4949 = vsub.f32 %v4454, %v4901
      %v4950 = vsub.f32 %v4457, %v4902
      %v4951 = vsub.f32 %v4462, %v4903
      %v4952 = vsub.f32 %v4465, %v4904
      %v4953 = vsub.f32 %v4470, %v4905
      %v4954 = vsub.f32 %v4473, %v4906
      %v4955 = vsub.f32 %v4478, %v4907
      %v4956 = vsub.f32 %v4481, %v4908
      %v4957 = vsub.f32 %v4486, %v4909
      %v4958 = vsub.f32 %v4489, %v4910
      %v4959 = vsub.f32 %v4494, %v4911
      %v4960 = vsub.f32 %v4497, %v4912
      %v4961 = vsub.f32 %v4502, %v4913
      %v4962 = vsub.f32 %v4505, %v4914
      %v4963 = vsub.f32 %v4510, %v4915
      %v4964 = vsub.f32 %v4513, %v4916
      %v4965 = vsub.f32 %v4518, %v4917
      %v4966 = vsub.f32 %v4521, %v4918
      %v4967 = vsub.f32 %v4526, %v4919
      %v4968 = vsub.f32 %v4529, %v4920
      %v4969 = vsub.f32 %v4534, %v4921
      %v4970 = vsub.f32 %v4537, %v4922
      %v4971 = vsub.f32 %v4542, %v4923
      %v4972 = vsub.f32 %v4545, %v4924
      %v4973 = vsub.f32 %v4550, %v4925
      %v4974 = vsub.f32 %v4553, %v4926
      %v4975 = vsub.f32 %v4558, %v4927
      %v4976 = vsub.f32 %v4561, %v4928
      %v4977 = vsub.f32 %v4566, %v4929
      %v4978 = vsub.f32 %v4569, %v4930
      %v4979 = vsub.f32 %v4574, %v4931
      %v4980 = vsub.f32 %v4577, %v4932
      %v4981 = vsub.f32 %v4582, %v4933
      %v4982 = vsub.f32 %v4585, %v4934
      %v4983 = vsub.f32 %v4590, %v4935
      %v4984 = vsub.f32 %v4593, %v4936
      %v4985 = vmul.f32 %v4937, 1.442695
      %v4986 = vpow.pop %v4985
      %v4987 = vmul.f32 %v4938, 1.442695
      %v4988 = vpow.pop %v4987
      %v4989 = vmul.f32 %v4939, 1.442695
      %v4990 = vpow.pop %v4989
      %v4991 = vmul.f32 %v4940, 1.442695
      %v4992 = vpow.pop %v4991
      %v4993 = vmul.f32 %v4941, 1.442695
      %v4994 = vpow.pop %v4993
      %v4995 = vmul.f32 %v4942, 1.442695
      %v4996 = vpow.pop %v4995
      %v4997 = vmul.f32 %v4943, 1.442695
      %v4998 = vpow.pop %v4997
      %v4999 = vmul.f32 %v4944, 1.442695
      %v5000 = vpow.pop %v4999
      %v5001 = vmul.f32 %v4945, 1.442695
      %v5002 = vpow.pop %v5001
      %v5003 = vmul.f32 %v4946, 1.442695
      %v5004 = vpow.pop %v5003
      %v5005 = vmul.f32 %v4947, 1.442695
      %v5006 = vpow.pop %v5005
      %v5007 = vmul.f32 %v4948, 1.442695
      %v5008 = vpow.pop %v5007
      %v5009 = vmul.f32 %v4949, 1.442695
      %v5010 = vpow.pop %v5009
      %v5011 = vmul.f32 %v4950, 1.442695
      %v5012 = vpow.pop %v5011
      %v5013 = vmul.f32 %v4951, 1.442695
      %v5014 = vpow.pop %v5013
      %v5015 = vmul.f32 %v4952, 1.442695
      %v5016 = vpow.pop %v5015
      %v5017 = vmul.f32 %v4953, 1.442695
      %v5018 = vpow.pop %v5017
      %v5019 = vmul.f32 %v4954, 1.442695
      %v5020 = vpow.pop %v5019
      %v5021 = vmul.f32 %v4955, 1.442695
      %v5022 = vpow.pop %v5021
      %v5023 = vmul.f32 %v4956, 1.442695
      %v5024 = vpow.pop %v5023
      %v5025 = vmul.f32 %v4957, 1.442695
      %v5026 = vpow.pop %v5025
      %v5027 = vmul.f32 %v4958, 1.442695
      %v5028 = vpow.pop %v5027
      %v5029 = vmul.f32 %v4959, 1.442695
      %v5030 = vpow.pop %v5029
      %v5031 = vmul.f32 %v4960, 1.442695
      %v5032 = vpow.pop %v5031
      %v5033 = vmul.f32 %v4961, 1.442695
      %v5034 = vpow.pop %v5033
      %v5035 = vmul.f32 %v4962, 1.442695
      %v5036 = vpow.pop %v5035
      %v5037 = vmul.f32 %v4963, 1.442695
      %v5038 = vpow.pop %v5037
      %v5039 = vmul.f32 %v4964, 1.442695
      %v5040 = vpow.pop %v5039
      %v5041 = vmul.f32 %v4965, 1.442695
      %v5042 = vpow.pop %v5041
      %v5043 = vmul.f32 %v4966, 1.442695
      %v5044 = vpow.pop %v5043
      %v5045 = vmul.f32 %v4967, 1.442695
      %v5046 = vpow.pop %v5045
      %v5047 = vmul.f32 %v4968, 1.442695
      %v5048 = vpow.pop %v5047
      %v5049 = vmul.f32 %v4969, 1.442695
      %v5050 = vpow.pop %v5049
      %v5051 = vmul.f32 %v4970, 1.442695
      %v5052 = vpow.pop %v5051
      %v5053 = vmul.f32 %v4971, 1.442695
      %v5054 = vpow.pop %v5053
      %v5055 = vmul.f32 %v4972, 1.442695
      %v5056 = vpow.pop %v5055
      %v5057 = vmul.f32 %v4973, 1.442695
      %v5058 = vpow.pop %v5057
      %v5059 = vmul.f32 %v4974, 1.442695
      %v5060 = vpow.pop %v5059
      %v5061 = vmul.f32 %v4975, 1.442695
      %v5062 = vpow.pop %v5061
      %v5063 = vmul.f32 %v4976, 1.442695
      %v5064 = vpow.pop %v5063
      %v5065 = vmul.f32 %v4977, 1.442695
      %v5066 = vpow.pop %v5065
      %v5067 = vmul.f32 %v4978, 1.442695
      %v5068 = vpow.pop %v5067
      %v5069 = vmul.f32 %v4979, 1.442695
      %v5070 = vpow.pop %v5069
      %v5071 = vmul.f32 %v4980, 1.442695
      %v5072 = vpow.pop %v5071
      %v5073 = vmul.f32 %v4981, 1.442695
      %v5074 = vpow.pop %v5073
      %v5075 = vmul.f32 %v4982, 1.442695
      %v5076 = vpow.pop %v5075
      %v5077 = vmul.f32 %v4983, 1.442695
      %v5078 = vpow.pop %v5077
      %v5079 = vmul.f32 %v4984, 1.442695
      %v5080 = vpow.pop %v5079
      %v5081 = vsel %vm4596, %v4986, 0.0
      %5082 = vadd.xlane.f32.xlu0 %v5081
      %v5083 = vpop.xlane.xlu0 %5082
      %v5084 = vsel %vm4596, %v4988, 0.0
      %5085 = vadd.xlane.f32.xlu0 %v5084
      %v5086 = vpop.xlane.xlu0 %5085
      %v5087 = vsel %vm4596, %v4990, 0.0
      %5088 = vadd.xlane.f32.xlu0 %v5087
      %v5089 = vpop.xlane.xlu0 %5088
      %v5090 = vsel %vm4596, %v4992, 0.0
      %5091 = vadd.xlane.f32.xlu0 %v5090
      %v5092 = vpop.xlane.xlu0 %5091
      %v5093 = vsel %vm4596, %v4994, 0.0
      %5094 = vadd.xlane.f32.xlu0 %v5093
      %v5095 = vpop.xlane.xlu0 %5094
      %v5096 = vsel %vm4596, %v4996, 0.0
      %5097 = vadd.xlane.f32.xlu0 %v5096
      %v5098 = vpop.xlane.xlu0 %5097
      %v5099 = vsel %vm4596, %v4998, 0.0
      %5100 = vadd.xlane.f32.xlu0 %v5099
      %v5101 = vpop.xlane.xlu0 %5100
      %v5102 = vsel %vm4596, %v5000, 0.0
      %5103 = vadd.xlane.f32.xlu0 %v5102
      %v5104 = vpop.xlane.xlu0 %5103
      %v5105 = vsel %vm4596, %v5002, 0.0
      %5106 = vadd.xlane.f32.xlu0 %v5105
      %v5107 = vpop.xlane.xlu0 %5106
      %v5108 = vsel %vm4596, %v5004, 0.0
      %5109 = vadd.xlane.f32.xlu0 %v5108
      %v5110 = vpop.xlane.xlu0 %5109
      %v5111 = vsel %vm4596, %v5006, 0.0
      %5112 = vadd.xlane.f32.xlu0 %v5111
      %v5113 = vpop.xlane.xlu0 %5112
      %v5114 = vsel %vm4596, %v5008, 0.0
      %5115 = vadd.xlane.f32.xlu0 %v5114
      %v5116 = vpop.xlane.xlu0 %5115
      %v5117 = vsel %vm4596, %v5010, 0.0
      %5118 = vadd.xlane.f32.xlu0 %v5117
      %v5119 = vpop.xlane.xlu0 %5118
      %v5120 = vsel %vm4596, %v5012, 0.0
      %5121 = vadd.xlane.f32.xlu0 %v5120
      %v5122 = vpop.xlane.xlu0 %5121
      %v5123 = vsel %vm4596, %v5014, 0.0
      %5124 = vadd.xlane.f32.xlu0 %v5123
      %v5125 = vpop.xlane.xlu0 %5124
      %v5126 = vsel %vm4596, %v5016, 0.0
      %5127 = vadd.xlane.f32.xlu0 %v5126
      %v5128 = vpop.xlane.xlu0 %5127
      %v5129 = vsel %vm4596, %v5018, 0.0
      %5130 = vadd.xlane.f32.xlu0 %v5129
      %v5131 = vpop.xlane.xlu0 %5130
      %v5132 = vsel %vm4596, %v5020, 0.0
      %5133 = vadd.xlane.f32.xlu0 %v5132
      %v5134 = vpop.xlane.xlu0 %5133
      %v5135 = vsel %vm4596, %v5022, 0.0
      %5136 = vadd.xlane.f32.xlu0 %v5135
      %v5137 = vpop.xlane.xlu0 %5136
      %v5138 = vsel %vm4596, %v5024, 0.0
      %5139 = vadd.xlane.f32.xlu0 %v5138
      %v5140 = vpop.xlane.xlu0 %5139
      %v5141 = vsel %vm4596, %v5026, 0.0
      %5142 = vadd.xlane.f32.xlu0 %v5141
      %v5143 = vpop.xlane.xlu0 %5142
      %v5144 = vsel %vm4596, %v5028, 0.0
      %5145 = vadd.xlane.f32.xlu0 %v5144
      %v5146 = vpop.xlane.xlu0 %5145
      %v5147 = vsel %vm4596, %v5030, 0.0
      %5148 = vadd.xlane.f32.xlu0 %v5147
      %v5149 = vpop.xlane.xlu0 %5148
      %v5150 = vsel %vm4596, %v5032, 0.0
      %5151 = vadd.xlane.f32.xlu0 %v5150
      %v5152 = vpop.xlane.xlu0 %5151
      %v5153 = vsel %vm4596, %v5034, 0.0
      %5154 = vadd.xlane.f32.xlu0 %v5153
      %v5155 = vpop.xlane.xlu0 %5154
      %v5156 = vsel %vm4596, %v5036, 0.0
      %5157 = vadd.xlane.f32.xlu0 %v5156
      %v5158 = vpop.xlane.xlu0 %5157
      %v5159 = vsel %vm4596, %v5038, 0.0
      %5160 = vadd.xlane.f32.xlu0 %v5159
      %v5161 = vpop.xlane.xlu0 %5160
      %v5162 = vsel %vm4596, %v5040, 0.0
      %5163 = vadd.xlane.f32.xlu0 %v5162
      %v5164 = vpop.xlane.xlu0 %5163
      %v5165 = vsel %vm4596, %v5042, 0.0
      %5166 = vadd.xlane.f32.xlu0 %v5165
      %v5167 = vpop.xlane.xlu0 %5166
      %v5168 = vsel %vm4596, %v5044, 0.0
      %5169 = vadd.xlane.f32.xlu0 %v5168
      %v5170 = vpop.xlane.xlu0 %5169
      %v5171 = vsel %vm4596, %v5046, 0.0
      %5172 = vadd.xlane.f32.xlu0 %v5171
      %v5173 = vpop.xlane.xlu0 %5172
      %v5174 = vsel %vm4596, %v5048, 0.0
      %5175 = vadd.xlane.f32.xlu0 %v5174
      %v5176 = vpop.xlane.xlu0 %5175
      %v5177 = vsel %vm4596, %v5050, 0.0
      %5178 = vadd.xlane.f32.xlu0 %v5177
      %v5179 = vpop.xlane.xlu0 %5178
      %v5180 = vsel %vm4596, %v5052, 0.0
      %5181 = vadd.xlane.f32.xlu0 %v5180
      %v5182 = vpop.xlane.xlu0 %5181
      %v5183 = vsel %vm4596, %v5054, 0.0
      %5184 = vadd.xlane.f32.xlu0 %v5183
      %v5185 = vpop.xlane.xlu0 %5184
      %v5186 = vsel %vm4596, %v5056, 0.0
      %5187 = vadd.xlane.f32.xlu0 %v5186
      %v5188 = vpop.xlane.xlu0 %5187
      %v5189 = vsel %vm4596, %v5058, 0.0
      %5190 = vadd.xlane.f32.xlu0 %v5189
      %v5191 = vpop.xlane.xlu0 %5190
      %v5192 = vsel %vm4596, %v5060, 0.0
      %5193 = vadd.xlane.f32.xlu0 %v5192
      %v5194 = vpop.xlane.xlu0 %5193
      %v5195 = vsel %vm4596, %v5062, 0.0
      %5196 = vadd.xlane.f32.xlu0 %v5195
      %v5197 = vpop.xlane.xlu0 %5196
      %v5198 = vsel %vm4596, %v5064, 0.0
      %5199 = vadd.xlane.f32.xlu0 %v5198
      %v5200 = vpop.xlane.xlu0 %5199
      %v5201 = vsel %vm4596, %v5066, 0.0
      %5202 = vadd.xlane.f32.xlu0 %v5201
      %v5203 = vpop.xlane.xlu0 %5202
      %v5204 = vsel %vm4596, %v5068, 0.0
      %5205 = vadd.xlane.f32.xlu0 %v5204
      %v5206 = vpop.xlane.xlu0 %5205
      %v5207 = vsel %vm4596, %v5070, 0.0
      %5208 = vadd.xlane.f32.xlu0 %v5207
      %v5209 = vpop.xlane.xlu0 %5208
      %v5210 = vsel %vm4596, %v5072, 0.0
      %5211 = vadd.xlane.f32.xlu0 %v5210
      %v5212 = vpop.xlane.xlu0 %5211
      %v5213 = vsel %vm4596, %v5074, 0.0
      %5214 = vadd.xlane.f32.xlu0 %v5213
      %v5215 = vpop.xlane.xlu0 %5214
      %v5216 = vsel %vm4596, %v5076, 0.0
      %5217 = vadd.xlane.f32.xlu0 %v5216
      %v5218 = vpop.xlane.xlu0 %5217
      %v5219 = vsel %vm4596, %v5078, 0.0
      %5220 = vadd.xlane.f32.xlu0 %v5219
      %v5221 = vpop.xlane.xlu0 %5220
      %v5222 = vsel %vm4596, %v5080, 0.0
      %5223 = vadd.xlane.f32.xlu0 %v5222
      %v5224 = vpop.xlane.xlu0 %5223
      %5273 = vrot.lane.b32.xlu0 %v4986, 64
      %v5274 = vpop.permute.xlu0 %5273
      %5275 = vrot.lane.b32.xlu0 %v4988, 64
      %v5276 = vpop.permute.xlu0 %5275
      %5277 = vrot.lane.b32.xlu0 %v4990, 64
      %v5278 = vpop.permute.xlu0 %5277
      %5279 = vrot.lane.b32.xlu0 %v4992, 64
      %v5280 = vpop.permute.xlu0 %5279
      %5281 = vrot.lane.b32.xlu0 %v4994, 64
      %v5282 = vpop.permute.xlu0 %5281
      %5283 = vrot.lane.b32.xlu0 %v4996, 64
      %v5284 = vpop.permute.xlu0 %5283
      %5285 = vrot.lane.b32.xlu0 %v4998, 64
      %v5286 = vpop.permute.xlu0 %5285
      %5287 = vrot.lane.b32.xlu0 %v5000, 64
      %v5288 = vpop.permute.xlu0 %5287
      %5289 = vrot.lane.b32.xlu0 %v5002, 64
      %v5290 = vpop.permute.xlu0 %5289
      %5291 = vrot.lane.b32.xlu0 %v5004, 64
      %v5292 = vpop.permute.xlu0 %5291
      %5293 = vrot.lane.b32.xlu0 %v5006, 64
      %v5294 = vpop.permute.xlu0 %5293
      %5295 = vrot.lane.b32.xlu0 %v5008, 64
      %v5296 = vpop.permute.xlu0 %5295
      %5297 = vrot.lane.b32.xlu0 %v5010, 64
      %v5298 = vpop.permute.xlu0 %5297
      %5299 = vrot.lane.b32.xlu0 %v5012, 64
      %v5300 = vpop.permute.xlu0 %5299
      %5301 = vrot.lane.b32.xlu0 %v5014, 64
      %v5302 = vpop.permute.xlu0 %5301
      %5303 = vrot.lane.b32.xlu0 %v5016, 64
      %v5304 = vpop.permute.xlu0 %5303
      %5305 = vrot.lane.b32.xlu0 %v5018, 64
      %v5306 = vpop.permute.xlu0 %5305
      %5307 = vrot.lane.b32.xlu0 %v5020, 64
      %v5308 = vpop.permute.xlu0 %5307
      %5309 = vrot.lane.b32.xlu0 %v5022, 64
      %v5310 = vpop.permute.xlu0 %5309
      %5311 = vrot.lane.b32.xlu0 %v5024, 64
      %v5312 = vpop.permute.xlu0 %5311
      %5313 = vrot.lane.b32.xlu0 %v5026, 64
      %v5314 = vpop.permute.xlu0 %5313
      %5315 = vrot.lane.b32.xlu0 %v5028, 64
      %v5316 = vpop.permute.xlu0 %5315
      %5317 = vrot.lane.b32.xlu0 %v5030, 64
      %v5318 = vpop.permute.xlu0 %5317
      %5319 = vrot.lane.b32.xlu0 %v5032, 64
      %v5320 = vpop.permute.xlu0 %5319
      %5321 = vrot.lane.b32.xlu0 %v5034, 64
      %v5322 = vpop.permute.xlu0 %5321
      %5323 = vrot.lane.b32.xlu0 %v5036, 64
      %v5324 = vpop.permute.xlu0 %5323
      %5325 = vrot.lane.b32.xlu0 %v5038, 64
      %v5326 = vpop.permute.xlu0 %5325
      %5327 = vrot.lane.b32.xlu0 %v5040, 64
      %v5328 = vpop.permute.xlu0 %5327
      %5329 = vrot.lane.b32.xlu0 %v5042, 64
      %v5330 = vpop.permute.xlu0 %5329
      %5331 = vrot.lane.b32.xlu0 %v5044, 64
      %v5332 = vpop.permute.xlu0 %5331
      %5333 = vrot.lane.b32.xlu0 %v5046, 64
      %v5334 = vpop.permute.xlu0 %5333
      %5335 = vrot.lane.b32.xlu0 %v5048, 64
      %v5336 = vpop.permute.xlu0 %5335
      %5337 = vrot.lane.b32.xlu0 %v5050, 64
      %v5338 = vpop.permute.xlu0 %5337
      %5339 = vrot.lane.b32.xlu0 %v5052, 64
      %v5340 = vpop.permute.xlu0 %5339
      %5341 = vrot.lane.b32.xlu0 %v5054, 64
      %v5342 = vpop.permute.xlu0 %5341
      %5343 = vrot.lane.b32.xlu0 %v5056, 64
      %v5344 = vpop.permute.xlu0 %5343
      %5345 = vrot.lane.b32.xlu0 %v5058, 64
      %v5346 = vpop.permute.xlu0 %5345
      %5347 = vrot.lane.b32.xlu0 %v5060, 64
      %v5348 = vpop.permute.xlu0 %5347
      %5349 = vrot.lane.b32.xlu0 %v5062, 64
      %v5350 = vpop.permute.xlu0 %5349
      %5351 = vrot.lane.b32.xlu0 %v5064, 64
      %v5352 = vpop.permute.xlu0 %5351
      %5353 = vrot.lane.b32.xlu0 %v5066, 64
      %v5354 = vpop.permute.xlu0 %5353
      %5355 = vrot.lane.b32.xlu0 %v5068, 64
      %v5356 = vpop.permute.xlu0 %5355
      %5357 = vrot.lane.b32.xlu0 %v5070, 64
      %v5358 = vpop.permute.xlu0 %5357
      %5359 = vrot.lane.b32.xlu0 %v5072, 64
      %v5360 = vpop.permute.xlu0 %5359
      %5361 = vrot.lane.b32.xlu0 %v5074, 64
      %v5362 = vpop.permute.xlu0 %5361
      %5363 = vrot.lane.b32.xlu0 %v5076, 64
      %v5364 = vpop.permute.xlu0 %5363
      %5365 = vrot.lane.b32.xlu0 %v5078, 64
      %v5366 = vpop.permute.xlu0 %5365
      %5367 = vrot.lane.b32.xlu0 %v5080, 64
      %v5368 = vpop.permute.xlu0 %5367
      %v5417 = vsel %vm4596, %v5274, 0.0
      %5418 = vadd.xlane.f32.xlu0 %v5417
      %v5419 = vpop.xlane.xlu0 %5418
      %v5420 = vsel %vm4596, %v5276, 0.0
      %5421 = vadd.xlane.f32.xlu0 %v5420
      %v5422 = vpop.xlane.xlu0 %5421
      %v5423 = vsel %vm4596, %v5278, 0.0
      %5424 = vadd.xlane.f32.xlu0 %v5423
      %v5425 = vpop.xlane.xlu0 %5424
      %v5426 = vsel %vm4596, %v5280, 0.0
      %5427 = vadd.xlane.f32.xlu0 %v5426
      %v5428 = vpop.xlane.xlu0 %5427
      %v5429 = vsel %vm4596, %v5282, 0.0
      %5430 = vadd.xlane.f32.xlu0 %v5429
      %v5431 = vpop.xlane.xlu0 %5430
      %v5432 = vsel %vm4596, %v5284, 0.0
      %5433 = vadd.xlane.f32.xlu0 %v5432
      %v5434 = vpop.xlane.xlu0 %5433
      %v5435 = vsel %vm4596, %v5286, 0.0
      %5436 = vadd.xlane.f32.xlu0 %v5435
      %v5437 = vpop.xlane.xlu0 %5436
      %v5438 = vsel %vm4596, %v5288, 0.0
      %5439 = vadd.xlane.f32.xlu0 %v5438
      %v5440 = vpop.xlane.xlu0 %5439
      %v5441 = vsel %vm4596, %v5290, 0.0
      %5442 = vadd.xlane.f32.xlu0 %v5441
      %v5443 = vpop.xlane.xlu0 %5442
      %v5444 = vsel %vm4596, %v5292, 0.0
      %5445 = vadd.xlane.f32.xlu0 %v5444
      %v5446 = vpop.xlane.xlu0 %5445
      %v5447 = vsel %vm4596, %v5294, 0.0
      %5448 = vadd.xlane.f32.xlu0 %v5447
      %v5449 = vpop.xlane.xlu0 %5448
      %v5450 = vsel %vm4596, %v5296, 0.0
      %5451 = vadd.xlane.f32.xlu0 %v5450
      %v5452 = vpop.xlane.xlu0 %5451
      %v5453 = vsel %vm4596, %v5298, 0.0
      %5454 = vadd.xlane.f32.xlu0 %v5453
      %v5455 = vpop.xlane.xlu0 %5454
      %v5456 = vsel %vm4596, %v5300, 0.0
      %5457 = vadd.xlane.f32.xlu0 %v5456
      %v5458 = vpop.xlane.xlu0 %5457
      %v5459 = vsel %vm4596, %v5302, 0.0
      %5460 = vadd.xlane.f32.xlu0 %v5459
      %v5461 = vpop.xlane.xlu0 %5460
      %v5462 = vsel %vm4596, %v5304, 0.0
      %5463 = vadd.xlane.f32.xlu0 %v5462
      %v5464 = vpop.xlane.xlu0 %5463
      %v5465 = vsel %vm4596, %v5306, 0.0
      %5466 = vadd.xlane.f32.xlu0 %v5465
      %v5467 = vpop.xlane.xlu0 %5466
      %v5468 = vsel %vm4596, %v5308, 0.0
      %5469 = vadd.xlane.f32.xlu0 %v5468
      %v5470 = vpop.xlane.xlu0 %5469
      %v5471 = vsel %vm4596, %v5310, 0.0
      %5472 = vadd.xlane.f32.xlu0 %v5471
      %v5473 = vpop.xlane.xlu0 %5472
      %v5474 = vsel %vm4596, %v5312, 0.0
      %5475 = vadd.xlane.f32.xlu0 %v5474
      %v5476 = vpop.xlane.xlu0 %5475
      %v5477 = vsel %vm4596, %v5314, 0.0
      %5478 = vadd.xlane.f32.xlu0 %v5477
      %v5479 = vpop.xlane.xlu0 %5478
      %v5480 = vsel %vm4596, %v5316, 0.0
      %5481 = vadd.xlane.f32.xlu0 %v5480
      %v5482 = vpop.xlane.xlu0 %5481
      %v5483 = vsel %vm4596, %v5318, 0.0
      %5484 = vadd.xlane.f32.xlu0 %v5483
      %v5485 = vpop.xlane.xlu0 %5484
      %v5486 = vsel %vm4596, %v5320, 0.0
      %5487 = vadd.xlane.f32.xlu0 %v5486
      %v5488 = vpop.xlane.xlu0 %5487
      %v5489 = vsel %vm4596, %v5322, 0.0
      %5490 = vadd.xlane.f32.xlu0 %v5489
      %v5491 = vpop.xlane.xlu0 %5490
      %v5492 = vsel %vm4596, %v5324, 0.0
      %5493 = vadd.xlane.f32.xlu0 %v5492
      %v5494 = vpop.xlane.xlu0 %5493
      %v5495 = vsel %vm4596, %v5326, 0.0
      %5496 = vadd.xlane.f32.xlu0 %v5495
      %v5497 = vpop.xlane.xlu0 %5496
      %v5498 = vsel %vm4596, %v5328, 0.0
      %5499 = vadd.xlane.f32.xlu0 %v5498
      %v5500 = vpop.xlane.xlu0 %5499
      %v5501 = vsel %vm4596, %v5330, 0.0
      %5502 = vadd.xlane.f32.xlu0 %v5501
      %v5503 = vpop.xlane.xlu0 %5502
      %v5504 = vsel %vm4596, %v5332, 0.0
      %5505 = vadd.xlane.f32.xlu0 %v5504
      %v5506 = vpop.xlane.xlu0 %5505
      %v5507 = vsel %vm4596, %v5334, 0.0
      %5508 = vadd.xlane.f32.xlu0 %v5507
      %v5509 = vpop.xlane.xlu0 %5508
      %v5510 = vsel %vm4596, %v5336, 0.0
      %5511 = vadd.xlane.f32.xlu0 %v5510
      %v5512 = vpop.xlane.xlu0 %5511
      %v5513 = vsel %vm4596, %v5338, 0.0
      %5514 = vadd.xlane.f32.xlu0 %v5513
      %v5515 = vpop.xlane.xlu0 %5514
      %v5516 = vsel %vm4596, %v5340, 0.0
      %5517 = vadd.xlane.f32.xlu0 %v5516
      %v5518 = vpop.xlane.xlu0 %5517
      %v5519 = vsel %vm4596, %v5342, 0.0
      %5520 = vadd.xlane.f32.xlu0 %v5519
      %v5521 = vpop.xlane.xlu0 %5520
      %v5522 = vsel %vm4596, %v5344, 0.0
      %5523 = vadd.xlane.f32.xlu0 %v5522
      %v5524 = vpop.xlane.xlu0 %5523
      %v5525 = vsel %vm4596, %v5346, 0.0
      %5526 = vadd.xlane.f32.xlu0 %v5525
      %v5527 = vpop.xlane.xlu0 %5526
      %v5528 = vsel %vm4596, %v5348, 0.0
      %5529 = vadd.xlane.f32.xlu0 %v5528
      %v5530 = vpop.xlane.xlu0 %5529
      %v5531 = vsel %vm4596, %v5350, 0.0
      %5532 = vadd.xlane.f32.xlu0 %v5531
      %v5533 = vpop.xlane.xlu0 %5532
      %v5534 = vsel %vm4596, %v5352, 0.0
      %5535 = vadd.xlane.f32.xlu0 %v5534
      %v5536 = vpop.xlane.xlu0 %5535
      %v5537 = vsel %vm4596, %v5354, 0.0
      %5538 = vadd.xlane.f32.xlu0 %v5537
      %v5539 = vpop.xlane.xlu0 %5538
      %v5540 = vsel %vm4596, %v5356, 0.0
      %5541 = vadd.xlane.f32.xlu0 %v5540
      %v5542 = vpop.xlane.xlu0 %5541
      %v5543 = vsel %vm4596, %v5358, 0.0
      %5544 = vadd.xlane.f32.xlu0 %v5543
      %v5545 = vpop.xlane.xlu0 %5544
      %v5546 = vsel %vm4596, %v5360, 0.0
      %5547 = vadd.xlane.f32.xlu0 %v5546
      %v5548 = vpop.xlane.xlu0 %5547
      %v5549 = vsel %vm4596, %v5362, 0.0
      %5550 = vadd.xlane.f32.xlu0 %v5549
      %v5551 = vpop.xlane.xlu0 %5550
      %v5552 = vsel %vm4596, %v5364, 0.0
      %5553 = vadd.xlane.f32.xlu0 %v5552
      %v5554 = vpop.xlane.xlu0 %5553
      %v5555 = vsel %vm4596, %v5366, 0.0
      %5556 = vadd.xlane.f32.xlu0 %v5555
      %v5557 = vpop.xlane.xlu0 %5556
      %v5558 = vsel %vm4596, %v5368, 0.0
      %5559 = vadd.xlane.f32.xlu0 %v5558
      %v5560 = vpop.xlane.xlu0 %5559
      %v5561 = vrcp.pop %v5083
      %v5562 = vmul.f32 1.0, %v5561
      %v5563 = vrcp.pop %v5086
      %v5564 = vmul.f32 1.0, %v5563
      %v5565 = vrcp.pop %v5089
      %v5566 = vmul.f32 1.0, %v5565
      %v5567 = vrcp.pop %v5092
      %v5568 = vmul.f32 1.0, %v5567
      %v5569 = vrcp.pop %v5095
      %v5570 = vmul.f32 1.0, %v5569
      %v5571 = vrcp.pop %v5098
      %v5572 = vmul.f32 1.0, %v5571
      %v5573 = vrcp.pop %v5101
      %v5574 = vmul.f32 1.0, %v5573
      %v5575 = vrcp.pop %v5104
      %v5576 = vmul.f32 1.0, %v5575
      %v5577 = vrcp.pop %v5107
      %v5578 = vmul.f32 1.0, %v5577
      %v5579 = vrcp.pop %v5110
      %v5580 = vmul.f32 1.0, %v5579
      %v5581 = vrcp.pop %v5113
      %v5582 = vmul.f32 1.0, %v5581
      %v5583 = vrcp.pop %v5116
      %v5584 = vmul.f32 1.0, %v5583
      %v5585 = vrcp.pop %v5119
      %v5586 = vmul.f32 1.0, %v5585
      %v5587 = vrcp.pop %v5122
      %v5588 = vmul.f32 1.0, %v5587
      %v5589 = vrcp.pop %v5125
      %v5590 = vmul.f32 1.0, %v5589
      %v5591 = vrcp.pop %v5128
      %v5592 = vmul.f32 1.0, %v5591
      %v5593 = vrcp.pop %v5131
      %v5594 = vmul.f32 1.0, %v5593
      %v5595 = vrcp.pop %v5134
      %v5596 = vmul.f32 1.0, %v5595
      %v5597 = vrcp.pop %v5137
      %v5598 = vmul.f32 1.0, %v5597
      %v5599 = vrcp.pop %v5140
      %v5600 = vmul.f32 1.0, %v5599
      %v5601 = vrcp.pop %v5143
      %v5602 = vmul.f32 1.0, %v5601
      %v5603 = vrcp.pop %v5146
      %v5604 = vmul.f32 1.0, %v5603
      %v5605 = vrcp.pop %v5149
      %v5606 = vmul.f32 1.0, %v5605
      %v5607 = vrcp.pop %v5152
      %v5608 = vmul.f32 1.0, %v5607
      %v5609 = vrcp.pop %v5155
      %v5610 = vmul.f32 1.0, %v5609
      %v5611 = vrcp.pop %v5158
      %v5612 = vmul.f32 1.0, %v5611
      %v5613 = vrcp.pop %v5161
      %v5614 = vmul.f32 1.0, %v5613
      %v5615 = vrcp.pop %v5164
      %v5616 = vmul.f32 1.0, %v5615
      %v5617 = vrcp.pop %v5167
      %v5618 = vmul.f32 1.0, %v5617
      %v5619 = vrcp.pop %v5170
      %v5620 = vmul.f32 1.0, %v5619
      %v5621 = vrcp.pop %v5173
      %v5622 = vmul.f32 1.0, %v5621
      %v5623 = vrcp.pop %v5176
      %v5624 = vmul.f32 1.0, %v5623
      %v5625 = vrcp.pop %v5179
      %v5626 = vmul.f32 1.0, %v5625
      %v5627 = vrcp.pop %v5182
      %v5628 = vmul.f32 1.0, %v5627
      %v5629 = vrcp.pop %v5185
      %v5630 = vmul.f32 1.0, %v5629
      %v5631 = vrcp.pop %v5188
      %v5632 = vmul.f32 1.0, %v5631
      %v5633 = vrcp.pop %v5191
      %v5634 = vmul.f32 1.0, %v5633
      %v5635 = vrcp.pop %v5194
      %v5636 = vmul.f32 1.0, %v5635
      %v5637 = vrcp.pop %v5197
      %v5638 = vmul.f32 1.0, %v5637
      %v5639 = vrcp.pop %v5200
      %v5640 = vmul.f32 1.0, %v5639
      %v5641 = vrcp.pop %v5203
      %v5642 = vmul.f32 1.0, %v5641
      %v5643 = vrcp.pop %v5206
      %v5644 = vmul.f32 1.0, %v5643
      %v5645 = vrcp.pop %v5209
      %v5646 = vmul.f32 1.0, %v5645
      %v5647 = vrcp.pop %v5212
      %v5648 = vmul.f32 1.0, %v5647
      %v5649 = vrcp.pop %v5215
      %v5650 = vmul.f32 1.0, %v5649
      %v5651 = vrcp.pop %v5218
      %v5652 = vmul.f32 1.0, %v5651
      %v5653 = vrcp.pop %v5221
      %v5654 = vmul.f32 1.0, %v5653
      %v5655 = vrcp.pop %v5224
      %v5656 = vmul.f32 1.0, %v5655
      %v5657 = vrcp.pop %v5419
      %v5658 = vmul.f32 1.0, %v5657
      %v5659 = vrcp.pop %v5422
      %v5660 = vmul.f32 1.0, %v5659
      %v5661 = vrcp.pop %v5425
      %v5662 = vmul.f32 1.0, %v5661
      %v5663 = vrcp.pop %v5428
      %v5664 = vmul.f32 1.0, %v5663
      %v5665 = vrcp.pop %v5431
      %v5666 = vmul.f32 1.0, %v5665
      %v5667 = vrcp.pop %v5434
      %v5668 = vmul.f32 1.0, %v5667
      %v5669 = vrcp.pop %v5437
      %v5670 = vmul.f32 1.0, %v5669
      %v5671 = vrcp.pop %v5440
      %v5672 = vmul.f32 1.0, %v5671
      %v5673 = vrcp.pop %v5443
      %v5674 = vmul.f32 1.0, %v5673
      %v5675 = vrcp.pop %v5446
      %v5676 = vmul.f32 1.0, %v5675
      %v5677 = vrcp.pop %v5449
      %v5678 = vmul.f32 1.0, %v5677
      %v5679 = vrcp.pop %v5452
      %v5680 = vmul.f32 1.0, %v5679
      %v5681 = vrcp.pop %v5455
      %v5682 = vmul.f32 1.0, %v5681
      %v5683 = vrcp.pop %v5458
      %v5684 = vmul.f32 1.0, %v5683
      %v5685 = vrcp.pop %v5461
      %v5686 = vmul.f32 1.0, %v5685
      %v5687 = vrcp.pop %v5464
      %v5688 = vmul.f32 1.0, %v5687
      %v5689 = vrcp.pop %v5467
      %v5690 = vmul.f32 1.0, %v5689
      %v5691 = vrcp.pop %v5470
      %v5692 = vmul.f32 1.0, %v5691
      %v5693 = vrcp.pop %v5473
      %v5694 = vmul.f32 1.0, %v5693
      %v5695 = vrcp.pop %v5476
      %v5696 = vmul.f32 1.0, %v5695
      %v5697 = vrcp.pop %v5479
      %v5698 = vmul.f32 1.0, %v5697
      %v5699 = vrcp.pop %v5482
      %v5700 = vmul.f32 1.0, %v5699
      %v5701 = vrcp.pop %v5485
      %v5702 = vmul.f32 1.0, %v5701
      %v5703 = vrcp.pop %v5488
      %v5704 = vmul.f32 1.0, %v5703
      %v5705 = vrcp.pop %v5491
      %v5706 = vmul.f32 1.0, %v5705
      %v5707 = vrcp.pop %v5494
      %v5708 = vmul.f32 1.0, %v5707
      %v5709 = vrcp.pop %v5497
      %v5710 = vmul.f32 1.0, %v5709
      %v5711 = vrcp.pop %v5500
      %v5712 = vmul.f32 1.0, %v5711
      %v5713 = vrcp.pop %v5503
      %v5714 = vmul.f32 1.0, %v5713
      %v5715 = vrcp.pop %v5506
      %v5716 = vmul.f32 1.0, %v5715
      %v5717 = vrcp.pop %v5509
      %v5718 = vmul.f32 1.0, %v5717
      %v5719 = vrcp.pop %v5512
      %v5720 = vmul.f32 1.0, %v5719
      %v5721 = vrcp.pop %v5515
      %v5722 = vmul.f32 1.0, %v5721
      %v5723 = vrcp.pop %v5518
      %v5724 = vmul.f32 1.0, %v5723
      %v5725 = vrcp.pop %v5521
      %v5726 = vmul.f32 1.0, %v5725
      %v5727 = vrcp.pop %v5524
      %v5728 = vmul.f32 1.0, %v5727
      %v5729 = vrcp.pop %v5527
      %v5730 = vmul.f32 1.0, %v5729
      %v5731 = vrcp.pop %v5530
      %v5732 = vmul.f32 1.0, %v5731
      %v5733 = vrcp.pop %v5533
      %v5734 = vmul.f32 1.0, %v5733
      %v5735 = vrcp.pop %v5536
      %v5736 = vmul.f32 1.0, %v5735
      %v5737 = vrcp.pop %v5539
      %v5738 = vmul.f32 1.0, %v5737
      %v5739 = vrcp.pop %v5542
      %v5740 = vmul.f32 1.0, %v5739
      %v5741 = vrcp.pop %v5545
      %v5742 = vmul.f32 1.0, %v5741
      %v5743 = vrcp.pop %v5548
      %v5744 = vmul.f32 1.0, %v5743
      %v5745 = vrcp.pop %v5551
      %v5746 = vmul.f32 1.0, %v5745
      %v5747 = vrcp.pop %v5554
      %v5748 = vmul.f32 1.0, %v5747
      %v5749 = vrcp.pop %v5557
      %v5750 = vmul.f32 1.0, %v5749
      %v5751 = vrcp.pop %v5560
      %v5752 = vmul.f32 1.0, %v5751
      %v5753 = vsel %vm4888, %v5562, %v5658
      %v5754 = vsel %vm4888, %v5564, %v5660
      %v5755 = vsel %vm4888, %v5566, %v5662
      %v5756 = vsel %vm4888, %v5568, %v5664
      %v5757 = vsel %vm4888, %v5570, %v5666
      %v5758 = vsel %vm4888, %v5572, %v5668
      %v5759 = vsel %vm4888, %v5574, %v5670
      %v5760 = vsel %vm4888, %v5576, %v5672
      %v5761 = vsel %vm4888, %v5578, %v5674
      %v5762 = vsel %vm4888, %v5580, %v5676
      %v5763 = vsel %vm4888, %v5582, %v5678
      %v5764 = vsel %vm4888, %v5584, %v5680
      %v5765 = vsel %vm4888, %v5586, %v5682
      %v5766 = vsel %vm4888, %v5588, %v5684
      %v5767 = vsel %vm4888, %v5590, %v5686
      %v5768 = vsel %vm4888, %v5592, %v5688
      %v5769 = vsel %vm4888, %v5594, %v5690
      %v5770 = vsel %vm4888, %v5596, %v5692
      %v5771 = vsel %vm4888, %v5598, %v5694
      %v5772 = vsel %vm4888, %v5600, %v5696
      %v5773 = vsel %vm4888, %v5602, %v5698
      %v5774 = vsel %vm4888, %v5604, %v5700
      %v5775 = vsel %vm4888, %v5606, %v5702
      %v5776 = vsel %vm4888, %v5608, %v5704
      %v5777 = vsel %vm4888, %v5610, %v5706
      %v5778 = vsel %vm4888, %v5612, %v5708
      %v5779 = vsel %vm4888, %v5614, %v5710
      %v5780 = vsel %vm4888, %v5616, %v5712
      %v5781 = vsel %vm4888, %v5618, %v5714
      %v5782 = vsel %vm4888, %v5620, %v5716
      %v5783 = vsel %vm4888, %v5622, %v5718
      %v5784 = vsel %vm4888, %v5624, %v5720
      %v5785 = vsel %vm4888, %v5626, %v5722
      %v5786 = vsel %vm4888, %v5628, %v5724
      %v5787 = vsel %vm4888, %v5630, %v5726
      %v5788 = vsel %vm4888, %v5632, %v5728
      %v5789 = vsel %vm4888, %v5634, %v5730
      %v5790 = vsel %vm4888, %v5636, %v5732
      %v5791 = vsel %vm4888, %v5638, %v5734
      %v5792 = vsel %vm4888, %v5640, %v5736
      %v5793 = vsel %vm4888, %v5642, %v5738
      %v5794 = vsel %vm4888, %v5644, %v5740
      %v5795 = vsel %vm4888, %v5646, %v5742
      %v5796 = vsel %vm4888, %v5648, %v5744
      %v5797 = vsel %vm4888, %v5650, %v5746
      %v5798 = vsel %vm4888, %v5652, %v5748
      %v5799 = vsel %vm4888, %v5654, %v5750
      %v5800 = vsel %vm4888, %v5656, %v5752
      %v5801 = vmul.f32 %v4986, %v5753
      %v5802 = vmul.f32 %v4988, %v5754
      %v5803 = vmul.f32 %v4990, %v5755
      %v5804 = vmul.f32 %v4992, %v5756
      %v5805 = vmul.f32 %v4994, %v5757
      %v5806 = vmul.f32 %v4996, %v5758
      %v5807 = vmul.f32 %v4998, %v5759
      %v5808 = vmul.f32 %v5000, %v5760
      %v5809 = vmul.f32 %v5002, %v5761
      %v5810 = vmul.f32 %v5004, %v5762
      %v5811 = vmul.f32 %v5006, %v5763
      %v5812 = vmul.f32 %v5008, %v5764
      %v5813 = vmul.f32 %v5010, %v5765
      %v5814 = vmul.f32 %v5012, %v5766
      %v5815 = vmul.f32 %v5014, %v5767
      %v5816 = vmul.f32 %v5016, %v5768
      %v5817 = vmul.f32 %v5018, %v5769
      %v5818 = vmul.f32 %v5020, %v5770
      %v5819 = vmul.f32 %v5022, %v5771
      %v5820 = vmul.f32 %v5024, %v5772
      %v5821 = vmul.f32 %v5026, %v5773
      %v5822 = vmul.f32 %v5028, %v5774
      %v5823 = vmul.f32 %v5030, %v5775
      %v5824 = vmul.f32 %v5032, %v5776
      %v5825 = vmul.f32 %v5034, %v5777
      %v5826 = vmul.f32 %v5036, %v5778
      %v5827 = vmul.f32 %v5038, %v5779
      %v5828 = vmul.f32 %v5040, %v5780
      %v5829 = vmul.f32 %v5042, %v5781
      %v5830 = vmul.f32 %v5044, %v5782
      %v5831 = vmul.f32 %v5046, %v5783
      %v5832 = vmul.f32 %v5048, %v5784
      %v5833 = vmul.f32 %v5050, %v5785
      %v5834 = vmul.f32 %v5052, %v5786
      %v5835 = vmul.f32 %v5054, %v5787
      %v5836 = vmul.f32 %v5056, %v5788
      %v5837 = vmul.f32 %v5058, %v5789
      %v5838 = vmul.f32 %v5060, %v5790
      %v5839 = vmul.f32 %v5062, %v5791
      %v5840 = vmul.f32 %v5064, %v5792
      %v5841 = vmul.f32 %v5066, %v5793
      %v5842 = vmul.f32 %v5068, %v5794
      %v5843 = vmul.f32 %v5070, %v5795
      %v5844 = vmul.f32 %v5072, %v5796
      %v5845 = vmul.f32 %v5074, %v5797
      %v5846 = vmul.f32 %v5076, %v5798
      %v5847 = vmul.f32 %v5078, %v5799
      %v5848 = vmul.f32 %v5080, %v5800
      %v5849 = vpack.c.bf16 %v5802, %v5801
      %v5850 = vpack.c.bf16 %v5804, %v5803
      %v5851 = vpack.c.bf16 %v5806, %v5805
      %v5852 = vpack.c.bf16 %v5808, %v5807
      %v5853 = vpack.c.bf16 %v5810, %v5809
      %v5854 = vpack.c.bf16 %v5812, %v5811
      %v5855 = vpack.c.bf16 %v5814, %v5813
      %v5856 = vpack.c.bf16 %v5816, %v5815
      %v5857 = vpack.c.bf16 %v5818, %v5817
      %v5858 = vpack.c.bf16 %v5820, %v5819
      %v5859 = vpack.c.bf16 %v5822, %v5821
      %v5860 = vpack.c.bf16 %v5824, %v5823
      %v5861 = vpack.c.bf16 %v5826, %v5825
      %v5862 = vpack.c.bf16 %v5828, %v5827
      %v5863 = vpack.c.bf16 %v5830, %v5829
      %v5864 = vpack.c.bf16 %v5832, %v5831
      %v5865 = vpack.c.bf16 %v5834, %v5833
      %v5866 = vpack.c.bf16 %v5836, %v5835
      %v5867 = vpack.c.bf16 %v5838, %v5837
      %v5868 = vpack.c.bf16 %v5840, %v5839
      %v5869 = vpack.c.bf16 %v5842, %v5841
      %v5870 = vpack.c.bf16 %v5844, %v5843
      %v5871 = vpack.c.bf16 %v5846, %v5845
      %v5872 = vpack.c.bf16 %v5848, %v5847
      %v5897 = vunpack.c.l.b16 %v5849
      %v5898 = vunpack.c.h.b16 %v5849
      %v5899 = vunpack.c.l.b16 %v5850
      %v5900 = vunpack.c.h.b16 %v5850
      %v5901 = vunpack.c.l.b16 %v5851
      %v5902 = vunpack.c.h.b16 %v5851
      %v5903 = vunpack.c.l.b16 %v5852
      %v5904 = vunpack.c.h.b16 %v5852
      %v5905 = vunpack.c.l.b16 %v5853
      %v5906 = vunpack.c.h.b16 %v5853
      %v5907 = vunpack.c.l.b16 %v5854
      %v5908 = vunpack.c.h.b16 %v5854
      %v5909 = vunpack.c.l.b16 %v5855
      %v5910 = vunpack.c.h.b16 %v5855
      %v5911 = vunpack.c.l.b16 %v5856
      %v5912 = vunpack.c.h.b16 %v5856
      %v5913 = vunpack.c.l.b16 %v5857
      %v5914 = vunpack.c.h.b16 %v5857
      %v5915 = vunpack.c.l.b16 %v5858
      %v5916 = vunpack.c.h.b16 %v5858
      %v5917 = vunpack.c.l.b16 %v5859
      %v5918 = vunpack.c.h.b16 %v5859
      %v5919 = vunpack.c.l.b16 %v5860
      %v5920 = vunpack.c.h.b16 %v5860
      %v5921 = vunpack.c.l.b16 %v5861
      %v5922 = vunpack.c.h.b16 %v5861
      %v5923 = vunpack.c.l.b16 %v5862
      %v5924 = vunpack.c.h.b16 %v5862
      %v5925 = vunpack.c.l.b16 %v5863
      %v5926 = vunpack.c.h.b16 %v5863
      %v5927 = vunpack.c.l.b16 %v5864
      %v5928 = vunpack.c.h.b16 %v5864
      %v5929 = vunpack.c.l.b16 %v5865
      %v5930 = vunpack.c.h.b16 %v5865
      %v5931 = vunpack.c.l.b16 %v5866
      %v5932 = vunpack.c.h.b16 %v5866
      %v5933 = vunpack.c.l.b16 %v5867
      %v5934 = vunpack.c.h.b16 %v5867
      %v5935 = vunpack.c.l.b16 %v5868
      %v5936 = vunpack.c.h.b16 %v5868
      %v5937 = vunpack.c.l.b16 %v5869
      %v5938 = vunpack.c.h.b16 %v5869
      %v5939 = vunpack.c.l.b16 %v5870
      %v5940 = vunpack.c.h.b16 %v5870
      %v5941 = vunpack.c.l.b16 %v5871
      %v5942 = vunpack.c.h.b16 %v5871
      %v5943 = vunpack.c.l.b16 %v5872
      %v5944 = vunpack.c.h.b16 %v5872
      %v5945 = vpack.c.b16 %v5897, %v5897
      %v5946 = vpack.c.b16 %v5898, %v5898
      %v5947 = vpack.c.b16 %v5899, %v5899
      %v5948 = vpack.c.b16 %v5900, %v5900
      %v5949 = vpack.c.b16 %v5901, %v5901
      %v5950 = vpack.c.b16 %v5902, %v5902
      %v5951 = vpack.c.b16 %v5903, %v5903
      %v5952 = vpack.c.b16 %v5904, %v5904
      %v5953 = vpack.c.b16 %v5905, %v5905
      %v5954 = vpack.c.b16 %v5906, %v5906
      %v5955 = vpack.c.b16 %v5907, %v5907
      %v5956 = vpack.c.b16 %v5908, %v5908
      %v5957 = vpack.c.b16 %v5909, %v5909
      %v5958 = vpack.c.b16 %v5910, %v5910
      %v5959 = vpack.c.b16 %v5911, %v5911
      %v5960 = vpack.c.b16 %v5912, %v5912
      %v5961 = vpack.c.b16 %v5913, %v5913
      %v5962 = vpack.c.b16 %v5914, %v5914
      %v5963 = vpack.c.b16 %v5915, %v5915
      %v5964 = vpack.c.b16 %v5916, %v5916
      %v5965 = vpack.c.b16 %v5917, %v5917
      %v5966 = vpack.c.b16 %v5918, %v5918
      %v5967 = vpack.c.b16 %v5919, %v5919
      %v5968 = vpack.c.b16 %v5920, %v5920
      %v5969 = vpack.c.b16 %v5921, %v5921
      %v5970 = vpack.c.b16 %v5922, %v5922
      %v5971 = vpack.c.b16 %v5923, %v5923
      %v5972 = vpack.c.b16 %v5924, %v5924
      %v5973 = vpack.c.b16 %v5925, %v5925
      %v5974 = vpack.c.b16 %v5926, %v5926
      %v5975 = vpack.c.b16 %v5927, %v5927
      %v5976 = vpack.c.b16 %v5928, %v5928
      %v5977 = vpack.c.b16 %v5929, %v5929
      %v5978 = vpack.c.b16 %v5930, %v5930
      %v5979 = vpack.c.b16 %v5931, %v5931
      %v5980 = vpack.c.b16 %v5932, %v5932
      %v5981 = vpack.c.b16 %v5933, %v5933
      %v5982 = vpack.c.b16 %v5934, %v5934
      %v5983 = vpack.c.b16 %v5935, %v5935
      %v5984 = vpack.c.b16 %v5936, %v5936
      %v5985 = vpack.c.b16 %v5937, %v5937
      %v5986 = vpack.c.b16 %v5938, %v5938
      %v5987 = vpack.c.b16 %v5939, %v5939
      %v5988 = vpack.c.b16 %v5940, %v5940
      %v5989 = vpack.c.b16 %v5941, %v5941
      %v5990 = vpack.c.b16 %v5942, %v5942
      %v5991 = vpack.c.b16 %v5943, %v5943
      %v5992 = vpack.c.b16 %v5944, %v5944
      %6041 = vst [vmem:[%s260] sm:$0xf] %v5945
      %6042 = vst [vmem:[%s260 + $0x4] sm:$0xf] %v5946
      %6043 = vst [vmem:[%s260 + $0x8] sm:$0xf] %v5947
      %6044 = vst [vmem:[%s260 + $0xc] sm:$0xf] %v5948
      %6045 = vst [vmem:[%s260 + $0x10] sm:$0xf] %v5949
      %6046 = vst [vmem:[%s260 + $0x14] sm:$0xf] %v5950
      %6047 = vst [vmem:[%s260 + $0x18] sm:$0xf] %v5951
      %6048 = vst [vmem:[%s260 + $0x1c] sm:$0xf] %v5952
      %6049 = vst [vmem:[%s260 + $0x20] sm:$0xf] %v5953
      %6050 = vst [vmem:[%s260 + $0x24] sm:$0xf] %v5954
      %6051 = vst [vmem:[%s260 + $0x28] sm:$0xf] %v5955
      %6052 = vst [vmem:[%s260 + $0x2c] sm:$0xf] %v5956
      %6053 = vst [vmem:[%s260 + $0x30] sm:$0xf] %v5957
      %6054 = vst [vmem:[%s260 + $0x34] sm:$0xf] %v5958
      %6055 = vst [vmem:[%s260 + $0x38] sm:$0xf] %v5959
      %6056 = vst [vmem:[%s260 + $0x3c] sm:$0xf] %v5960
      %6057 = vst [vmem:[%s260 + $0x40] sm:$0xf] %v5961
      %6058 = vst [vmem:[%s260 + $0x44] sm:$0xf] %v5962
      %6059 = vst [vmem:[%s260 + $0x48] sm:$0xf] %v5963
      %6060 = vst [vmem:[%s260 + $0x4c] sm:$0xf] %v5964
      %6061 = vst [vmem:[%s260 + $0x50] sm:$0xf] %v5965
      %6062 = vst [vmem:[%s260 + $0x54] sm:$0xf] %v5966
      %6063 = vst [vmem:[%s260 + $0x58] sm:$0xf] %v5967
      %6064 = vst [vmem:[%s260 + $0x5c] sm:$0xf] %v5968
      %6065 = vst [vmem:[%s260 + $0x60] sm:$0xf] %v5969
      %6066 = vst [vmem:[%s260 + $0x64] sm:$0xf] %v5970
      %6067 = vst [vmem:[%s260 + $0x68] sm:$0xf] %v5971
      %6068 = vst [vmem:[%s260 + $0x6c] sm:$0xf] %v5972
      %6069 = vst [vmem:[%s260 + $0x70] sm:$0xf] %v5973
      %6070 = vst [vmem:[%s260 + $0x74] sm:$0xf] %v5974
      %6071 = vst [vmem:[%s260 + $0x78] sm:$0xf] %v5975
      %6072 = vst [vmem:[%s260 + $0x7c] sm:$0xf] %v5976
      %6073 = vst [vmem:[%s260 + $0x80] sm:$0xf] %v5977
      %6074 = vst [vmem:[%s260 + $0x84] sm:$0xf] %v5978
      %6075 = vst [vmem:[%s260 + $0x88] sm:$0xf] %v5979
      %6076 = vst [vmem:[%s260 + $0x8c] sm:$0xf] %v5980
      %6077 = vst [vmem:[%s260 + $0x90] sm:$0xf] %v5981
      %6078 = vst [vmem:[%s260 + $0x94] sm:$0xf] %v5982
      %6079 = vst [vmem:[%s260 + $0x98] sm:$0xf] %v5983
      %6080 = vst [vmem:[%s260 + $0x9c] sm:$0xf] %v5984
      %6081 = vst [vmem:[%s260 + $0xa0] sm:$0xf] %v5985
      %6082 = vst [vmem:[%s260 + $0xa4] sm:$0xf] %v5986
      %6083 = vst [vmem:[%s260 + $0xa8] sm:$0xf] %v5987
      %6084 = vst [vmem:[%s260 + $0xac] sm:$0xf] %v5988
      %6085 = vst [vmem:[%s260 + $0xb0] sm:$0xf] %v5989
      %6086 = vst [vmem:[%s260 + $0xb4] sm:$0xf] %v5990
      %6087 = vst [vmem:[%s260 + $0xb8] sm:$0xf] %v5991
      %6088 = vst [vmem:[%s260 + $0xbc] sm:$0xf] %v5992
      %s6089 = smul.u32 48, %s21
      %p6090 = scmp.lt.s32.totalorder %s20, 1
      %s6091 = scalar_select %p6090, %s20, 1
      %p6092 = scmp.lt.s32.totalorder %s6089, 47
      %s6093 = scalar_select %p6092, %s6089, 47
      %s6094 = smul.addr %s6091, 48
      %s6095 = sadd.s32 %s6093, %s6094
      %s6096 = smul.addr %s6095, 4
      %s6097 = scalar_lea.vmem %s5, %s6096
      // Predicated region
      $region41: #{flowhead_cla.1} parent=39 // pred_check
        %p6098 = pneg %p160
      $region42: #{flowhead_cla.1} parent=39 // pred_check_branch
        %6100 = sbr.rel (%p6098) target = $region44
      $region43: #{flowhead_cla.1} parent=39 // pred_region
        %s6101 = smul.u32 48, %s21
      $region44: #{flowhead_cla.1} parent=39 // pred_fallthru
        _
    $region40: #{flowhead_cla.1} parent=5 // pred_fallthru
      _
    %p6102 = scmp.le.s32.totalorder 2, %s11
    // Predicated region
    $region45: #{flowhead_cla.1} parent=5 // pred_check
      %p6103 = pneg %p6102
    $region46: #{flowhead_cla.1} parent=5 // pred_check_branch
      %6105 = sbr.rel (%p6103) target = $region48
    $region47: #{flowhead_cla.1} parent=5 // pred_region
      %s6106 = ssub.s32 %s11, 2
      // Predicated region
      $region49: #{flowhead_cla.1} parent=47 // pred_check
        %p6107 = pneg %p166
      $region50: #{flowhead_cla.1} parent=47 // pred_check_branch
        %6109 = sbr.rel (%p6107) target = $region52
      $region51: #{flowhead_cla.1} parent=47 // pred_region
        %s6110 = smul.u32 48, %s23
        %p6111 = scmp.lt.s32.totalorder %s22, 1
        %s6112 = scalar_select %p6111, %s22, 1
        %p6113 = scmp.lt.s32.totalorder %s6110, 47
        %s6114 = scalar_select %p6113, %s6110, 47
        %s6115 = smul.addr %s6112, 48
        %s6116 = sadd.s32 %s6114, %s6115
        %s6117 = smul.addr %s6116, 4
        %s6118 = scalar_lea.vmem %s5, %s6117
      $region52: #{flowhead_cla.1} parent=47 // pred_fallthru
        _
    $region48: #{flowhead_cla.1} parent=5 // pred_fallthru
      _
  $region6: #{flowhead_cla.1} parent=0 // loop_footer
    %s15 = sadd.s32 1, %s11
  $region7: #{flowhead_cla.1} parent=0 // loop_footer_branch
    %10 = sbr.rel target = $region3
  $region8: #{flowhead_cla.1} parent=0 // loop_exit
    _

</llo_original>
